<compile_context>
chip_gen: v6e
topology: v6e:2x2x1
jax: 0.10.0
libtpu: 0.0.40
codegen_flags: <defaults>
</compile_context>

<pallas_src>
import functools

import numpy as np
import jax
import jax.numpy as jnp
from jax.experimental import pallas as pl
from jax.experimental.pallas import tpu as pltpu

_BN_EPS = 1e-5


# ----------------------------------------------------------------------------
# Host-side (numpy, static-shape) helpers: interpolation / pad operator, masks.
# ----------------------------------------------------------------------------
def _interp_matrix_np(n_in, n_out):
    """1-D bilinear (align_corners=True) interpolation matrix (n_out, n_in)."""
    if n_in == 1 or n_out == 1:
        A = np.zeros((n_out, n_in), np.float32)
        A[:, 0] = 1.0
        return A
    src = np.arange(n_out, dtype=np.float64) * (n_in - 1) / (n_out - 1)
    lo = np.clip(np.floor(src).astype(np.int64), 0, n_in - 2)
    frac = (src - lo).astype(np.float32)
    A = np.zeros((n_out, n_in), np.float32)
    rows = np.arange(n_out)
    A[rows, lo] += 1.0 - frac
    A[rows, lo + 1] += frac
    return A


def _pad_interp_np(n_in, n_up, n_target):
    """Upsample (n_in -> n_up) then zero-pad to n_target, as one matrix.

    Pad split matches F.pad in the reference: low = diff // 2, high = rest.
    """
    A = _interp_matrix_np(n_in, n_up)
    diff = n_target - n_up
    assert diff >= 0, "encoder feature must be at least as large as upsampled x1"
    lo = diff // 2
    hi = diff - lo
    return np.pad(A, ((lo, hi), (0, 0))).astype(np.float32)


def _tap_masks_np(H, W):
    """(9, 1, H*W) validity masks for the 9 taps of a 3x3 'same' conv."""
    m = np.zeros((9, 1, H * W), np.float32)
    ys, xs = np.meshgrid(np.arange(H), np.arange(W), indexing="ij")
    ys = ys.reshape(-1)
    xs = xs.reshape(-1)
    t = 0
    for dy in (-1, 0, 1):
        for dx in (-1, 0, 1):
            ok = (ys + dy >= 0) & (ys + dy < H) & (xs + dx >= 0) & (xs + dx < W)
            m[t, 0, :] = ok.astype(np.float32)
            t += 1
    return m


# ----------------------------------------------------------------------------
# Fused Pallas kernel: upsample + pad + concat + (conv3x3+BN+ReLU) x 2.
# One image per grid step; batch axis marked "parallel".
# ----------------------------------------------------------------------------
def _upsample_doubleconv_kernel(
        x1_ref, x2_ref, At_ref, mask_ref,
        w1a_ref, w1b_ref, w2_ref,
        s1_ref, b1_ref, s2_ref, b2_ref,
        o_ref, *, W):
    # x1_ref : (1, C1, H1*W1)   decoder feature, spatial flattened on lanes
    # x2_ref : (1, C2, H*W)     encoder skip feature
    # At_ref : (H1*W1, H*W)     fused (bilinear upsample + zero-pad) operator
    # mask_ref:(9, 1, H*W)      per-tap border masks for the 3x3 'same' conv
    # w1a_ref: (9, Cout, C2)    conv1 taps acting on x2 channels
    # w1b_ref: (9, Cout, C1)    conv1 taps acting on upsampled-x1 channels
    # w2_ref : (9, Cout, Cout)  conv2 taps
    # s*/b*  : (Cout, 1)        folded BN scale / shift (conv bias included)
    # o_ref  : (1, Cout, H*W)   lane-dense output (NCHW after a free reshape)
    HW = o_ref.shape[2]
    Cout = o_ref.shape[1]

    x1 = x1_ref[0]                      # (C1, H1*W1)
    x2 = x2_ref[0]                      # (C2, HW)

    # Bilinear upsample (align_corners=True) + pad-to-x2-size as one matmul.
    x1u = jnp.dot(x1, At_ref[...], preferred_element_type=jnp.float32)  # (C1, HW)

    offs = [dy * W + dx for dy in (-1, 0, 1) for dx in (-1, 0, 1)]

    def shift(v, off):
        # Shifted read on the flat spatial axis; wrapped lanes are masked out.
        return v if off == 0 else jnp.roll(v, -off, axis=-1)

    # ---- conv1 (implicit channel concat [x2, x1_up]) + BN + ReLU -----------
    acc = jnp.zeros((Cout, HW), jnp.float32)
    for t, off in enumerate(offs):
        tap = (jnp.dot(w1a_ref[t], shift(x2, off),
                       preferred_element_type=jnp.float32) +
               jnp.dot(w1b_ref[t], shift(x1u, off),
                       preferred_element_type=jnp.float32))
        acc = acc + mask_ref[t] * tap
    y = jnp.maximum(acc * s1_ref[...] + b1_ref[...], 0.0)   # (Cout, HW)

    # ---- conv2 + BN + ReLU (intermediate never leaves VMEM/vregs) ----------
    acc = jnp.zeros((Cout, HW), jnp.float32)
    for t, off in enumerate(offs):
        acc = acc + mask_ref[t] * jnp.dot(
            w2_ref[t], shift(y, off), preferred_element_type=jnp.float32)
    y = jnp.maximum(acc * s2_ref[...] + b2_ref[...], 0.0)

    o_ref[0] = y.astype(o_ref.dtype)


# ----------------------------------------------------------------------------
# Parameters (deterministic, synthetic).  BN + conv bias folded to scale/shift,
# weights stored per-tap: (9, Cout, Cin) with tap index t = (dy+1)*3 + (dx+1).
# ----------------------------------------------------------------------------
def make_params(in_channels, out_channels, key):
    c_skip = in_channels // 2          # x2 (encoder skip) channels
    # remaining channels belong to the upsampled decoder feature x1

    def conv_bn(keys, cin, cout):
        kw, kb, kg, kbe, km, kv = keys
        w = 0.1 * jax.random.normal(kw, (3, 3, cin, cout), jnp.float32)  # HWIO
        b = 0.1 * jax.random.normal(kb, (cout,), jnp.float32)
        gamma = 1.0 + 0.1 * jax.random.normal(kg, (cout,), jnp.float32)
        beta = 0.1 * jax.random.normal(kbe, (cout,), jnp.float32)
        mean = 0.1 * jax.random.normal(km, (cout,), jnp.float32)
        var = jax.random.uniform(kv, (cout,), jnp.float32, minval=0.5, maxval=1.5)
        scale = gamma / jnp.sqrt(var + _BN_EPS)
        shift = (b - mean) * scale + beta
        w_tap = jnp.transpose(w, (0, 1, 3, 2)).reshape(9, cout, cin)
        return w_tap, scale.reshape(cout, 1), shift.reshape(cout, 1)

    ks = jax.random.split(key, 12)
    w1_tap, s1, b1 = conv_bn(ks[0:6], in_channels, out_channels)
    w2_tap, s2, b2 = conv_bn(ks[6:12], out_channels, out_channels)
    return dict(
        # conv1 split over the concat boundary: channels [x2 | x1_up]
        w1a=w1_tap[:, :, :c_skip],
        w1b=w1_tap[:, :, c_skip:],
        w2=w2_tap,
        scale1=s1, shift1=b1, scale2=s2, shift2=b2)


# ----------------------------------------------------------------------------
# upsample.forward(x1, x2) — NCHW in, NCHW out (no transposes, only reshapes).
# ----------------------------------------------------------------------------
def upsample_forward(params, x1_nchw, x2_nchw):
    N, C1, H1, W1 = x1_nchw.shape
    N2, C2, H, W = x2_nchw.shape
    assert N == N2
    assert params["w1a"].shape[2] == C2 and params["w1b"].shape[2] == C1
    HW1 = H1 * W1
    HW = H * W
    Cout = params["w2"].shape[1]

    x1 = x1_nchw.astype(jnp.float32).reshape(N, C1, HW1)   # free reshape
    x2 = x2_nchw.astype(jnp.float32).reshape(N, C2, HW)    # free reshape

    # Fused (upsample x2, align_corners=True) + (F.pad to x2 size) operator.
    Ah = _pad_interp_np(H1, 2 * H1, H)                  # (H, H1)
    Aw = _pad_interp_np(W1, 2 * W1, W)                  # (W, W1)
    At = jnp.asarray(np.kron(Ah, Aw).T)                 # (H1*W1, H*W)
    masks = jnp.asarray(_tap_masks_np(H, W))            # (9, 1, H*W)

    flops = N * (2 * C1 * HW1 * HW
                 + 2 * 9 * HW * Cout * (C1 + C2)
                 + 2 * 9 * HW * Cout * Cout)
    bytes_accessed = 4 * (N * (C1 * HW1 + C2 * HW + Cout * HW)
                          + HW1 * HW + 9 * HW
                          + 9 * Cout * (C1 + C2 + Cout) + 4 * Cout)

    kernel = functools.partial(_upsample_doubleconv_kernel, W=W)

    out_flat = pl.pallas_call(
        kernel,
        out_shape=jax.ShapeDtypeStruct((N, Cout, HW), jnp.float32),
        grid=(N,),
        in_specs=[
            pl.BlockSpec((1, C1, HW1), lambda n: (n, 0, 0)),
            pl.BlockSpec((1, C2, HW), lambda n: (n, 0, 0)),
            pl.BlockSpec((HW1, HW), lambda n: (0, 0)),
            pl.BlockSpec((9, 1, HW), lambda n: (0, 0, 0)),
            pl.BlockSpec((9, Cout, C2), lambda n: (0, 0, 0)),
            pl.BlockSpec((9, Cout, C1), lambda n: (0, 0, 0)),
            pl.BlockSpec((9, Cout, Cout), lambda n: (0, 0, 0)),
            pl.BlockSpec((Cout, 1), lambda n: (0, 0)),
            pl.BlockSpec((Cout, 1), lambda n: (0, 0)),
            pl.BlockSpec((Cout, 1), lambda n: (0, 0)),
            pl.BlockSpec((Cout, 1), lambda n: (0, 0)),
        ],
        out_specs=pl.BlockSpec((1, Cout, HW), lambda n: (n, 0, 0)),
        compiler_params=pltpu.CompilerParams(
            dimension_semantics=("parallel",)),
        cost_estimate=pl.CostEstimate(
            flops=flops, transcendentals=0, bytes_accessed=bytes_accessed),
    )(x1, x2, At, masks,
      params["w1a"], params["w1b"], params["w2"],
      params["scale1"], params["shift1"], params["scale2"], params["shift2"])

    return out_flat.reshape(N, Cout, H, W)   # free reshape, already NCHW


# ----------------------------------------------------------------------------
# Pure-JAX reference (for a cheap self-check of the fused kernel).
# ----------------------------------------------------------------------------
def _reference_forward(params, x1, x2):
    N, C1, H1, W1 = x1.shape
    _, C2, H, W = x2.shape
    Ah = jnp.asarray(_pad_interp_np(H1, 2 * H1, H))
    Aw = jnp.asarray(_pad_interp_np(W1, 2 * W1, W))
    x1u = jnp.einsum("yh,xw,nchw->ncyx", Ah, Aw, x1.astype(jnp.float32),
                     precision=jax.lax.Precision.HIGHEST)
    x = jnp.concatenate([x2.astype(jnp.float32), x1u], axis=1)

    def conv_bn_relu(inp, w_tap, scale, shift):
        cout, cin = w_tap.shape[1], w_tap.shape[2]
        w_oihw = jnp.transpose(w_tap.reshape(3, 3, cout, cin), (2, 3, 0, 1))
        y = jax.lax.conv_general_dilated(
            inp, w_oihw, window_strides=(1, 1), padding=((1, 1), (1, 1)),
            dimension_numbers=("NCHW", "OIHW", "NCHW"),
            precision=jax.lax.Precision.HIGHEST)
        y = y * scale.reshape(1, cout, 1, 1) + shift.reshape(1, cout, 1, 1)
        return jnp.maximum(y, 0.0)

    w1_tap = jnp.concatenate([params["w1a"], params["w1b"]], axis=2)
    y = conv_bn_relu(x, w1_tap, params["scale1"], params["shift1"])
    y = conv_bn_relu(y, params["w2"], params["scale2"], params["shift2"])
    return y


if __name__ == "__main__":
    in_channels, out_channels = 8, 4   # bilinear branch: x1 and x2 each carry in_channels // 2

    key = jax.random.PRNGKey(0)
    k_params, k_x1, k_x2 = jax.random.split(key, 3)

    params = make_params(in_channels, out_channels, k_params)

    # x1: decoder feature (smaller spatial), x2: encoder skip feature (NCHW)
    x1 = jax.random.normal(k_x1, (2, in_channels // 2, 8, 8), jnp.float32)
    x2 = jax.random.normal(k_x2, (2, in_channels // 2, 16, 16), jnp.float32)

    out = upsample_forward(params, x1, x2)
    out = jax.block_until_ready(out)
    assert out.shape == (2, out_channels, 16, 16), out.shape

    ref = jax.block_until_ready(_reference_forward(params, x1, x2))
    max_err = float(jnp.max(jnp.abs(out - ref)))
    assert max_err < 1e-3, f"mismatch vs reference: {max_err}"

    print("KERNEL_OK")
</pallas_src>

<mosaic_0001>
module attributes {stable_mosaic.version = 11 : i64} {
  func.func @_upsample_doubleconv_kernel(%arg0: i32, %arg1: memref<1x4x64xf32, #tpu.memory_space<vmem>>, %arg2: memref<1x4x256xf32, #tpu.memory_space<vmem>>, %arg3: memref<64x256xf32, #tpu.memory_space<vmem>>, %arg4: memref<9x1x256xf32, #tpu.memory_space<vmem>>, %arg5: memref<9x4x4xf32, #tpu.memory_space<vmem>>, %arg6: memref<9x4x4xf32, #tpu.memory_space<vmem>>, %arg7: memref<9x4x4xf32, #tpu.memory_space<vmem>>, %arg8: memref<4x1xf32, #tpu.memory_space<vmem>>, %arg9: memref<4x1xf32, #tpu.memory_space<vmem>>, %arg10: memref<4x1xf32, #tpu.memory_space<vmem>>, %arg11: memref<4x1xf32, #tpu.memory_space<vmem>>, %arg12: memref<1x4x256xf32, #tpu.memory_space<vmem>>) attributes {dimension_semantics = [#tpu.dimension_semantics<parallel>], iteration_bounds = array<i64: 2>, scalar_prefetch = 0 : i64, scratch_operands = 0 : i64, tpu.core_type = #tpu.core_type<tc>, window_params = [{transform_indices = @transform_0, window_bounds = array<i64: 1, 4, 64>}, {transform_indices = @transform_1, window_bounds = array<i64: 1, 4, 256>}, {pipeline_mode = #tpu.pipeline_mode<synchronous>, transform_indices = @transform_2, window_bounds = array<i64: 64, 256>}, {pipeline_mode = #tpu.pipeline_mode<synchronous>, transform_indices = @transform_3, window_bounds = array<i64: 9, 1, 256>}, {pipeline_mode = #tpu.pipeline_mode<synchronous>, transform_indices = @transform_4, window_bounds = array<i64: 9, 4, 4>}, {pipeline_mode = #tpu.pipeline_mode<synchronous>, transform_indices = @transform_5, window_bounds = array<i64: 9, 4, 4>}, {pipeline_mode = #tpu.pipeline_mode<synchronous>, transform_indices = @transform_6, window_bounds = array<i64: 9, 4, 4>}, {pipeline_mode = #tpu.pipeline_mode<synchronous>, transform_indices = @transform_7, window_bounds = array<i64: 4, 1>}, {pipeline_mode = #tpu.pipeline_mode<synchronous>, transform_indices = @transform_8, window_bounds = array<i64: 4, 1>}, {pipeline_mode = #tpu.pipeline_mode<synchronous>, transform_indices = @transform_9, window_bounds = array<i64: 4, 1>}, {pipeline_mode = #tpu.pipeline_mode<synchronous>, transform_indices = @transform_10, window_bounds = array<i64: 4, 1>}, {transform_indices = @transform_11, window_bounds = array<i64: 1, 4, 256>}]} {
    %c0 = arith.constant 0 : index
    %c0_0 = arith.constant 0 : index
    %c0_1 = arith.constant 0 : index
    %0 = vector.load %arg1[%c0, %c0_0, %c0_1] : memref<1x4x64xf32, #tpu.memory_space<vmem>>, vector<1x4x64xf32>
    %1 = vector.shape_cast %0 : vector<1x4x64xf32> to vector<4x64xf32>
    %c0_2 = arith.constant 0 : index
    %c0_3 = arith.constant 0 : index
    %c0_4 = arith.constant 0 : index
    %2 = vector.load %arg2[%c0_2, %c0_3, %c0_4] : memref<1x4x256xf32, #tpu.memory_space<vmem>>, vector<1x4x256xf32>
    %3 = vector.shape_cast %2 : vector<1x4x256xf32> to vector<4x256xf32>
    %c0_5 = arith.constant 0 : index
    %c0_6 = arith.constant 0 : index
    %4 = vector.load %arg3[%c0_5, %c0_6] : memref<64x256xf32, #tpu.memory_space<vmem>>, vector<64x256xf32>
    %cst = arith.constant dense<0.000000e+00> : vector<4x256xf32>
    %5 = tpu.matmul %1, %4, %cst {dimension_numbers = #tpu.dot_dimension_numbers<[1], [0], [0], [1], [0, 0, 1, 1], [], []>} : vector<4x64xf32>, vector<64x256xf32>, vector<4x256xf32> -> vector<4x256xf32>
    %cst_7 = arith.constant 0.000000e+00 : f32
    %6 = vector.broadcast %cst_7 : f32 to vector<4x256xf32>
    %c0_8 = arith.constant 0 : index
    %c0_9 = arith.constant 0 : index
    %c0_10 = arith.constant 0 : index
    %7 = vector.load %arg5[%c0_8, %c0_9, %c0_10] : memref<9x4x4xf32, #tpu.memory_space<vmem>>, vector<1x4x4xf32>
    %8 = vector.shape_cast %7 : vector<1x4x4xf32> to vector<4x4xf32>
    %9 = vector.extract_strided_slice %3 {offsets = [0, 239], sizes = [4, 17], strides = [1, 1]} : vector<4x256xf32> to vector<4x17xf32>
    %10 = vector.extract_strided_slice %3 {offsets = [0, 0], sizes = [4, 239], strides = [1, 1]} : vector<4x256xf32> to vector<4x239xf32>
    %11 = tpu.concatenate %9, %10 in 1 : vector<4x17xf32>, vector<4x239xf32> -> vector<4x256xf32>
    %cst_11 = arith.constant dense<0.000000e+00> : vector<4x256xf32>
    %12 = tpu.matmul %8, %11, %cst_11 {dimension_numbers = #tpu.dot_dimension_numbers<[1], [0], [0], [1], [0, 0, 1, 1], [], []>} : vector<4x4xf32>, vector<4x256xf32>, vector<4x256xf32> -> vector<4x256xf32>
    %c0_12 = arith.constant 0 : index
    %c0_13 = arith.constant 0 : index
    %c0_14 = arith.constant 0 : index
    %13 = vector.load %arg6[%c0_12, %c0_13, %c0_14] : memref<9x4x4xf32, #tpu.memory_space<vmem>>, vector<1x4x4xf32>
    %14 = vector.shape_cast %13 : vector<1x4x4xf32> to vector<4x4xf32>
    %15 = vector.extract_strided_slice %5 {offsets = [0, 239], sizes = [4, 17], strides = [1, 1]} : vector<4x256xf32> to vector<4x17xf32>
    %16 = vector.extract_strided_slice %5 {offsets = [0, 0], sizes = [4, 239], strides = [1, 1]} : vector<4x256xf32> to vector<4x239xf32>
    %17 = tpu.concatenate %15, %16 in 1 : vector<4x17xf32>, vector<4x239xf32> -> vector<4x256xf32>
    %cst_15 = arith.constant dense<0.000000e+00> : vector<4x256xf32>
    %18 = tpu.matmul %14, %17, %cst_15 {dimension_numbers = #tpu.dot_dimension_numbers<[1], [0], [0], [1], [0, 0, 1, 1], [], []>} : vector<4x4xf32>, vector<4x256xf32>, vector<4x256xf32> -> vector<4x256xf32>
    %19 = arith.addf %12, %18 : vector<4x256xf32>
    %c0_16 = arith.constant 0 : index
    %c0_17 = arith.constant 0 : index
    %c0_18 = arith.constant 0 : index
    %20 = vector.load %arg4[%c0_16, %c0_17, %c0_18] : memref<9x1x256xf32, #tpu.memory_space<vmem>>, vector<1x1x256xf32>
    %21 = vector.shape_cast %20 : vector<1x1x256xf32> to vector<1x256xf32>
    %22 = vector.broadcast %21 : vector<1x256xf32> to vector<4x256xf32>
    %23 = arith.mulf %22, %19 : vector<4x256xf32>
    %24 = arith.addf %6, %23 : vector<4x256xf32>
    %c1 = arith.constant 1 : index
    %c0_19 = arith.constant 0 : index
    %c0_20 = arith.constant 0 : index
    %25 = vector.load %arg5[%c1, %c0_19, %c0_20] : memref<9x4x4xf32, #tpu.memory_space<vmem>>, vector<1x4x4xf32>
    %26 = vector.shape_cast %25 : vector<1x4x4xf32> to vector<4x4xf32>
    %27 = vector.extract_strided_slice %3 {offsets = [0, 240], sizes = [4, 16], strides = [1, 1]} : vector<4x256xf32> to vector<4x16xf32>
    %28 = vector.extract_strided_slice %3 {offsets = [0, 0], sizes = [4, 240], strides = [1, 1]} : vector<4x256xf32> to vector<4x240xf32>
    %29 = tpu.concatenate %27, %28 in 1 : vector<4x16xf32>, vector<4x240xf32> -> vector<4x256xf32>
    %cst_21 = arith.constant dense<0.000000e+00> : vector<4x256xf32>
    %30 = tpu.matmul %26, %29, %cst_21 {dimension_numbers = #tpu.dot_dimension_numbers<[1], [0], [0], [1], [0, 0, 1, 1], [], []>} : vector<4x4xf32>, vector<4x256xf32>, vector<4x256xf32> -> vector<4x256xf32>
    %c1_22 = arith.constant 1 : index
    %c0_23 = arith.constant 0 : index
    %c0_24 = arith.constant 0 : index
    %31 = vector.load %arg6[%c1_22, %c0_23, %c0_24] : memref<9x4x4xf32, #tpu.memory_space<vmem>>, vector<1x4x4xf32>
    %32 = vector.shape_cast %31 : vector<1x4x4xf32> to vector<4x4xf32>
    %33 = vector.extract_strided_slice %5 {offsets = [0, 240], sizes = [4, 16], strides = [1, 1]} : vector<4x256xf32> to vector<4x16xf32>
    %34 = vector.extract_strided_slice %5 {offsets = [0, 0], sizes = [4, 240], strides = [1, 1]} : vector<4x256xf32> to vector<4x240xf32>
    %35 = tpu.concatenate %33, %34 in 1 : vector<4x16xf32>, vector<4x240xf32> -> vector<4x256xf32>
    %cst_25 = arith.constant dense<0.000000e+00> : vector<4x256xf32>
    %36 = tpu.matmul %32, %35, %cst_25 {dimension_numbers = #tpu.dot_dimension_numbers<[1], [0], [0], [1], [0, 0, 1, 1], [], []>} : vector<4x4xf32>, vector<4x256xf32>, vector<4x256xf32> -> vector<4x256xf32>
    %37 = arith.addf %30, %36 : vector<4x256xf32>
    %c1_26 = arith.constant 1 : index
    %c0_27 = arith.constant 0 : index
    %c0_28 = arith.constant 0 : index
    %38 = vector.load %arg4[%c1_26, %c0_27, %c0_28] : memref<9x1x256xf32, #tpu.memory_space<vmem>>, vector<1x1x256xf32>
    %39 = vector.shape_cast %38 : vector<1x1x256xf32> to vector<1x256xf32>
    %40 = vector.broadcast %39 : vector<1x256xf32> to vector<4x256xf32>
    %41 = arith.mulf %40, %37 : vector<4x256xf32>
    %42 = arith.addf %24, %41 : vector<4x256xf32>
    %c2 = arith.constant 2 : index
    %c0_29 = arith.constant 0 : index
    %c0_30 = arith.constant 0 : index
    %43 = vector.load %arg5[%c2, %c0_29, %c0_30] : memref<9x4x4xf32, #tpu.memory_space<vmem>>, vector<1x4x4xf32>
    %44 = vector.shape_cast %43 : vector<1x4x4xf32> to vector<4x4xf32>
    %45 = vector.extract_strided_slice %3 {offsets = [0, 241], sizes = [4, 15], strides = [1, 1]} : vector<4x256xf32> to vector<4x15xf32>
    %46 = vector.extract_strided_slice %3 {offsets = [0, 0], sizes = [4, 241], strides = [1, 1]} : vector<4x256xf32> to vector<4x241xf32>
    %47 = tpu.concatenate %45, %46 in 1 : vector<4x15xf32>, vector<4x241xf32> -> vector<4x256xf32>
    %cst_31 = arith.constant dense<0.000000e+00> : vector<4x256xf32>
    %48 = tpu.matmul %44, %47, %cst_31 {dimension_numbers = #tpu.dot_dimension_numbers<[1], [0], [0], [1], [0, 0, 1, 1], [], []>} : vector<4x4xf32>, vector<4x256xf32>, vector<4x256xf32> -> vector<4x256xf32>
    %c2_32 = arith.constant 2 : index
    %c0_33 = arith.constant 0 : index
    %c0_34 = arith.constant 0 : index
    %49 = vector.load %arg6[%c2_32, %c0_33, %c0_34] : memref<9x4x4xf32, #tpu.memory_space<vmem>>, vector<1x4x4xf32>
    %50 = vector.shape_cast %49 : vector<1x4x4xf32> to vector<4x4xf32>
    %51 = vector.extract_strided_slice %5 {offsets = [0, 241], sizes = [4, 15], strides = [1, 1]} : vector<4x256xf32> to vector<4x15xf32>
    %52 = vector.extract_strided_slice %5 {offsets = [0, 0], sizes = [4, 241], strides = [1, 1]} : vector<4x256xf32> to vector<4x241xf32>
    %53 = tpu.concatenate %51, %52 in 1 : vector<4x15xf32>, vector<4x241xf32> -> vector<4x256xf32>
    %cst_35 = arith.constant dense<0.000000e+00> : vector<4x256xf32>
    %54 = tpu.matmul %50, %53, %cst_35 {dimension_numbers = #tpu.dot_dimension_numbers<[1], [0], [0], [1], [0, 0, 1, 1], [], []>} : vector<4x4xf32>, vector<4x256xf32>, vector<4x256xf32> -> vector<4x256xf32>
    %55 = arith.addf %48, %54 : vector<4x256xf32>
    %c2_36 = arith.constant 2 : index
    %c0_37 = arith.constant 0 : index
    %c0_38 = arith.constant 0 : index
    %56 = vector.load %arg4[%c2_36, %c0_37, %c0_38] : memref<9x1x256xf32, #tpu.memory_space<vmem>>, vector<1x1x256xf32>
    %57 = vector.shape_cast %56 : vector<1x1x256xf32> to vector<1x256xf32>
    %58 = vector.broadcast %57 : vector<1x256xf32> to vector<4x256xf32>
    %59 = arith.mulf %58, %55 : vector<4x256xf32>
    %60 = arith.addf %42, %59 : vector<4x256xf32>
    %c3 = arith.constant 3 : index
    %c0_39 = arith.constant 0 : index
    %c0_40 = arith.constant 0 : index
    %61 = vector.load %arg5[%c3, %c0_39, %c0_40] : memref<9x4x4xf32, #tpu.memory_space<vmem>>, vector<1x4x4xf32>
    %62 = vector.shape_cast %61 : vector<1x4x4xf32> to vector<4x4xf32>
    %63 = vector.extract_strided_slice %3 {offsets = [0, 255], sizes = [4, 1], strides = [1, 1]} : vector<4x256xf32> to vector<4x1xf32>
    %64 = vector.extract_strided_slice %3 {offsets = [0, 0], sizes = [4, 255], strides = [1, 1]} : vector<4x256xf32> to vector<4x255xf32>
    %65 = tpu.concatenate %63, %64 in 1 : vector<4x1xf32>, vector<4x255xf32> -> vector<4x256xf32>
    %cst_41 = arith.constant dense<0.000000e+00> : vector<4x256xf32>
    %66 = tpu.matmul %62, %65, %cst_41 {dimension_numbers = #tpu.dot_dimension_numbers<[1], [0], [0], [1], [0, 0, 1, 1], [], []>} : vector<4x4xf32>, vector<4x256xf32>, vector<4x256xf32> -> vector<4x256xf32>
    %c3_42 = arith.constant 3 : index
    %c0_43 = arith.constant 0 : index
    %c0_44 = arith.constant 0 : index
    %67 = vector.load %arg6[%c3_42, %c0_43, %c0_44] : memref<9x4x4xf32, #tpu.memory_space<vmem>>, vector<1x4x4xf32>
    %68 = vector.shape_cast %67 : vector<1x4x4xf32> to vector<4x4xf32>
    %69 = vector.extract_strided_slice %5 {offsets = [0, 255], sizes = [4, 1], strides = [1, 1]} : vector<4x256xf32> to vector<4x1xf32>
    %70 = vector.extract_strided_slice %5 {offsets = [0, 0], sizes = [4, 255], strides = [1, 1]} : vector<4x256xf32> to vector<4x255xf32>
    %71 = tpu.concatenate %69, %70 in 1 : vector<4x1xf32>, vector<4x255xf32> -> vector<4x256xf32>
    %cst_45 = arith.constant dense<0.000000e+00> : vector<4x256xf32>
    %72 = tpu.matmul %68, %71, %cst_45 {dimension_numbers = #tpu.dot_dimension_numbers<[1], [0], [0], [1], [0, 0, 1, 1], [], []>} : vector<4x4xf32>, vector<4x256xf32>, vector<4x256xf32> -> vector<4x256xf32>
    %73 = arith.addf %66, %72 : vector<4x256xf32>
    %c3_46 = arith.constant 3 : index
    %c0_47 = arith.constant 0 : index
    %c0_48 = arith.constant 0 : index
    %74 = vector.load %arg4[%c3_46, %c0_47, %c0_48] : memref<9x1x256xf32, #tpu.memory_space<vmem>>, vector<1x1x256xf32>
    %75 = vector.shape_cast %74 : vector<1x1x256xf32> to vector<1x256xf32>
    %76 = vector.broadcast %75 : vector<1x256xf32> to vector<4x256xf32>
    %77 = arith.mulf %76, %73 : vector<4x256xf32>
    %78 = arith.addf %60, %77 : vector<4x256xf32>
    %c4 = arith.constant 4 : index
    %c0_49 = arith.constant 0 : index
    %c0_50 = arith.constant 0 : index
    %79 = vector.load %arg5[%c4, %c0_49, %c0_50] : memref<9x4x4xf32, #tpu.memory_space<vmem>>, vector<1x4x4xf32>
    %80 = vector.shape_cast %79 : vector<1x4x4xf32> to vector<4x4xf32>
    %cst_51 = arith.constant dense<0.000000e+00> : vector<4x256xf32>
    %81 = tpu.matmul %80, %3, %cst_51 {dimension_numbers = #tpu.dot_dimension_numbers<[1], [0], [0], [1], [0, 0, 1, 1], [], []>} : vector<4x4xf32>, vector<4x256xf32>, vector<4x256xf32> -> vector<4x256xf32>
    %c4_52 = arith.constant 4 : index
    %c0_53 = arith.constant 0 : index
    %c0_54 = arith.constant 0 : index
    %82 = vector.load %arg6[%c4_52, %c0_53, %c0_54] : memref<9x4x4xf32, #tpu.memory_space<vmem>>, vector<1x4x4xf32>
    %83 = vector.shape_cast %82 : vector<1x4x4xf32> to vector<4x4xf32>
    %cst_55 = arith.constant dense<0.000000e+00> : vector<4x256xf32>
    %84 = tpu.matmul %83, %5, %cst_55 {dimension_numbers = #tpu.dot_dimension_numbers<[1], [0], [0], [1], [0, 0, 1, 1], [], []>} : vector<4x4xf32>, vector<4x256xf32>, vector<4x256xf32> -> vector<4x256xf32>
    %85 = arith.addf %81, %84 : vector<4x256xf32>
    %c4_56 = arith.constant 4 : index
    %c0_57 = arith.constant 0 : index
    %c0_58 = arith.constant 0 : index
    %86 = vector.load %arg4[%c4_56, %c0_57, %c0_58] : memref<9x1x256xf32, #tpu.memory_space<vmem>>, vector<1x1x256xf32>
    %87 = vector.shape_cast %86 : vector<1x1x256xf32> to vector<1x256xf32>
    %88 = vector.broadcast %87 : vector<1x256xf32> to vector<4x256xf32>
    %89 = arith.mulf %88, %85 : vector<4x256xf32>
    %90 = arith.addf %78, %89 : vector<4x256xf32>
    %c5 = arith.constant 5 : index
    %c0_59 = arith.constant 0 : index
    %c0_60 = arith.constant 0 : index
    %91 = vector.load %arg5[%c5, %c0_59, %c0_60] : memref<9x4x4xf32, #tpu.memory_space<vmem>>, vector<1x4x4xf32>
    %92 = vector.shape_cast %91 : vector<1x4x4xf32> to vector<4x4xf32>
    %93 = vector.extract_strided_slice %3 {offsets = [0, 1], sizes = [4, 255], strides = [1, 1]} : vector<4x256xf32> to vector<4x255xf32>
    %94 = vector.extract_strided_slice %3 {offsets = [0, 0], sizes = [4, 1], strides = [1, 1]} : vector<4x256xf32> to vector<4x1xf32>
    %95 = tpu.concatenate %93, %94 in 1 : vector<4x255xf32>, vector<4x1xf32> -> vector<4x256xf32>
    %cst_61 = arith.constant dense<0.000000e+00> : vector<4x256xf32>
    %96 = tpu.matmul %92, %95, %cst_61 {dimension_numbers = #tpu.dot_dimension_numbers<[1], [0], [0], [1], [0, 0, 1, 1], [], []>} : vector<4x4xf32>, vector<4x256xf32>, vector<4x256xf32> -> vector<4x256xf32>
    %c5_62 = arith.constant 5 : index
    %c0_63 = arith.constant 0 : index
    %c0_64 = arith.constant 0 : index
    %97 = vector.load %arg6[%c5_62, %c0_63, %c0_64] : memref<9x4x4xf32, #tpu.memory_space<vmem>>, vector<1x4x4xf32>
    %98 = vector.shape_cast %97 : vector<1x4x4xf32> to vector<4x4xf32>
    %99 = vector.extract_strided_slice %5 {offsets = [0, 1], sizes = [4, 255], strides = [1, 1]} : vector<4x256xf32> to vector<4x255xf32>
    %100 = vector.extract_strided_slice %5 {offsets = [0, 0], sizes = [4, 1], strides = [1, 1]} : vector<4x256xf32> to vector<4x1xf32>
    %101 = tpu.concatenate %99, %100 in 1 : vector<4x255xf32>, vector<4x1xf32> -> vector<4x256xf32>
    %cst_65 = arith.constant dense<0.000000e+00> : vector<4x256xf32>
    %102 = tpu.matmul %98, %101, %cst_65 {dimension_numbers = #tpu.dot_dimension_numbers<[1], [0], [0], [1], [0, 0, 1, 1], [], []>} : vector<4x4xf32>, vector<4x256xf32>, vector<4x256xf32> -> vector<4x256xf32>
    %103 = arith.addf %96, %102 : vector<4x256xf32>
    %c5_66 = arith.constant 5 : index
    %c0_67 = arith.constant 0 : index
    %c0_68 = arith.constant 0 : index
    %104 = vector.load %arg4[%c5_66, %c0_67, %c0_68] : memref<9x1x256xf32, #tpu.memory_space<vmem>>, vector<1x1x256xf32>
    %105 = vector.shape_cast %104 : vector<1x1x256xf32> to vector<1x256xf32>
    %106 = vector.broadcast %105 : vector<1x256xf32> to vector<4x256xf32>
    %107 = arith.mulf %106, %103 : vector<4x256xf32>
    %108 = arith.addf %90, %107 : vector<4x256xf32>
    %c6 = arith.constant 6 : index
    %c0_69 = arith.constant 0 : index
    %c0_70 = arith.constant 0 : index
    %109 = vector.load %arg5[%c6, %c0_69, %c0_70] : memref<9x4x4xf32, #tpu.memory_space<vmem>>, vector<1x4x4xf32>
    %110 = vector.shape_cast %109 : vector<1x4x4xf32> to vector<4x4xf32>
    %111 = vector.extract_strided_slice %3 {offsets = [0, 15], sizes = [4, 241], strides = [1, 1]} : vector<4x256xf32> to vector<4x241xf32>
    %112 = vector.extract_strided_slice %3 {offsets = [0, 0], sizes = [4, 15], strides = [1, 1]} : vector<4x256xf32> to vector<4x15xf32>
    %113 = tpu.concatenate %111, %112 in 1 : vector<4x241xf32>, vector<4x15xf32> -> vector<4x256xf32>
    %cst_71 = arith.constant dense<0.000000e+00> : vector<4x256xf32>
    %114 = tpu.matmul %110, %113, %cst_71 {dimension_numbers = #tpu.dot_dimension_numbers<[1], [0], [0], [1], [0, 0, 1, 1], [], []>} : vector<4x4xf32>, vector<4x256xf32>, vector<4x256xf32> -> vector<4x256xf32>
    %c6_72 = arith.constant 6 : index
    %c0_73 = arith.constant 0 : index
    %c0_74 = arith.constant 0 : index
    %115 = vector.load %arg6[%c6_72, %c0_73, %c0_74] : memref<9x4x4xf32, #tpu.memory_space<vmem>>, vector<1x4x4xf32>
    %116 = vector.shape_cast %115 : vector<1x4x4xf32> to vector<4x4xf32>
    %117 = vector.extract_strided_slice %5 {offsets = [0, 15], sizes = [4, 241], strides = [1, 1]} : vector<4x256xf32> to vector<4x241xf32>
    %118 = vector.extract_strided_slice %5 {offsets = [0, 0], sizes = [4, 15], strides = [1, 1]} : vector<4x256xf32> to vector<4x15xf32>
    %119 = tpu.concatenate %117, %118 in 1 : vector<4x241xf32>, vector<4x15xf32> -> vector<4x256xf32>
    %cst_75 = arith.constant dense<0.000000e+00> : vector<4x256xf32>
    %120 = tpu.matmul %116, %119, %cst_75 {dimension_numbers = #tpu.dot_dimension_numbers<[1], [0], [0], [1], [0, 0, 1, 1], [], []>} : vector<4x4xf32>, vector<4x256xf32>, vector<4x256xf32> -> vector<4x256xf32>
    %121 = arith.addf %114, %120 : vector<4x256xf32>
    %c6_76 = arith.constant 6 : index
    %c0_77 = arith.constant 0 : index
    %c0_78 = arith.constant 0 : index
    %122 = vector.load %arg4[%c6_76, %c0_77, %c0_78] : memref<9x1x256xf32, #tpu.memory_space<vmem>>, vector<1x1x256xf32>
    %123 = vector.shape_cast %122 : vector<1x1x256xf32> to vector<1x256xf32>
    %124 = vector.broadcast %123 : vector<1x256xf32> to vector<4x256xf32>
    %125 = arith.mulf %124, %121 : vector<4x256xf32>
    %126 = arith.addf %108, %125 : vector<4x256xf32>
    %c7 = arith.constant 7 : index
    %c0_79 = arith.constant 0 : index
    %c0_80 = arith.constant 0 : index
    %127 = vector.load %arg5[%c7, %c0_79, %c0_80] : memref<9x4x4xf32, #tpu.memory_space<vmem>>, vector<1x4x4xf32>
    %128 = vector.shape_cast %127 : vector<1x4x4xf32> to vector<4x4xf32>
    %129 = vector.extract_strided_slice %3 {offsets = [0, 16], sizes = [4, 240], strides = [1, 1]} : vector<4x256xf32> to vector<4x240xf32>
    %130 = vector.extract_strided_slice %3 {offsets = [0, 0], sizes = [4, 16], strides = [1, 1]} : vector<4x256xf32> to vector<4x16xf32>
    %131 = tpu.concatenate %129, %130 in 1 : vector<4x240xf32>, vector<4x16xf32> -> vector<4x256xf32>
    %cst_81 = arith.constant dense<0.000000e+00> : vector<4x256xf32>
    %132 = tpu.matmul %128, %131, %cst_81 {dimension_numbers = #tpu.dot_dimension_numbers<[1], [0], [0], [1], [0, 0, 1, 1], [], []>} : vector<4x4xf32>, vector<4x256xf32>, vector<4x256xf32> -> vector<4x256xf32>
    %c7_82 = arith.constant 7 : index
    %c0_83 = arith.constant 0 : index
    %c0_84 = arith.constant 0 : index
    %133 = vector.load %arg6[%c7_82, %c0_83, %c0_84] : memref<9x4x4xf32, #tpu.memory_space<vmem>>, vector<1x4x4xf32>
    %134 = vector.shape_cast %133 : vector<1x4x4xf32> to vector<4x4xf32>
    %135 = vector.extract_strided_slice %5 {offsets = [0, 16], sizes = [4, 240], strides = [1, 1]} : vector<4x256xf32> to vector<4x240xf32>
    %136 = vector.extract_strided_slice %5 {offsets = [0, 0], sizes = [4, 16], strides = [1, 1]} : vector<4x256xf32> to vector<4x16xf32>
    %137 = tpu.concatenate %135, %136 in 1 : vector<4x240xf32>, vector<4x16xf32> -> vector<4x256xf32>
    %cst_85 = arith.constant dense<0.000000e+00> : vector<4x256xf32>
    %138 = tpu.matmul %134, %137, %cst_85 {dimension_numbers = #tpu.dot_dimension_numbers<[1], [0], [0], [1], [0, 0, 1, 1], [], []>} : vector<4x4xf32>, vector<4x256xf32>, vector<4x256xf32> -> vector<4x256xf32>
    %139 = arith.addf %132, %138 : vector<4x256xf32>
    %c7_86 = arith.constant 7 : index
    %c0_87 = arith.constant 0 : index
    %c0_88 = arith.constant 0 : index
    %140 = vector.load %arg4[%c7_86, %c0_87, %c0_88] : memref<9x1x256xf32, #tpu.memory_space<vmem>>, vector<1x1x256xf32>
    %141 = vector.shape_cast %140 : vector<1x1x256xf32> to vector<1x256xf32>
    %142 = vector.broadcast %141 : vector<1x256xf32> to vector<4x256xf32>
    %143 = arith.mulf %142, %139 : vector<4x256xf32>
    %144 = arith.addf %126, %143 : vector<4x256xf32>
    %c8 = arith.constant 8 : index
    %c0_89 = arith.constant 0 : index
    %c0_90 = arith.constant 0 : index
    %145 = vector.load %arg5[%c8, %c0_89, %c0_90] : memref<9x4x4xf32, #tpu.memory_space<vmem>>, vector<1x4x4xf32>
    %146 = vector.shape_cast %145 : vector<1x4x4xf32> to vector<4x4xf32>
    %147 = vector.extract_strided_slice %3 {offsets = [0, 17], sizes = [4, 239], strides = [1, 1]} : vector<4x256xf32> to vector<4x239xf32>
    %148 = vector.extract_strided_slice %3 {offsets = [0, 0], sizes = [4, 17], strides = [1, 1]} : vector<4x256xf32> to vector<4x17xf32>
    %149 = tpu.concatenate %147, %148 in 1 : vector<4x239xf32>, vector<4x17xf32> -> vector<4x256xf32>
    %cst_91 = arith.constant dense<0.000000e+00> : vector<4x256xf32>
    %150 = tpu.matmul %146, %149, %cst_91 {dimension_numbers = #tpu.dot_dimension_numbers<[1], [0], [0], [1], [0, 0, 1, 1], [], []>} : vector<4x4xf32>, vector<4x256xf32>, vector<4x256xf32> -> vector<4x256xf32>
    %c8_92 = arith.constant 8 : index
    %c0_93 = arith.constant 0 : index
    %c0_94 = arith.constant 0 : index
    %151 = vector.load %arg6[%c8_92, %c0_93, %c0_94] : memref<9x4x4xf32, #tpu.memory_space<vmem>>, vector<1x4x4xf32>
    %152 = vector.shape_cast %151 : vector<1x4x4xf32> to vector<4x4xf32>
    %153 = vector.extract_strided_slice %5 {offsets = [0, 17], sizes = [4, 239], strides = [1, 1]} : vector<4x256xf32> to vector<4x239xf32>
    %154 = vector.extract_strided_slice %5 {offsets = [0, 0], sizes = [4, 17], strides = [1, 1]} : vector<4x256xf32> to vector<4x17xf32>
    %155 = tpu.concatenate %153, %154 in 1 : vector<4x239xf32>, vector<4x17xf32> -> vector<4x256xf32>
    %cst_95 = arith.constant dense<0.000000e+00> : vector<4x256xf32>
    %156 = tpu.matmul %152, %155, %cst_95 {dimension_numbers = #tpu.dot_dimension_numbers<[1], [0], [0], [1], [0, 0, 1, 1], [], []>} : vector<4x4xf32>, vector<4x256xf32>, vector<4x256xf32> -> vector<4x256xf32>
    %157 = arith.addf %150, %156 : vector<4x256xf32>
    %c8_96 = arith.constant 8 : index
    %c0_97 = arith.constant 0 : index
    %c0_98 = arith.constant 0 : index
    %158 = vector.load %arg4[%c8_96, %c0_97, %c0_98] : memref<9x1x256xf32, #tpu.memory_space<vmem>>, vector<1x1x256xf32>
    %159 = vector.shape_cast %158 : vector<1x1x256xf32> to vector<1x256xf32>
    %160 = vector.broadcast %159 : vector<1x256xf32> to vector<4x256xf32>
    %161 = arith.mulf %160, %157 : vector<4x256xf32>
    %162 = arith.addf %144, %161 : vector<4x256xf32>
    %c0_99 = arith.constant 0 : index
    %c0_100 = arith.constant 0 : index
    %163 = vector.load %arg8[%c0_99, %c0_100] : memref<4x1xf32, #tpu.memory_space<vmem>>, vector<4x1xf32>
    %164 = vector.broadcast %163 : vector<4x1xf32> to vector<4x256xf32>
    %165 = arith.mulf %162, %164 : vector<4x256xf32>
    %c0_101 = arith.constant 0 : index
    %c0_102 = arith.constant 0 : index
    %166 = vector.load %arg9[%c0_101, %c0_102] : memref<4x1xf32, #tpu.memory_space<vmem>>, vector<4x1xf32>
    %167 = vector.broadcast %166 : vector<4x1xf32> to vector<4x256xf32>
    %168 = arith.addf %165, %167 : vector<4x256xf32>
    %cst_103 = arith.constant 0.000000e+00 : f32
    %169 = vector.broadcast %cst_103 : f32 to vector<4x256xf32>
    %170 = arith.maximumf %168, %169 : vector<4x256xf32>
    %cst_104 = arith.constant 0.000000e+00 : f32
    %171 = vector.broadcast %cst_104 : f32 to vector<4x256xf32>
    %c0_105 = arith.constant 0 : index
    %c0_106 = arith.constant 0 : index
    %c0_107 = arith.constant 0 : index
    %172 = vector.load %arg4[%c0_105, %c0_106, %c0_107] : memref<9x1x256xf32, #tpu.memory_space<vmem>>, vector<1x1x256xf32>
    %173 = vector.shape_cast %172 : vector<1x1x256xf32> to vector<1x256xf32>
    %c0_108 = arith.constant 0 : index
    %c0_109 = arith.constant 0 : index
    %c0_110 = arith.constant 0 : index
    %174 = vector.load %arg7[%c0_108, %c0_109, %c0_110] : memref<9x4x4xf32, #tpu.memory_space<vmem>>, vector<1x4x4xf32>
    %175 = vector.shape_cast %174 : vector<1x4x4xf32> to vector<4x4xf32>
    %176 = vector.extract_strided_slice %170 {offsets = [0, 239], sizes = [4, 17], strides = [1, 1]} : vector<4x256xf32> to vector<4x17xf32>
    %177 = vector.extract_strided_slice %170 {offsets = [0, 0], sizes = [4, 239], strides = [1, 1]} : vector<4x256xf32> to vector<4x239xf32>
    %178 = tpu.concatenate %176, %177 in 1 : vector<4x17xf32>, vector<4x239xf32> -> vector<4x256xf32>
    %cst_111 = arith.constant dense<0.000000e+00> : vector<4x256xf32>
    %179 = tpu.matmul %175, %178, %cst_111 {dimension_numbers = #tpu.dot_dimension_numbers<[1], [0], [0], [1], [0, 0, 1, 1], [], []>} : vector<4x4xf32>, vector<4x256xf32>, vector<4x256xf32> -> vector<4x256xf32>
    %180 = vector.broadcast %173 : vector<1x256xf32> to vector<4x256xf32>
    %181 = arith.mulf %180, %179 : vector<4x256xf32>
    %182 = arith.addf %171, %181 : vector<4x256xf32>
    %c1_112 = arith.constant 1 : index
    %c0_113 = arith.constant 0 : index
    %c0_114 = arith.constant 0 : index
    %183 = vector.load %arg4[%c1_112, %c0_113, %c0_114] : memref<9x1x256xf32, #tpu.memory_space<vmem>>, vector<1x1x256xf32>
    %184 = vector.shape_cast %183 : vector<1x1x256xf32> to vector<1x256xf32>
    %c1_115 = arith.constant 1 : index
    %c0_116 = arith.constant 0 : index
    %c0_117 = arith.constant 0 : index
    %185 = vector.load %arg7[%c1_115, %c0_116, %c0_117] : memref<9x4x4xf32, #tpu.memory_space<vmem>>, vector<1x4x4xf32>
    %186 = vector.shape_cast %185 : vector<1x4x4xf32> to vector<4x4xf32>
    %187 = vector.extract_strided_slice %170 {offsets = [0, 240], sizes = [4, 16], strides = [1, 1]} : vector<4x256xf32> to vector<4x16xf32>
    %188 = vector.extract_strided_slice %170 {offsets = [0, 0], sizes = [4, 240], strides = [1, 1]} : vector<4x256xf32> to vector<4x240xf32>
    %189 = tpu.concatenate %187, %188 in 1 : vector<4x16xf32>, vector<4x240xf32> -> vector<4x256xf32>
    %cst_118 = arith.constant dense<0.000000e+00> : vector<4x256xf32>
    %190 = tpu.matmul %186, %189, %cst_118 {dimension_numbers = #tpu.dot_dimension_numbers<[1], [0], [0], [1], [0, 0, 1, 1], [], []>} : vector<4x4xf32>, vector<4x256xf32>, vector<4x256xf32> -> vector<4x256xf32>
    %191 = vector.broadcast %184 : vector<1x256xf32> to vector<4x256xf32>
    %192 = arith.mulf %191, %190 : vector<4x256xf32>
    %193 = arith.addf %182, %192 : vector<4x256xf32>
    %c2_119 = arith.constant 2 : index
    %c0_120 = arith.constant 0 : index
    %c0_121 = arith.constant 0 : index
    %194 = vector.load %arg4[%c2_119, %c0_120, %c0_121] : memref<9x1x256xf32, #tpu.memory_space<vmem>>, vector<1x1x256xf32>
    %195 = vector.shape_cast %194 : vector<1x1x256xf32> to vector<1x256xf32>
    %c2_122 = arith.constant 2 : index
    %c0_123 = arith.constant 0 : index
    %c0_124 = arith.constant 0 : index
    %196 = vector.load %arg7[%c2_122, %c0_123, %c0_124] : memref<9x4x4xf32, #tpu.memory_space<vmem>>, vector<1x4x4xf32>
    %197 = vector.shape_cast %196 : vector<1x4x4xf32> to vector<4x4xf32>
    %198 = vector.extract_strided_slice %170 {offsets = [0, 241], sizes = [4, 15], strides = [1, 1]} : vector<4x256xf32> to vector<4x15xf32>
    %199 = vector.extract_strided_slice %170 {offsets = [0, 0], sizes = [4, 241], strides = [1, 1]} : vector<4x256xf32> to vector<4x241xf32>
    %200 = tpu.concatenate %198, %199 in 1 : vector<4x15xf32>, vector<4x241xf32> -> vector<4x256xf32>
    %cst_125 = arith.constant dense<0.000000e+00> : vector<4x256xf32>
    %201 = tpu.matmul %197, %200, %cst_125 {dimension_numbers = #tpu.dot_dimension_numbers<[1], [0], [0], [1], [0, 0, 1, 1], [], []>} : vector<4x4xf32>, vector<4x256xf32>, vector<4x256xf32> -> vector<4x256xf32>
    %202 = vector.broadcast %195 : vector<1x256xf32> to vector<4x256xf32>
    %203 = arith.mulf %202, %201 : vector<4x256xf32>
    %204 = arith.addf %193, %203 : vector<4x256xf32>
    %c3_126 = arith.constant 3 : index
    %c0_127 = arith.constant 0 : index
    %c0_128 = arith.constant 0 : index
    %205 = vector.load %arg4[%c3_126, %c0_127, %c0_128] : memref<9x1x256xf32, #tpu.memory_space<vmem>>, vector<1x1x256xf32>
    %206 = vector.shape_cast %205 : vector<1x1x256xf32> to vector<1x256xf32>
    %c3_129 = arith.constant 3 : index
    %c0_130 = arith.constant 0 : index
    %c0_131 = arith.constant 0 : index
    %207 = vector.load %arg7[%c3_129, %c0_130, %c0_131] : memref<9x4x4xf32, #tpu.memory_space<vmem>>, vector<1x4x4xf32>
    %208 = vector.shape_cast %207 : vector<1x4x4xf32> to vector<4x4xf32>
    %209 = vector.extract_strided_slice %170 {offsets = [0, 255], sizes = [4, 1], strides = [1, 1]} : vector<4x256xf32> to vector<4x1xf32>
    %210 = vector.extract_strided_slice %170 {offsets = [0, 0], sizes = [4, 255], strides = [1, 1]} : vector<4x256xf32> to vector<4x255xf32>
    %211 = tpu.concatenate %209, %210 in 1 : vector<4x1xf32>, vector<4x255xf32> -> vector<4x256xf32>
    %cst_132 = arith.constant dense<0.000000e+00> : vector<4x256xf32>
    %212 = tpu.matmul %208, %211, %cst_132 {dimension_numbers = #tpu.dot_dimension_numbers<[1], [0], [0], [1], [0, 0, 1, 1], [], []>} : vector<4x4xf32>, vector<4x256xf32>, vector<4x256xf32> -> vector<4x256xf32>
    %213 = vector.broadcast %206 : vector<1x256xf32> to vector<4x256xf32>
    %214 = arith.mulf %213, %212 : vector<4x256xf32>
    %215 = arith.addf %204, %214 : vector<4x256xf32>
    %c4_133 = arith.constant 4 : index
    %c0_134 = arith.constant 0 : index
    %c0_135 = arith.constant 0 : index
    %216 = vector.load %arg4[%c4_133, %c0_134, %c0_135] : memref<9x1x256xf32, #tpu.memory_space<vmem>>, vector<1x1x256xf32>
    %217 = vector.shape_cast %216 : vector<1x1x256xf32> to vector<1x256xf32>
    %c4_136 = arith.constant 4 : index
    %c0_137 = arith.constant 0 : index
    %c0_138 = arith.constant 0 : index
    %218 = vector.load %arg7[%c4_136, %c0_137, %c0_138] : memref<9x4x4xf32, #tpu.memory_space<vmem>>, vector<1x4x4xf32>
    %219 = vector.shape_cast %218 : vector<1x4x4xf32> to vector<4x4xf32>
    %cst_139 = arith.constant dense<0.000000e+00> : vector<4x256xf32>
    %220 = tpu.matmul %219, %170, %cst_139 {dimension_numbers = #tpu.dot_dimension_numbers<[1], [0], [0], [1], [0, 0, 1, 1], [], []>} : vector<4x4xf32>, vector<4x256xf32>, vector<4x256xf32> -> vector<4x256xf32>
    %221 = vector.broadcast %217 : vector<1x256xf32> to vector<4x256xf32>
    %222 = arith.mulf %221, %220 : vector<4x256xf32>
    %223 = arith.addf %215, %222 : vector<4x256xf32>
    %c5_140 = arith.constant 5 : index
    %c0_141 = arith.constant 0 : index
    %c0_142 = arith.constant 0 : index
    %224 = vector.load %arg4[%c5_140, %c0_141, %c0_142] : memref<9x1x256xf32, #tpu.memory_space<vmem>>, vector<1x1x256xf32>
    %225 = vector.shape_cast %224 : vector<1x1x256xf32> to vector<1x256xf32>
    %c5_143 = arith.constant 5 : index
    %c0_144 = arith.constant 0 : index
    %c0_145 = arith.constant 0 : index
    %226 = vector.load %arg7[%c5_143, %c0_144, %c0_145] : memref<9x4x4xf32, #tpu.memory_space<vmem>>, vector<1x4x4xf32>
    %227 = vector.shape_cast %226 : vector<1x4x4xf32> to vector<4x4xf32>
    %228 = vector.extract_strided_slice %170 {offsets = [0, 1], sizes = [4, 255], strides = [1, 1]} : vector<4x256xf32> to vector<4x255xf32>
    %229 = vector.extract_strided_slice %170 {offsets = [0, 0], sizes = [4, 1], strides = [1, 1]} : vector<4x256xf32> to vector<4x1xf32>
    %230 = tpu.concatenate %228, %229 in 1 : vector<4x255xf32>, vector<4x1xf32> -> vector<4x256xf32>
    %cst_146 = arith.constant dense<0.000000e+00> : vector<4x256xf32>
    %231 = tpu.matmul %227, %230, %cst_146 {dimension_numbers = #tpu.dot_dimension_numbers<[1], [0], [0], [1], [0, 0, 1, 1], [], []>} : vector<4x4xf32>, vector<4x256xf32>, vector<4x256xf32> -> vector<4x256xf32>
    %232 = vector.broadcast %225 : vector<1x256xf32> to vector<4x256xf32>
    %233 = arith.mulf %232, %231 : vector<4x256xf32>
    %234 = arith.addf %223, %233 : vector<4x256xf32>
    %c6_147 = arith.constant 6 : index
    %c0_148 = arith.constant 0 : index
    %c0_149 = arith.constant 0 : index
    %235 = vector.load %arg4[%c6_147, %c0_148, %c0_149] : memref<9x1x256xf32, #tpu.memory_space<vmem>>, vector<1x1x256xf32>
    %236 = vector.shape_cast %235 : vector<1x1x256xf32> to vector<1x256xf32>
    %c6_150 = arith.constant 6 : index
    %c0_151 = arith.constant 0 : index
    %c0_152 = arith.constant 0 : index
    %237 = vector.load %arg7[%c6_150, %c0_151, %c0_152] : memref<9x4x4xf32, #tpu.memory_space<vmem>>, vector<1x4x4xf32>
    %238 = vector.shape_cast %237 : vector<1x4x4xf32> to vector<4x4xf32>
    %239 = vector.extract_strided_slice %170 {offsets = [0, 15], sizes = [4, 241], strides = [1, 1]} : vector<4x256xf32> to vector<4x241xf32>
    %240 = vector.extract_strided_slice %170 {offsets = [0, 0], sizes = [4, 15], strides = [1, 1]} : vector<4x256xf32> to vector<4x15xf32>
    %241 = tpu.concatenate %239, %240 in 1 : vector<4x241xf32>, vector<4x15xf32> -> vector<4x256xf32>
    %cst_153 = arith.constant dense<0.000000e+00> : vector<4x256xf32>
    %242 = tpu.matmul %238, %241, %cst_153 {dimension_numbers = #tpu.dot_dimension_numbers<[1], [0], [0], [1], [0, 0, 1, 1], [], []>} : vector<4x4xf32>, vector<4x256xf32>, vector<4x256xf32> -> vector<4x256xf32>
    %243 = vector.broadcast %236 : vector<1x256xf32> to vector<4x256xf32>
    %244 = arith.mulf %243, %242 : vector<4x256xf32>
    %245 = arith.addf %234, %244 : vector<4x256xf32>
    %c7_154 = arith.constant 7 : index
    %c0_155 = arith.constant 0 : index
    %c0_156 = arith.constant 0 : index
    %246 = vector.load %arg4[%c7_154, %c0_155, %c0_156] : memref<9x1x256xf32, #tpu.memory_space<vmem>>, vector<1x1x256xf32>
    %247 = vector.shape_cast %246 : vector<1x1x256xf32> to vector<1x256xf32>
    %c7_157 = arith.constant 7 : index
    %c0_158 = arith.constant 0 : index
    %c0_159 = arith.constant 0 : index
    %248 = vector.load %arg7[%c7_157, %c0_158, %c0_159] : memref<9x4x4xf32, #tpu.memory_space<vmem>>, vector<1x4x4xf32>
    %249 = vector.shape_cast %248 : vector<1x4x4xf32> to vector<4x4xf32>
    %250 = vector.extract_strided_slice %170 {offsets = [0, 16], sizes = [4, 240], strides = [1, 1]} : vector<4x256xf32> to vector<4x240xf32>
    %251 = vector.extract_strided_slice %170 {offsets = [0, 0], sizes = [4, 16], strides = [1, 1]} : vector<4x256xf32> to vector<4x16xf32>
    %252 = tpu.concatenate %250, %251 in 1 : vector<4x240xf32>, vector<4x16xf32> -> vector<4x256xf32>
    %cst_160 = arith.constant dense<0.000000e+00> : vector<4x256xf32>
    %253 = tpu.matmul %249, %252, %cst_160 {dimension_numbers = #tpu.dot_dimension_numbers<[1], [0], [0], [1], [0, 0, 1, 1], [], []>} : vector<4x4xf32>, vector<4x256xf32>, vector<4x256xf32> -> vector<4x256xf32>
    %254 = vector.broadcast %247 : vector<1x256xf32> to vector<4x256xf32>
    %255 = arith.mulf %254, %253 : vector<4x256xf32>
    %256 = arith.addf %245, %255 : vector<4x256xf32>
    %c8_161 = arith.constant 8 : index
    %c0_162 = arith.constant 0 : index
    %c0_163 = arith.constant 0 : index
    %257 = vector.load %arg4[%c8_161, %c0_162, %c0_163] : memref<9x1x256xf32, #tpu.memory_space<vmem>>, vector<1x1x256xf32>
    %258 = vector.shape_cast %257 : vector<1x1x256xf32> to vector<1x256xf32>
    %c8_164 = arith.constant 8 : index
    %c0_165 = arith.constant 0 : index
    %c0_166 = arith.constant 0 : index
    %259 = vector.load %arg7[%c8_164, %c0_165, %c0_166] : memref<9x4x4xf32, #tpu.memory_space<vmem>>, vector<1x4x4xf32>
    %260 = vector.shape_cast %259 : vector<1x4x4xf32> to vector<4x4xf32>
    %261 = vector.extract_strided_slice %170 {offsets = [0, 17], sizes = [4, 239], strides = [1, 1]} : vector<4x256xf32> to vector<4x239xf32>
    %262 = vector.extract_strided_slice %170 {offsets = [0, 0], sizes = [4, 17], strides = [1, 1]} : vector<4x256xf32> to vector<4x17xf32>
    %263 = tpu.concatenate %261, %262 in 1 : vector<4x239xf32>, vector<4x17xf32> -> vector<4x256xf32>
    %cst_167 = arith.constant dense<0.000000e+00> : vector<4x256xf32>
    %264 = tpu.matmul %260, %263, %cst_167 {dimension_numbers = #tpu.dot_dimension_numbers<[1], [0], [0], [1], [0, 0, 1, 1], [], []>} : vector<4x4xf32>, vector<4x256xf32>, vector<4x256xf32> -> vector<4x256xf32>
    %265 = vector.broadcast %258 : vector<1x256xf32> to vector<4x256xf32>
    %266 = arith.mulf %265, %264 : vector<4x256xf32>
    %267 = arith.addf %256, %266 : vector<4x256xf32>
    %c0_168 = arith.constant 0 : index
    %c0_169 = arith.constant 0 : index
    %268 = vector.load %arg10[%c0_168, %c0_169] : memref<4x1xf32, #tpu.memory_space<vmem>>, vector<4x1xf32>
    %269 = vector.broadcast %268 : vector<4x1xf32> to vector<4x256xf32>
    %270 = arith.mulf %267, %269 : vector<4x256xf32>
    %c0_170 = arith.constant 0 : index
    %c0_171 = arith.constant 0 : index
    %271 = vector.load %arg11[%c0_170, %c0_171] : memref<4x1xf32, #tpu.memory_space<vmem>>, vector<4x1xf32>
    %272 = vector.broadcast %271 : vector<4x1xf32> to vector<4x256xf32>
    %273 = arith.addf %270, %272 : vector<4x256xf32>
    %cst_172 = arith.constant 0.000000e+00 : f32
    %274 = vector.broadcast %cst_172 : f32 to vector<4x256xf32>
    %275 = arith.maximumf %273, %274 : vector<4x256xf32>
    %c0_173 = arith.constant 0 : index
    %c0_174 = arith.constant 0 : index
    %c0_175 = arith.constant 0 : index
    %276 = vector.load %arg12[%c0_173, %c0_174, %c0_175] : memref<1x4x256xf32, #tpu.memory_space<vmem>>, vector<1x4x256xf32>
    %277 = vector.shape_cast %276 : vector<1x4x256xf32> to vector<4x256xf32>
    %278 = vector.shape_cast %275 : vector<4x256xf32> to vector<1x4x256xf32>
    tpu.vector_store %arg12[%c0_173, %c0_174, %c0_175], %278 {strides = array<i32>} : memref<1x4x256xf32, #tpu.memory_space<vmem>>, vector<1x4x256xf32>,
    return
  }
  func.func @transform_0(%arg0: i32) -> (i32, i32, i32) {
    %c0_i32 = arith.constant 0 : i32
    %c0_i32_0 = arith.constant 0 : i32
    %c0_i32_1 = arith.constant 0 : i32
    return %arg0, %c0_i32, %c0_i32_0 : i32, i32, i32
  }
  func.func @transform_1(%arg0: i32) -> (i32, i32, i32) {
    %c0_i32 = arith.constant 0 : i32
    %c0_i32_0 = arith.constant 0 : i32
    %c0_i32_1 = arith.constant 0 : i32
    return %arg0, %c0_i32, %c0_i32_0 : i32, i32, i32
  }
  func.func @transform_2(%arg0: i32) -> (i32, i32) {
    %c0_i32 = arith.constant 0 : i32
    %c0_i32_0 = arith.constant 0 : i32
    %c0_i32_1 = arith.constant 0 : i32
    return %c0_i32, %c0_i32_0 : i32, i32
  }
  func.func @transform_3(%arg0: i32) -> (i32, i32, i32) {
    %c0_i32 = arith.constant 0 : i32
    %c0_i32_0 = arith.constant 0 : i32
    %c0_i32_1 = arith.constant 0 : i32
    %c0_i32_2 = arith.constant 0 : i32
    return %c0_i32, %c0_i32_0, %c0_i32_1 : i32, i32, i32
  }
  func.func @transform_4(%arg0: i32) -> (i32, i32, i32) {
    %c0_i32 = arith.constant 0 : i32
    %c0_i32_0 = arith.constant 0 : i32
    %c0_i32_1 = arith.constant 0 : i32
    %c0_i32_2 = arith.constant 0 : i32
    return %c0_i32, %c0_i32_0, %c0_i32_1 : i32, i32, i32
  }
  func.func @transform_5(%arg0: i32) -> (i32, i32, i32) {
    %c0_i32 = arith.constant 0 : i32
    %c0_i32_0 = arith.constant 0 : i32
    %c0_i32_1 = arith.constant 0 : i32
    %c0_i32_2 = arith.constant 0 : i32
    return %c0_i32, %c0_i32_0, %c0_i32_1 : i32, i32, i32
  }
  func.func @transform_6(%arg0: i32) -> (i32, i32, i32) {
    %c0_i32 = arith.constant 0 : i32
    %c0_i32_0 = arith.constant 0 : i32
    %c0_i32_1 = arith.constant 0 : i32
    %c0_i32_2 = arith.constant 0 : i32
    return %c0_i32, %c0_i32_0, %c0_i32_1 : i32, i32, i32
  }
  func.func @transform_7(%arg0: i32) -> (i32, i32) {
    %c0_i32 = arith.constant 0 : i32
    %c0_i32_0 = arith.constant 0 : i32
    %c0_i32_1 = arith.constant 0 : i32
    return %c0_i32, %c0_i32_0 : i32, i32
  }
  func.func @transform_8(%arg0: i32) -> (i32, i32) {
    %c0_i32 = arith.constant 0 : i32
    %c0_i32_0 = arith.constant 0 : i32
    %c0_i32_1 = arith.constant 0 : i32
    return %c0_i32, %c0_i32_0 : i32, i32
  }
  func.func @transform_9(%arg0: i32) -> (i32, i32) {
    %c0_i32 = arith.constant 0 : i32
    %c0_i32_0 = arith.constant 0 : i32
    %c0_i32_1 = arith.constant 0 : i32
    return %c0_i32, %c0_i32_0 : i32, i32
  }
  func.func @transform_10(%arg0: i32) -> (i32, i32) {
    %c0_i32 = arith.constant 0 : i32
    %c0_i32_0 = arith.constant 0 : i32
    %c0_i32_1 = arith.constant 0 : i32
    return %c0_i32, %c0_i32_0 : i32, i32
  }
  func.func @transform_11(%arg0: i32) -> (i32, i32, i32) {
    %c0_i32 = arith.constant 0 : i32
    %c0_i32_0 = arith.constant 0 : i32
    %c0_i32_1 = arith.constant 0 : i32
    return %arg0, %c0_i32, %c0_i32_0 : i32, i32, i32
  }
}

</mosaic_0001>

<llo_original>
// kernel: tpu_custom_call.1
$region0: #{tpu_custom_call.1}
  #allocation0 [shape = 'u32[]', space=smem, size = 0x4, offset = 0x4, fixed_abs, tag = 'smem constant byte address 0x4 - core index']
  #allocation1 [shape = 'u32[144,128]{1,0:T(1,128)}', space=vmem, size = 0x12000, scoped, tag = 'internal scratch']
  %s0 = inlined_call_operand.hbm [shape: f32[2,4,64], index: 0, kind: input, shape index: {}]
  %s1 = inlined_call_operand.vmem [shape: f32[2,4,256], index: 1, kind: input, shape index: {}]
  %s2 = inlined_call_operand.vmem [shape: f32[64,256], index: 2, kind: input, shape index: {}]
  %s3 = inlined_call_operand.vmem [shape: f32[9,1,256], index: 3, kind: input, shape index: {}]
  %s4 = inlined_call_operand.vmem [shape: f32[9,4,4], index: 4, kind: input, shape index: {}]
  %s5 = inlined_call_operand.vmem [shape: f32[9,4,4], index: 5, kind: input, shape index: {}]
  %s6 = inlined_call_operand.vmem [shape: f32[9,4,4], index: 6, kind: input, shape index: {}]
  %s7 = inlined_call_operand.vmem [shape: f32[4,1], index: 7, kind: input, shape index: {}]
  %s8 = inlined_call_operand.vmem [shape: f32[4,1], index: 8, kind: input, shape index: {}]
  %s9 = inlined_call_operand.vmem [shape: f32[4,1], index: 9, kind: input, shape index: {}]
  %s10 = inlined_call_operand.vmem [shape: f32[4,1], index: 10, kind: input, shape index: {}]
  %s11 = inlined_call_operand.hbm [shape: f32[2,4,256], index: 11, kind: output, shape index: {}]
  %s12 = sld [smem:[#allocation0]]
  $region81: #{tpu_custom_call.1} parent=0
    _
  %s14 = ssub.s32 1, %s12
  %s15 = scalar_select 0, %s14, %s12
  $region1: #{tpu_custom_call.1} parent=0
    #allocation2 [shape = 'u8[4096]{0}', space=vmem, size = 0x1000, scoped, tag = 'input window, operand 0']
    #allocation3 [shape = 's32[2]{0}', space=sflag, size = 0x8, scoped, tag = 'scoped memory for tpu_custom_call.1']
    #allocation4 [shape = 's32[2]{0}', space=sflag, size = 0x8, scoped, tag = 'scoped memory for tpu_custom_call.1']
    #allocation5 [shape = 'u8[8192]{0}', space=vmem, size = 0x2000, scoped, tag = 'output window, operand 0']
    %16 = vsyncpa [#allocation3], 0
    %s17 = scalar_lea.sflag [#allocation3], 1
    %18 = vsyncpa %s17, 0
    %19 = vsyncpa [#allocation4], 0
    %s20 = scalar_lea.sflag [#allocation4], 1
    %21 = vsyncpa %s20, 0
    loop: start=0, step=1, limit=4
    $region2: #{tpu_custom_call.1} parent=1 // loop_pre_header
      _
    $region3: #{tpu_custom_call.1} parent=1 // loop_header
      %s23 = sphi 0, %s27
      %p24 = scmp.ge.s32.totalorder %s23, 4
      %s33 = sphi 0, %s35
      %s36 = sphi 0, %s33
      %s37 = sphi 0, %s36
      %s53 = sphi 0, %s37
      %s59 = sphi 0, %s61
      %s62 = sphi 0, %s59
      %s63 = sphi 0, %s62
      %s79 = sphi 0, %s63
      %s83 = sphi 0, %s83
      %s85 = sphi 0, %s83
      %s86 = sphi 0, %s85
      %s100 = sphi 0, %s86
      %s104 = sphi 0, %s104
      %s106 = sphi 0, %s104
      %s107 = sphi 0, %s106
      %s121 = sphi 0, %s107
      %s125 = sphi 0, %s125
      %s127 = sphi 0, %s125
      %s128 = sphi 0, %s127
      %s142 = sphi 0, %s128
      %s146 = sphi 0, %s146
      %s148 = sphi 0, %s146
      %s149 = sphi 0, %s148
      %s163 = sphi 0, %s149
      %s167 = sphi 0, %s167
      %s169 = sphi 0, %s167
      %s170 = sphi 0, %s169
      %s184 = sphi 0, %s170
      %s188 = sphi 0, %s188
      %s190 = sphi 0, %s188
      %s191 = sphi 0, %s190
      %s205 = sphi 0, %s191
      %s209 = sphi 0, %s209
      %s211 = sphi 0, %s209
      %s212 = sphi 0, %s211
      %s226 = sphi 0, %s212
      %s230 = sphi 0, %s230
      %s232 = sphi 0, %s230
      %s233 = sphi 0, %s232
      %s247 = sphi 0, %s233
      %s251 = sphi 0, %s251
      %s253 = sphi 0, %s251
      %s254 = sphi 0, %s253
      %s268 = sphi 0, %s254
      %s274 = sphi 0, %s276
      %s277 = sphi 0, %s274
      %s278 = sphi 0, %s277
      %s294 = sphi 0, %s278
    $region4: #{tpu_custom_call.1} parent=1 // loop_header_branch
      %26 = sbr.rel (%p24) target = $region8
    $region5: #{tpu_custom_call.1} parent=1 // loop_body
      %s28 = ssub.s32 %s23, 1
      %s29 = ssub.s32 %s23, 2
      %s30 = sadd.s32 %s23, 1
      %s31 = ssub.s32 %s23, %s30
      %p32 = scmp.eq.s32.totalorder %s31, 0
      %s34 = sadd.s32 %s33, 1
      %s35 = scalar_select %p32, %s33, %s34
      %p38 = pneg %p32
      %p39 = scmp.eq.s32.totalorder %s23, 1
      %p40 = por %p38, %p39
      %p41 = scmp.ne.s32.totalorder %s33, %s36
      %p42 = scmp.eq.s32.totalorder %s23, 0
      %p43 = por %p41, %p42
      %p44 = scmp.ne.s32.totalorder %s33, %s36
      %p45 = scmp.eq.s32.totalorder %s28, 1
      %p46 = por %p44, %p45
      %p47 = scmp.ne.s32.totalorder %s36, %s37
      %p48 = scmp.eq.s32.totalorder %s28, 0
      %p49 = por %p47, %p48
      %p50 = scmp.ne.s32.totalorder %s36, %s37
      %p51 = scmp.eq.s32.totalorder %s29, 1
      %p52 = por %p50, %p51
      %p54 = scmp.ne.s32.totalorder %s37, %s53
      %p55 = scmp.eq.s32.totalorder %s29, 0
      %p56 = por %p54, %p55
      %s57 = ssub.s32 %s23, %s30
      %p58 = scmp.eq.s32.totalorder %s57, 0
      %s60 = sadd.s32 %s59, 1
      %s61 = scalar_select %p58, %s59, %s60
      %p64 = pneg %p58
      %p65 = scmp.eq.s32.totalorder %s23, 1
      %p66 = por %p64, %p65
      %p67 = scmp.ne.s32.totalorder %s59, %s62
      %p68 = scmp.eq.s32.totalorder %s23, 0
      %p69 = por %p67, %p68
      %p70 = scmp.ne.s32.totalorder %s59, %s62
      %p71 = scmp.eq.s32.totalorder %s28, 1
      %p72 = por %p70, %p71
      %p73 = scmp.ne.s32.totalorder %s62, %s63
      %p74 = scmp.eq.s32.totalorder %s28, 0
      %p75 = por %p73, %p74
      %p76 = scmp.ne.s32.totalorder %s62, %s63
      %p77 = scmp.eq.s32.totalorder %s29, 1
      %p78 = por %p76, %p77
      %p80 = scmp.ne.s32.totalorder %s63, %s79
      %p81 = scmp.eq.s32.totalorder %s29, 0
      %p82 = por %p80, %p81
      %s84 = sadd.s32 %s83, 1
      %p87 = scmp.eq.s32.totalorder %s23, 1
      %p88 = scmp.ne.s32.totalorder %s83, %s85
      %p89 = scmp.eq.s32.totalorder %s23, 0
      %p90 = por %p88, %p89
      %p91 = scmp.ne.s32.totalorder %s83, %s85
      %p92 = scmp.eq.s32.totalorder %s28, 1
      %p93 = por %p91, %p92
      %p94 = scmp.ne.s32.totalorder %s85, %s86
      %p95 = scmp.eq.s32.totalorder %s28, 0
      %p96 = por %p94, %p95
      %p97 = scmp.ne.s32.totalorder %s85, %s86
      %p98 = scmp.eq.s32.totalorder %s29, 1
      %p99 = por %p97, %p98
      %p101 = scmp.ne.s32.totalorder %s86, %s100
      %p102 = scmp.eq.s32.totalorder %s29, 0
      %p103 = por %p101, %p102
      %s105 = sadd.s32 %s104, 1
      %p108 = scmp.eq.s32.totalorder %s23, 1
      %p109 = scmp.ne.s32.totalorder %s104, %s106
      %p110 = scmp.eq.s32.totalorder %s23, 0
      %p111 = por %p109, %p110
      %p112 = scmp.ne.s32.totalorder %s104, %s106
      %p113 = scmp.eq.s32.totalorder %s28, 1
      %p114 = por %p112, %p113
      %p115 = scmp.ne.s32.totalorder %s106, %s107
      %p116 = scmp.eq.s32.totalorder %s28, 0
      %p117 = por %p115, %p116
      %p118 = scmp.ne.s32.totalorder %s106, %s107
      %p119 = scmp.eq.s32.totalorder %s29, 1
      %p120 = por %p118, %p119
      %p122 = scmp.ne.s32.totalorder %s107, %s121
      %p123 = scmp.eq.s32.totalorder %s29, 0
      %p124 = por %p122, %p123
      %s126 = sadd.s32 %s125, 1
      %p129 = scmp.eq.s32.totalorder %s23, 1
      %p130 = scmp.ne.s32.totalorder %s125, %s127
      %p131 = scmp.eq.s32.totalorder %s23, 0
      %p132 = por %p130, %p131
      %p133 = scmp.ne.s32.totalorder %s125, %s127
      %p134 = scmp.eq.s32.totalorder %s28, 1
      %p135 = por %p133, %p134
      %p136 = scmp.ne.s32.totalorder %s127, %s128
      %p137 = scmp.eq.s32.totalorder %s28, 0
      %p138 = por %p136, %p137
      %p139 = scmp.ne.s32.totalorder %s127, %s128
      %p140 = scmp.eq.s32.totalorder %s29, 1
      %p141 = por %p139, %p140
      %p143 = scmp.ne.s32.totalorder %s128, %s142
      %p144 = scmp.eq.s32.totalorder %s29, 0
      %p145 = por %p143, %p144
      %s147 = sadd.s32 %s146, 1
      %p150 = scmp.eq.s32.totalorder %s23, 1
      %p151 = scmp.ne.s32.totalorder %s146, %s148
      %p152 = scmp.eq.s32.totalorder %s23, 0
      %p153 = por %p151, %p152
      %p154 = scmp.ne.s32.totalorder %s146, %s148
      %p155 = scmp.eq.s32.totalorder %s28, 1
      %p156 = por %p154, %p155
      %p157 = scmp.ne.s32.totalorder %s148, %s149
      %p158 = scmp.eq.s32.totalorder %s28, 0
      %p159 = por %p157, %p158
      %p160 = scmp.ne.s32.totalorder %s148, %s149
      %p161 = scmp.eq.s32.totalorder %s29, 1
      %p162 = por %p160, %p161
      %p164 = scmp.ne.s32.totalorder %s149, %s163
      %p165 = scmp.eq.s32.totalorder %s29, 0
      %p166 = por %p164, %p165
      %s168 = sadd.s32 %s167, 1
      %p171 = scmp.eq.s32.totalorder %s23, 1
      %p172 = scmp.ne.s32.totalorder %s167, %s169
      %p173 = scmp.eq.s32.totalorder %s23, 0
      %p174 = por %p172, %p173
      %p175 = scmp.ne.s32.totalorder %s167, %s169
      %p176 = scmp.eq.s32.totalorder %s28, 1
      %p177 = por %p175, %p176
      %p178 = scmp.ne.s32.totalorder %s169, %s170
      %p179 = scmp.eq.s32.totalorder %s28, 0
      %p180 = por %p178, %p179
      %p181 = scmp.ne.s32.totalorder %s169, %s170
      %p182 = scmp.eq.s32.totalorder %s29, 1
      %p183 = por %p181, %p182
      %p185 = scmp.ne.s32.totalorder %s170, %s184
      %p186 = scmp.eq.s32.totalorder %s29, 0
      %p187 = por %p185, %p186
      %s189 = sadd.s32 %s188, 1
      %p192 = scmp.eq.s32.totalorder %s23, 1
      %p193 = scmp.ne.s32.totalorder %s188, %s190
      %p194 = scmp.eq.s32.totalorder %s23, 0
      %p195 = por %p193, %p194
      %p196 = scmp.ne.s32.totalorder %s188, %s190
      %p197 = scmp.eq.s32.totalorder %s28, 1
      %p198 = por %p196, %p197
      %p199 = scmp.ne.s32.totalorder %s190, %s191
      %p200 = scmp.eq.s32.totalorder %s28, 0
      %p201 = por %p199, %p200
      %p202 = scmp.ne.s32.totalorder %s190, %s191
      %p203 = scmp.eq.s32.totalorder %s29, 1
      %p204 = por %p202, %p203
      %p206 = scmp.ne.s32.totalorder %s191, %s205
      %p207 = scmp.eq.s32.totalorder %s29, 0
      %p208 = por %p206, %p207
      %s210 = sadd.s32 %s209, 1
      %p213 = scmp.eq.s32.totalorder %s23, 1
      %p214 = scmp.ne.s32.totalorder %s209, %s211
      %p215 = scmp.eq.s32.totalorder %s23, 0
      %p216 = por %p214, %p215
      %p217 = scmp.ne.s32.totalorder %s209, %s211
      %p218 = scmp.eq.s32.totalorder %s28, 1
      %p219 = por %p217, %p218
      %p220 = scmp.ne.s32.totalorder %s211, %s212
      %p221 = scmp.eq.s32.totalorder %s28, 0
      %p222 = por %p220, %p221
      %p223 = scmp.ne.s32.totalorder %s211, %s212
      %p224 = scmp.eq.s32.totalorder %s29, 1
      %p225 = por %p223, %p224
      %p227 = scmp.ne.s32.totalorder %s212, %s226
      %p228 = scmp.eq.s32.totalorder %s29, 0
      %p229 = por %p227, %p228
      %s231 = sadd.s32 %s230, 1
      %p234 = scmp.eq.s32.totalorder %s23, 1
      %p235 = scmp.ne.s32.totalorder %s230, %s232
      %p236 = scmp.eq.s32.totalorder %s23, 0
      %p237 = por %p235, %p236
      %p238 = scmp.ne.s32.totalorder %s230, %s232
      %p239 = scmp.eq.s32.totalorder %s28, 1
      %p240 = por %p238, %p239
      %p241 = scmp.ne.s32.totalorder %s232, %s233
      %p242 = scmp.eq.s32.totalorder %s28, 0
      %p243 = por %p241, %p242
      %p244 = scmp.ne.s32.totalorder %s232, %s233
      %p245 = scmp.eq.s32.totalorder %s29, 1
      %p246 = por %p244, %p245
      %p248 = scmp.ne.s32.totalorder %s233, %s247
      %p249 = scmp.eq.s32.totalorder %s29, 0
      %p250 = por %p248, %p249
      %s252 = sadd.s32 %s251, 1
      %p255 = scmp.eq.s32.totalorder %s23, 1
      %p256 = scmp.ne.s32.totalorder %s251, %s253
      %p257 = scmp.eq.s32.totalorder %s23, 0
      %p258 = por %p256, %p257
      %p259 = scmp.ne.s32.totalorder %s251, %s253
      %p260 = scmp.eq.s32.totalorder %s28, 1
      %p261 = por %p259, %p260
      %p262 = scmp.ne.s32.totalorder %s253, %s254
      %p263 = scmp.eq.s32.totalorder %s28, 0
      %p264 = por %p262, %p263
      %p265 = scmp.ne.s32.totalorder %s253, %s254
      %p266 = scmp.eq.s32.totalorder %s29, 1
      %p267 = por %p265, %p266
      %p269 = scmp.ne.s32.totalorder %s254, %s268
      %p270 = scmp.eq.s32.totalorder %s29, 0
      %p271 = por %p269, %p270
      %s272 = ssub.s32 %s23, %s30
      %p273 = scmp.eq.s32.totalorder %s272, 0
      %s275 = sadd.s32 %s274, 1
      %s276 = scalar_select %p273, %s274, %s275
      %p279 = pneg %p273
      %p280 = scmp.eq.s32.totalorder %s23, 1
      %p281 = por %p279, %p280
      %p282 = scmp.ne.s32.totalorder %s274, %s277
      %p283 = scmp.eq.s32.totalorder %s23, 0
      %p284 = por %p282, %p283
      %p285 = scmp.ne.s32.totalorder %s274, %s277
      %p286 = scmp.eq.s32.totalorder %s28, 1
      %p287 = por %p285, %p286
      %p288 = scmp.ne.s32.totalorder %s277, %s278
      %p289 = scmp.eq.s32.totalorder %s28, 0
      %p290 = por %p288, %p289
      %p291 = scmp.ne.s32.totalorder %s277, %s278
      %p292 = scmp.eq.s32.totalorder %s29, 1
      %p293 = por %p291, %p292
      %p295 = scmp.ne.s32.totalorder %s278, %s294
      %p296 = scmp.eq.s32.totalorder %s29, 0
      %p297 = por %p295, %p296
      %p298 = scmp.le.s32.totalorder 1, %s23
      %p299 = scmp.lt.s32.totalorder %s23, 3
      %p300 = pnand %p298, %p299
      %p301 = pneg %p300
      // Predicated region
      $region9: #{tpu_custom_call.1} parent=5 // pred_check
        _
      $region10: #{tpu_custom_call.1} parent=5 // pred_check_branch
        %303 = sbr.rel (%p300) target = $region12
      $region11: #{tpu_custom_call.1} parent=5 // pred_region
        %s304 = ssub.s32 %s23, 1
        // Predicated region
        $region13: #{tpu_custom_call.1} parent=11 // pred_check
          %p305 = pneg %p96
        $region14: #{tpu_custom_call.1} parent=11 // pred_check_branch
          %307 = sbr.rel (%p305) target = $region16
        $region15: #{tpu_custom_call.1} parent=11 // pred_region
          _
        $region16: #{tpu_custom_call.1} parent=11 // pred_fallthru
          _
        // Predicated region
        $region17: #{tpu_custom_call.1} parent=11 // pred_check
          %p308 = pneg %p117
        $region18: #{tpu_custom_call.1} parent=11 // pred_check_branch
          %310 = sbr.rel (%p308) target = $region20
        $region19: #{tpu_custom_call.1} parent=11 // pred_region
          _
        $region20: #{tpu_custom_call.1} parent=11 // pred_fallthru
          _
        // Predicated region
        $region21: #{tpu_custom_call.1} parent=11 // pred_check
          %p311 = pneg %p138
        $region22: #{tpu_custom_call.1} parent=11 // pred_check_branch
          %313 = sbr.rel (%p311) target = $region24
        $region23: #{tpu_custom_call.1} parent=11 // pred_region
          _
        $region24: #{tpu_custom_call.1} parent=11 // pred_fallthru
          _
        // Predicated region
        $region25: #{tpu_custom_call.1} parent=11 // pred_check
          %p314 = pneg %p159
        $region26: #{tpu_custom_call.1} parent=11 // pred_check_branch
          %316 = sbr.rel (%p314) target = $region28
        $region27: #{tpu_custom_call.1} parent=11 // pred_region
          _
        $region28: #{tpu_custom_call.1} parent=11 // pred_fallthru
          _
        // Predicated region
        $region29: #{tpu_custom_call.1} parent=11 // pred_check
          %p317 = pneg %p180
        $region30: #{tpu_custom_call.1} parent=11 // pred_check_branch
          %319 = sbr.rel (%p317) target = $region32
        $region31: #{tpu_custom_call.1} parent=11 // pred_region
          _
        $region32: #{tpu_custom_call.1} parent=11 // pred_fallthru
          _
        // Predicated region
        $region33: #{tpu_custom_call.1} parent=11 // pred_check
          %p320 = pneg %p201
        $region34: #{tpu_custom_call.1} parent=11 // pred_check_branch
          %322 = sbr.rel (%p320) target = $region36
        $region35: #{tpu_custom_call.1} parent=11 // pred_region
          _
        $region36: #{tpu_custom_call.1} parent=11 // pred_fallthru
          _
        // Predicated region
        $region37: #{tpu_custom_call.1} parent=11 // pred_check
          %p323 = pneg %p222
        $region38: #{tpu_custom_call.1} parent=11 // pred_check_branch
          %325 = sbr.rel (%p323) target = $region40
        $region39: #{tpu_custom_call.1} parent=11 // pred_region
          _
        $region40: #{tpu_custom_call.1} parent=11 // pred_fallthru
          _
        // Predicated region
        $region41: #{tpu_custom_call.1} parent=11 // pred_check
          %p326 = pneg %p243
        $region42: #{tpu_custom_call.1} parent=11 // pred_check_branch
          %328 = sbr.rel (%p326) target = $region44
        $region43: #{tpu_custom_call.1} parent=11 // pred_region
          _
        $region44: #{tpu_custom_call.1} parent=11 // pred_fallthru
          _
        // Predicated region
        $region45: #{tpu_custom_call.1} parent=11 // pred_check
          %p329 = pneg %p264
        $region46: #{tpu_custom_call.1} parent=11 // pred_check_branch
          %331 = sbr.rel (%p329) target = $region48
        $region47: #{tpu_custom_call.1} parent=11 // pred_region
          _
        $region48: #{tpu_custom_call.1} parent=11 // pred_fallthru
          _
      $region12: #{tpu_custom_call.1} parent=5 // pred_fallthru
        _
      %p332 = scmp.lt.s32.totalorder %s23, 2
      // Predicated region
      $region49: #{tpu_custom_call.1} parent=5 // pred_check
        %p333 = pneg %p332
      $region50: #{tpu_custom_call.1} parent=5 // pred_check_branch
        %335 = sbr.rel (%p333) target = $region52
      $region51: #{tpu_custom_call.1} parent=5 // pred_region
        // Predicated region
        $region53: #{tpu_custom_call.1} parent=51 // pred_check
          %p336 = pneg %p43
        $region54: #{tpu_custom_call.1} parent=51 // pred_check_branch
          %338 = sbr.rel (%p336) target = $region56
        $region55: #{tpu_custom_call.1} parent=51 // pred_region
          %s339 = sand.u32 %s33, 1
          %s340 = scalar_lea.sflag [#allocation3], %s339
          %s341 = sand.u32 %s33, 1
          %s342 = smul.addr %s341, 4
          %s343 = scalar_lea.vmem [#allocation2], %s342
          %s345 = ssub.s32 64, 64
          %346 = vsyncadd %s340, %s345
          %s347 = smul.addr %s23, 64
          %s348 = scalar_lea.hbm %s0, %s347
          %s350 = sshll.u32 %s343, 4
          %s351 = int_to_ptr.vmem [resolvable:$true] %s350
          %353 = dma.hbm_to_vmem [thread:$0]  %s348, 64, %s351, %s340
        $region56: #{tpu_custom_call.1} parent=51 // pred_fallthru
          _
        // Predicated region
        $region57: #{tpu_custom_call.1} parent=51 // pred_check
          %p354 = pneg %p69
        $region58: #{tpu_custom_call.1} parent=51 // pred_check_branch
          %356 = sbr.rel (%p354) target = $region60
        $region59: #{tpu_custom_call.1} parent=51 // pred_region
          %p357 = scmp.lt.s32.totalorder %s23, 1
          %s358 = scalar_select %p357, %s23, 1
          %s359 = smul.addr %s358, 2
          %s360 = smul.addr %s359, 4
          %s361 = scalar_lea.vmem %s1, %s360
        $region60: #{tpu_custom_call.1} parent=51 // pred_fallthru
          _
      $region52: #{tpu_custom_call.1} parent=5 // pred_fallthru
        _
      %p362 = scmp.le.s32.totalorder 1, %s23
      %p363 = scmp.lt.s32.totalorder %s23, 3
      %p364 = pnand %p362, %p363
      %p365 = pneg %p364
      // Predicated region
      $region61: #{tpu_custom_call.1} parent=5 // pred_check
        _
      $region62: #{tpu_custom_call.1} parent=5 // pred_check_branch
        %367 = sbr.rel (%p364) target = $region64
      $region63: #{tpu_custom_call.1} parent=5 // pred_region
        %s368 = ssub.s32 %s23, 1
        %s369 = sand.u32 %s36, 1
        %s370 = scalar_lea.sflag [#allocation3], %s369
        %s371 = sand.u32 %s36, 1
        %s372 = smul.addr %s371, 4
        %s373 = scalar_lea.vmem [#allocation2], %s372
        // Predicated region
        $region65: #{tpu_custom_call.1} parent=63 // pred_check
          %p374 = pneg %p49
        $region66: #{tpu_custom_call.1} parent=63 // pred_check_branch
          %376 = sbr.rel (%p374) target = $region68
        $region67: #{tpu_custom_call.1} parent=63 // pred_region
          %377 = dma.done %s370, 64
        $region68: #{tpu_custom_call.1} parent=63 // pred_fallthru
          _
        %s378 = sand.u32 %s36, 1
        %s379 = scalar_lea.sflag [#allocation3], %s378
        %s380 = sand.u32 %s36, 1
        %s381 = smul.addr %s380, 4
        %s382 = scalar_lea.vmem [#allocation2], %s381
        %p383 = pneg %p49
        %p384 = pneg %p46
        %p385 = scmp.lt.s32.totalorder %s28, 1
        %s386 = scalar_select %p385, %s28, 1
        %s387 = smul.addr %s386, 2
        %s388 = smul.addr %s387, 4
        %s389 = scalar_lea.vmem %s1, %s388
        %p390 = pneg %p75
        %p391 = pneg %p72
        %p392 = pneg %p96
        %p393 = pneg %p93
        %p394 = pneg %p117
        %p395 = pneg %p114
        %p396 = pneg %p138
        %p397 = pneg %p135
        %p398 = pneg %p159
        %p399 = pneg %p156
        %p400 = pneg %p180
        %p401 = pneg %p177
        %p402 = pneg %p201
        %p403 = pneg %p198
        %p404 = pneg %p222
        %p405 = pneg %p219
        %p406 = pneg %p243
        %p407 = pneg %p240
        %p408 = pneg %p264
        %p409 = pneg %p261
        %p410 = pneg %p290
        %p411 = pneg %p287
        %s412 = sand.u32 %s277, 1
        %s413 = scalar_lea.sflag [#allocation4], %s412
        %s414 = sand.u32 %s277, 1
        %s415 = smul.addr %s414, 8
        %s416 = scalar_lea.vmem [#allocation5], %s415
        %p417 = scmp.lt.s32.totalorder %s28, 1
        %s418 = scalar_select %p417, %s28, 1
        %s419 = smul.addr %s418, 2
        %s420 = smul.addr %s419, 4
        %s421 = scalar_lea.vmem %s1, %s420
        %v422 = vld [vmem:[%s373] sm:$0xf]
        %v423 = vld [vmem:[%s421] sm:$0xff]
        %v424 = vld [vmem:[%s2] sm:$0xff]
        %v425 = vld [vmem:[%s2 + $0x8] sm:$0xff]
        %v426 = vld [vmem:[%s2 + $0x10] sm:$0xff]
        %v427 = vld [vmem:[%s2 + $0x18] sm:$0xff]
        %v428 = vld [vmem:[%s2 + $0x20] sm:$0xff]
        %v429 = vld [vmem:[%s2 + $0x28] sm:$0xff]
        %v430 = vld [vmem:[%s2 + $0x30] sm:$0xff]
        %v431 = vld [vmem:[%s2 + $0x38] sm:$0xff]
        %v432 = vld [vmem:[%s2 + $0x40] sm:$0xff]
        %v433 = vld [vmem:[%s2 + $0x48] sm:$0xff]
        %v434 = vld [vmem:[%s2 + $0x50] sm:$0xff]
        %v435 = vld [vmem:[%s2 + $0x58] sm:$0xff]
        %v436 = vld [vmem:[%s2 + $0x60] sm:$0xff]
        %v437 = vld [vmem:[%s2 + $0x68] sm:$0xff]
        %v438 = vld [vmem:[%s2 + $0x70] sm:$0xff]
        %v439 = vld [vmem:[%s2 + $0x78] sm:$0xff]
        %vm440 = vcmask 523264
        %v442 = vsel %vm440, %v422, 0
        %444 = vmatprep.subr.mxu0 0.0
        %445 = vmatpush1.msra.mxu0 0.0
        %446 = vmatprep.subr.mxu0 0.0
        %447 = vmatpush1.msra.mxu0 0.0
        %448 = vmatprep.subr.mxu0 0.0
        %449 = vmatpush1.msra.mxu0 0.0
        %450 = vmatprep.subr.mxu0 0.0
        %451 = vmatpush1.msra.mxu0 0.0
        %452 = vmatprep.subr.mxu0 0.0
        %453 = vmatpush1.msra.mxu0 0.0
        %454 = vmatprep.subr.mxu0 0.0
        %455 = vmatpush1.msra.mxu0 0.0
        %456 = vmatprep.subr.mxu0 0.0
        %457 = vmatpush1.msra.mxu0 0.0
        %458 = vmatprep.subr.mxu0 0.0
        %459 = vmatpush1.msra.mxu0 0.0
        %460 = vmatprep.subr.mxu0 %v439
        %461 = vmatpush1.msra.mxu0 %v438
        %462 = vmatprep.subr.mxu0 %v437
        %463 = vmatpush1.msra.mxu0 %v436
        %464 = vmatprep.subr.mxu0 %v435
        %465 = vmatpush1.msra.mxu0 %v434
        %466 = vmatprep.subr.mxu0 %v433
        %467 = vmatpush1.msra.mxu0 %v432
        %468 = vmatprep.subr.mxu0 %v431
        %469 = vmatpush1.msra.mxu0 %v430
        %470 = vmatprep.subr.mxu0 %v429
        %471 = vmatpush1.msra.mxu0 %v428
        %472 = vmatprep.subr.mxu0 %v427
        %473 = vmatpush1.msra.mxu0 %v426
        %474 = vmatprep.subr.mxu0 %v425
        %475 = vmatpush1.msra.mxu0 %v424
        %476 = vmatprep.subr.mxu0 0.0
        %477 = vmatpush2.msra.mxu0 0.0
        %478 = vmatprep.subr.mxu0 0.0
        %479 = vmatpush2.msra.mxu0 0.0
        %480 = vmatprep.subr.mxu0 0.0
        %481 = vmatpush2.msra.mxu0 0.0
        %482 = vmatprep.subr.mxu0 0.0
        %483 = vmatpush2.msra.mxu0 0.0
        %484 = vmatprep.subr.mxu0 0.0
        %485 = vmatpush2.msra.mxu0 0.0
        %486 = vmatprep.subr.mxu0 0.0
        %487 = vmatpush2.msra.mxu0 0.0
        %488 = vmatprep.subr.mxu0 0.0
        %489 = vmatpush2.msra.mxu0 0.0
        %490 = vmatprep.subr.mxu0 0.0
        %491 = vmatpush2.msra.mxu0 0.0
        %492 = vmatprep.subr.mxu0 0.0
        %493 = vmatpush2.msra.mxu0 0.0
        %494 = vmatprep.subr.mxu0 0.0
        %495 = vmatpush2.msra.mxu0 0.0
        %496 = vmatprep.subr.mxu0 0.0
        %497 = vmatpush2.msra.mxu0 0.0
        %498 = vmatprep.subr.mxu0 0.0
        %499 = vmatpush2.msra.mxu0 0.0
        %500 = vmatprep.subr.mxu0 0.0
        %501 = vmatpush2.msra.mxu0 0.0
        %502 = vmatprep.subr.mxu0 0.0
        %503 = vmatpush2.msra.mxu0 0.0
        %504 = vmatprep.subr.mxu0 0.0
        %505 = vmatpush2.msra.mxu0 0.0
        %506 = vmatprep.subr.mxu0 0.0
        %507 = vmatpush2.msra.mxu0 0.0
        %508 = vmatprep.mubr.f32.mxu0 0.0
        %509 = vmatmul.mubr.f32.gmra.mxu0 %v442
        %v510 = vpop.f32.mrf.mxu0
        %v511 = vadd.f32 0.0, %v510
        %v512 = vpop.f32.mrf.mxu0
        %v513 = vadd.f32 0.0, %v512
        %514 = vdwg.mxu0
        %v515 = vld [vmem:[%s4] sm:$0xf]
        %v517 = vcombine.high %v423, %v423
        %518 = vrot.lane.b32.xlu0 %v517, 17
        %v519 = vpop.permute.xlu0 %518
        %521 = vrot.lane.b32.xlu0 %v423, 17
        %v522 = vpop.permute.xlu0 %521
        %vm523 = vcmask 138240
        %v524 = vsel %vm523, %v522, %v519
        %v526 = vsel %vm523, %v519, %v522
        %v527 = vld [vmem:[%s5] sm:$0xf]
        %529 = vrot.lane.b32.xlu0 %v513, 17
        %v530 = vpop.permute.xlu0 %529
        %533 = vrot.lane.b32.xlu0 %v511, 17
        %v534 = vpop.permute.xlu0 %533
        %v535 = vsel %vm523, %v534, %v530
        %v537 = vsel %vm523, %v530, %v534
        %vm538 = vcmask 31744
        %v540 = vsel %vm538, %v527, 0
        %vm542 = vcmask 1043456
        %v544 = vsel %vm542, %v537, 0
        %v546 = vsel %vm542, %v535, 0
        %548 = vmatprep.subr.mxu0 0.0
        %549 = vmatpush1.msra.mxu0 0.0
        %550 = vmatprep.subr.mxu0 0.0
        %551 = vmatpush1.msra.mxu0 0.0
        %552 = vmatprep.subr.mxu0 0.0
        %553 = vmatpush1.msra.mxu0 0.0
        %554 = vmatprep.subr.mxu0 0.0
        %555 = vmatpush1.msra.mxu0 0.0
        %556 = vmatprep.subr.mxu0 0.0
        %557 = vmatpush1.msra.mxu0 0.0
        %558 = vmatprep.subr.mxu0 0.0
        %559 = vmatpush1.msra.mxu0 0.0
        %560 = vmatprep.subr.mxu0 0.0
        %561 = vmatpush1.msra.mxu0 0.0
        %562 = vmatprep.subr.mxu0 0.0
        %563 = vmatpush1.msra.mxu0 0.0
        %564 = vmatprep.subr.mxu0 0.0
        %565 = vmatpush1.msra.mxu0 0.0
        %566 = vmatprep.subr.mxu0 0.0
        %567 = vmatpush1.msra.mxu0 0.0
        %568 = vmatprep.subr.mxu0 0.0
        %569 = vmatpush1.msra.mxu0 0.0
        %570 = vmatprep.subr.mxu0 0.0
        %571 = vmatpush1.msra.mxu0 0.0
        %572 = vmatprep.subr.mxu0 0.0
        %573 = vmatpush1.msra.mxu0 0.0
        %574 = vmatprep.subr.mxu0 0.0
        %575 = vmatpush1.msra.mxu0 0.0
        %576 = vmatprep.subr.mxu0 0.0
        %577 = vmatpush1.msra.mxu0 0.0
        %578 = vmatprep.subr.mxu0 %v546
        %579 = vmatpush1.msra.mxu0 %v544
        %580 = vmatprep.subr.mxu0 0.0
        %581 = vmatpush2.msra.mxu0 0.0
        %582 = vmatprep.subr.mxu0 0.0
        %583 = vmatpush2.msra.mxu0 0.0
        %584 = vmatprep.subr.mxu0 0.0
        %585 = vmatpush2.msra.mxu0 0.0
        %586 = vmatprep.subr.mxu0 0.0
        %587 = vmatpush2.msra.mxu0 0.0
        %588 = vmatprep.subr.mxu0 0.0
        %589 = vmatpush2.msra.mxu0 0.0
        %590 = vmatprep.subr.mxu0 0.0
        %591 = vmatpush2.msra.mxu0 0.0
        %592 = vmatprep.subr.mxu0 0.0
        %593 = vmatpush2.msra.mxu0 0.0
        %594 = vmatprep.subr.mxu0 0.0
        %595 = vmatpush2.msra.mxu0 0.0
        %596 = vmatprep.subr.mxu0 0.0
        %597 = vmatpush2.msra.mxu0 0.0
        %598 = vmatprep.subr.mxu0 0.0
        %599 = vmatpush2.msra.mxu0 0.0
        %600 = vmatprep.subr.mxu0 0.0
        %601 = vmatpush2.msra.mxu0 0.0
        %602 = vmatprep.subr.mxu0 0.0
        %603 = vmatpush2.msra.mxu0 0.0
        %604 = vmatprep.subr.mxu0 0.0
        %605 = vmatpush2.msra.mxu0 0.0
        %606 = vmatprep.subr.mxu0 0.0
        %607 = vmatpush2.msra.mxu0 0.0
        %608 = vmatprep.subr.mxu0 0.0
        %609 = vmatpush2.msra.mxu0 0.0
        %610 = vmatprep.subr.mxu0 0.0
        %611 = vmatpush2.msra.mxu0 0.0
        %612 = vmatprep.mubr.f32.mxu0 0.0
        %613 = vmatmul.mubr.f32.gmra.mxu0 %v540
        %v614 = vpop.f32.mrf.mxu0
        %v615 = vadd.f32 0.0, %v614
        %v616 = vpop.f32.mrf.mxu0
        %v617 = vadd.f32 0.0, %v616
        %618 = vdwg.mxu0
        %v620 = vsel %vm538, %v515, 0
        %v623 = vsel %vm542, %v526, 0
        %v625 = vsel %vm542, %v524, 0
        %627 = vmatprep.subr.mxu0 0.0
        %628 = vmatpush1.msra.mxu0 0.0
        %629 = vmatprep.subr.mxu0 0.0
        %630 = vmatpush1.msra.mxu0 0.0
        %631 = vmatprep.subr.mxu0 0.0
        %632 = vmatpush1.msra.mxu0 0.0
        %633 = vmatprep.subr.mxu0 0.0
        %634 = vmatpush1.msra.mxu0 0.0
        %635 = vmatprep.subr.mxu0 0.0
        %636 = vmatpush1.msra.mxu0 0.0
        %637 = vmatprep.subr.mxu0 0.0
        %638 = vmatpush1.msra.mxu0 0.0
        %639 = vmatprep.subr.mxu0 0.0
        %640 = vmatpush1.msra.mxu0 0.0
        %641 = vmatprep.subr.mxu0 0.0
        %642 = vmatpush1.msra.mxu0 0.0
        %643 = vmatprep.subr.mxu0 0.0
        %644 = vmatpush1.msra.mxu0 0.0
        %645 = vmatprep.subr.mxu0 0.0
        %646 = vmatpush1.msra.mxu0 0.0
        %647 = vmatprep.subr.mxu0 0.0
        %648 = vmatpush1.msra.mxu0 0.0
        %649 = vmatprep.subr.mxu0 0.0
        %650 = vmatpush1.msra.mxu0 0.0
        %651 = vmatprep.subr.mxu0 0.0
        %652 = vmatpush1.msra.mxu0 0.0
        %653 = vmatprep.subr.mxu0 0.0
        %654 = vmatpush1.msra.mxu0 0.0
        %655 = vmatprep.subr.mxu0 0.0
        %656 = vmatpush1.msra.mxu0 0.0
        %657 = vmatprep.subr.mxu0 %v625
        %658 = vmatpush1.msra.mxu0 %v623
        %659 = vmatprep.subr.mxu0 0.0
        %660 = vmatpush2.msra.mxu0 0.0
        %661 = vmatprep.subr.mxu0 0.0
        %662 = vmatpush2.msra.mxu0 0.0
        %663 = vmatprep.subr.mxu0 0.0
        %664 = vmatpush2.msra.mxu0 0.0
        %665 = vmatprep.subr.mxu0 0.0
        %666 = vmatpush2.msra.mxu0 0.0
        %667 = vmatprep.subr.mxu0 0.0
        %668 = vmatpush2.msra.mxu0 0.0
        %669 = vmatprep.subr.mxu0 0.0
        %670 = vmatpush2.msra.mxu0 0.0
        %671 = vmatprep.subr.mxu0 0.0
        %672 = vmatpush2.msra.mxu0 0.0
        %673 = vmatprep.subr.mxu0 0.0
        %674 = vmatpush2.msra.mxu0 0.0
        %675 = vmatprep.subr.mxu0 0.0
        %676 = vmatpush2.msra.mxu0 0.0
        %677 = vmatprep.subr.mxu0 0.0
        %678 = vmatpush2.msra.mxu0 0.0
        %679 = vmatprep.subr.mxu0 0.0
        %680 = vmatpush2.msra.mxu0 0.0
        %681 = vmatprep.subr.mxu0 0.0
        %682 = vmatpush2.msra.mxu0 0.0
        %683 = vmatprep.subr.mxu0 0.0
        %684 = vmatpush2.msra.mxu0 0.0
        %685 = vmatprep.subr.mxu0 0.0
        %686 = vmatpush2.msra.mxu0 0.0
        %687 = vmatprep.subr.mxu0 0.0
        %688 = vmatpush2.msra.mxu0 0.0
        %689 = vmatprep.subr.mxu0 0.0
        %690 = vmatpush2.msra.mxu0 0.0
        %691 = vmatprep.mubr.f32.mxu0 0.0
        %692 = vmatmul.mubr.f32.gmra.mxu0 %v620
        %v693 = vpop.f32.mrf.mxu0
        %v694 = vadd.f32 %v615, %v693
        %v695 = vpop.f32.mrf.mxu0
        %v696 = vadd.f32 %v617, %v695
        %697 = vdwg.mxu0
        %v698 = vld [vmem:[%s3] sm:$0x3]
        %v700 = vlaneseq
        %v701 = vshrl.u32 %v700, 7
        %v702 = vsub.s32 0, %v701
        %v703 = vrot.slane %v698, %v702
        %v704 = vlaneseq
        %v705 = vshrl.u32 %v704, 7
        %v706 = vsub.s32 1, %v705
        %v707 = vrot.slane %v698, %v706
        %v710 = vmul.f32 %v703, %v694
        %v711 = vmul.f32 %v707, %v696
        %v712 = vadd.f32 %v710, 0.0
        %v713 = vadd.f32 %v711, 0.0
        %s714 = scalar_lea.vmem %s4, 4
        %v715 = vld [vmem:[%s714] sm:$0xf]
        %716 = vrot.lane.b32.xlu0 %v517, 16
        %v717 = vpop.permute.xlu0 %716
        %719 = vrot.lane.b32.xlu0 %v423, 16
        %v720 = vpop.permute.xlu0 %719
        %vm721 = vcmask 130048
        %v722 = vsel %vm721, %v720, %v717
        %v724 = vsel %vm721, %v717, %v720
        %s725 = scalar_lea.vmem %s5, 4
        %v726 = vld [vmem:[%s725] sm:$0xf]
        %727 = vrot.lane.b32.xlu0 %v513, 16
        %v728 = vpop.permute.xlu0 %727
        %730 = vrot.lane.b32.xlu0 %v511, 16
        %v731 = vpop.permute.xlu0 %730
        %v732 = vsel %vm721, %v731, %v728
        %v734 = vsel %vm721, %v728, %v731
        %v736 = vsel %vm538, %v726, 0
        %v739 = vsel %vm542, %v734, 0
        %v741 = vsel %vm542, %v732, 0
        %743 = vmatprep.subr.mxu0 0.0
        %744 = vmatpush1.msra.mxu0 0.0
        %745 = vmatprep.subr.mxu0 0.0
        %746 = vmatpush1.msra.mxu0 0.0
        %747 = vmatprep.subr.mxu0 0.0
        %748 = vmatpush1.msra.mxu0 0.0
        %749 = vmatprep.subr.mxu0 0.0
        %750 = vmatpush1.msra.mxu0 0.0
        %751 = vmatprep.subr.mxu0 0.0
        %752 = vmatpush1.msra.mxu0 0.0
        %753 = vmatprep.subr.mxu0 0.0
        %754 = vmatpush1.msra.mxu0 0.0
        %755 = vmatprep.subr.mxu0 0.0
        %756 = vmatpush1.msra.mxu0 0.0
        %757 = vmatprep.subr.mxu0 0.0
        %758 = vmatpush1.msra.mxu0 0.0
        %759 = vmatprep.subr.mxu0 0.0
        %760 = vmatpush1.msra.mxu0 0.0
        %761 = vmatprep.subr.mxu0 0.0
        %762 = vmatpush1.msra.mxu0 0.0
        %763 = vmatprep.subr.mxu0 0.0
        %764 = vmatpush1.msra.mxu0 0.0
        %765 = vmatprep.subr.mxu0 0.0
        %766 = vmatpush1.msra.mxu0 0.0
        %767 = vmatprep.subr.mxu0 0.0
        %768 = vmatpush1.msra.mxu0 0.0
        %769 = vmatprep.subr.mxu0 0.0
        %770 = vmatpush1.msra.mxu0 0.0
        %771 = vmatprep.subr.mxu0 0.0
        %772 = vmatpush1.msra.mxu0 0.0
        %773 = vmatprep.subr.mxu0 %v741
        %774 = vmatpush1.msra.mxu0 %v739
        %775 = vmatprep.subr.mxu0 0.0
        %776 = vmatpush2.msra.mxu0 0.0
        %777 = vmatprep.subr.mxu0 0.0
        %778 = vmatpush2.msra.mxu0 0.0
        %779 = vmatprep.subr.mxu0 0.0
        %780 = vmatpush2.msra.mxu0 0.0
        %781 = vmatprep.subr.mxu0 0.0
        %782 = vmatpush2.msra.mxu0 0.0
        %783 = vmatprep.subr.mxu0 0.0
        %784 = vmatpush2.msra.mxu0 0.0
        %785 = vmatprep.subr.mxu0 0.0
        %786 = vmatpush2.msra.mxu0 0.0
        %787 = vmatprep.subr.mxu0 0.0
        %788 = vmatpush2.msra.mxu0 0.0
        %789 = vmatprep.subr.mxu0 0.0
        %790 = vmatpush2.msra.mxu0 0.0
        %791 = vmatprep.subr.mxu0 0.0
        %792 = vmatpush2.msra.mxu0 0.0
        %793 = vmatprep.subr.mxu0 0.0
        %794 = vmatpush2.msra.mxu0 0.0
        %795 = vmatprep.subr.mxu0 0.0
        %796 = vmatpush2.msra.mxu0 0.0
        %797 = vmatprep.subr.mxu0 0.0
        %798 = vmatpush2.msra.mxu0 0.0
        %799 = vmatprep.subr.mxu0 0.0
        %800 = vmatpush2.msra.mxu0 0.0
        %801 = vmatprep.subr.mxu0 0.0
        %802 = vmatpush2.msra.mxu0 0.0
        %803 = vmatprep.subr.mxu0 0.0
        %804 = vmatpush2.msra.mxu0 0.0
        %805 = vmatprep.subr.mxu0 0.0
        %806 = vmatpush2.msra.mxu0 0.0
        %807 = vmatprep.mubr.f32.mxu0 0.0
        %808 = vmatmul.mubr.f32.gmra.mxu0 %v736
        %v809 = vpop.f32.mrf.mxu0
        %v810 = vadd.f32 0.0, %v809
        %v811 = vpop.f32.mrf.mxu0
        %v812 = vadd.f32 0.0, %v811
        %813 = vdwg.mxu0
        %v815 = vsel %vm538, %v715, 0
        %v818 = vsel %vm542, %v724, 0
        %v820 = vsel %vm542, %v722, 0
        %822 = vmatprep.subr.mxu0 0.0
        %823 = vmatpush1.msra.mxu0 0.0
        %824 = vmatprep.subr.mxu0 0.0
        %825 = vmatpush1.msra.mxu0 0.0
        %826 = vmatprep.subr.mxu0 0.0
        %827 = vmatpush1.msra.mxu0 0.0
        %828 = vmatprep.subr.mxu0 0.0
        %829 = vmatpush1.msra.mxu0 0.0
        %830 = vmatprep.subr.mxu0 0.0
        %831 = vmatpush1.msra.mxu0 0.0
        %832 = vmatprep.subr.mxu0 0.0
        %833 = vmatpush1.msra.mxu0 0.0
        %834 = vmatprep.subr.mxu0 0.0
        %835 = vmatpush1.msra.mxu0 0.0
        %836 = vmatprep.subr.mxu0 0.0
        %837 = vmatpush1.msra.mxu0 0.0
        %838 = vmatprep.subr.mxu0 0.0
        %839 = vmatpush1.msra.mxu0 0.0
        %840 = vmatprep.subr.mxu0 0.0
        %841 = vmatpush1.msra.mxu0 0.0
        %842 = vmatprep.subr.mxu0 0.0
        %843 = vmatpush1.msra.mxu0 0.0
        %844 = vmatprep.subr.mxu0 0.0
        %845 = vmatpush1.msra.mxu0 0.0
        %846 = vmatprep.subr.mxu0 0.0
        %847 = vmatpush1.msra.mxu0 0.0
        %848 = vmatprep.subr.mxu0 0.0
        %849 = vmatpush1.msra.mxu0 0.0
        %850 = vmatprep.subr.mxu0 0.0
        %851 = vmatpush1.msra.mxu0 0.0
        %852 = vmatprep.subr.mxu0 %v820
        %853 = vmatpush1.msra.mxu0 %v818
        %854 = vmatprep.subr.mxu0 0.0
        %855 = vmatpush2.msra.mxu0 0.0
        %856 = vmatprep.subr.mxu0 0.0
        %857 = vmatpush2.msra.mxu0 0.0
        %858 = vmatprep.subr.mxu0 0.0
        %859 = vmatpush2.msra.mxu0 0.0
        %860 = vmatprep.subr.mxu0 0.0
        %861 = vmatpush2.msra.mxu0 0.0
        %862 = vmatprep.subr.mxu0 0.0
        %863 = vmatpush2.msra.mxu0 0.0
        %864 = vmatprep.subr.mxu0 0.0
        %865 = vmatpush2.msra.mxu0 0.0
        %866 = vmatprep.subr.mxu0 0.0
        %867 = vmatpush2.msra.mxu0 0.0
        %868 = vmatprep.subr.mxu0 0.0
        %869 = vmatpush2.msra.mxu0 0.0
        %870 = vmatprep.subr.mxu0 0.0
        %871 = vmatpush2.msra.mxu0 0.0
        %872 = vmatprep.subr.mxu0 0.0
        %873 = vmatpush2.msra.mxu0 0.0
        %874 = vmatprep.subr.mxu0 0.0
        %875 = vmatpush2.msra.mxu0 0.0
        %876 = vmatprep.subr.mxu0 0.0
        %877 = vmatpush2.msra.mxu0 0.0
        %878 = vmatprep.subr.mxu0 0.0
        %879 = vmatpush2.msra.mxu0 0.0
        %880 = vmatprep.subr.mxu0 0.0
        %881 = vmatpush2.msra.mxu0 0.0
        %882 = vmatprep.subr.mxu0 0.0
        %883 = vmatpush2.msra.mxu0 0.0
        %884 = vmatprep.subr.mxu0 0.0
        %885 = vmatpush2.msra.mxu0 0.0
        %886 = vmatprep.mubr.f32.mxu0 0.0
        %887 = vmatmul.mubr.f32.gmra.mxu0 %v815
        %v888 = vpop.f32.mrf.mxu0
        %v889 = vadd.f32 %v810, %v888
        %v890 = vpop.f32.mrf.mxu0
        %v891 = vadd.f32 %v812, %v890
        %892 = vdwg.mxu0
        %s893 = scalar_lea.vmem %s3, 2
        %v894 = vld [vmem:[%s893] sm:$0x3]
        %v896 = vlaneseq
        %v897 = vshrl.u32 %v896, 7
        %v898 = vsub.s32 0, %v897
        %v899 = vrot.slane %v894, %v898
        %v900 = vlaneseq
        %v901 = vshrl.u32 %v900, 7
        %v902 = vsub.s32 1, %v901
        %v903 = vrot.slane %v894, %v902
        %v906 = vmul.f32 %v899, %v889
        %v907 = vmul.f32 %v903, %v891
        %v908 = vadd.f32 %v712, %v906
        %v909 = vadd.f32 %v713, %v907
        %s910 = scalar_lea.vmem %s4, 8
        %v911 = vld [vmem:[%s910] sm:$0xf]
        %912 = vrot.lane.b32.xlu0 %v517, 15
        %v913 = vpop.permute.xlu0 %912
        %915 = vrot.lane.b32.xlu0 %v423, 15
        %v916 = vpop.permute.xlu0 %915
        %vm917 = vcmask 121856
        %v918 = vsel %vm917, %v916, %v913
        %v920 = vsel %vm917, %v913, %v916
        %s921 = scalar_lea.vmem %s5, 8
        %v922 = vld [vmem:[%s921] sm:$0xf]
        %923 = vrot.lane.b32.xlu0 %v513, 15
        %v924 = vpop.permute.xlu0 %923
        %926 = vrot.lane.b32.xlu0 %v511, 15
        %v927 = vpop.permute.xlu0 %926
        %v928 = vsel %vm917, %v927, %v924
        %v930 = vsel %vm917, %v924, %v927
        %v932 = vsel %vm538, %v922, 0
        %v935 = vsel %vm542, %v930, 0
        %v937 = vsel %vm542, %v928, 0
        %939 = vmatprep.subr.mxu0 0.0
        %940 = vmatpush1.msra.mxu0 0.0
        %941 = vmatprep.subr.mxu0 0.0
        %942 = vmatpush1.msra.mxu0 0.0
        %943 = vmatprep.subr.mxu0 0.0
        %944 = vmatpush1.msra.mxu0 0.0
        %945 = vmatprep.subr.mxu0 0.0
        %946 = vmatpush1.msra.mxu0 0.0
        %947 = vmatprep.subr.mxu0 0.0
        %948 = vmatpush1.msra.mxu0 0.0
        %949 = vmatprep.subr.mxu0 0.0
        %950 = vmatpush1.msra.mxu0 0.0
        %951 = vmatprep.subr.mxu0 0.0
        %952 = vmatpush1.msra.mxu0 0.0
        %953 = vmatprep.subr.mxu0 0.0
        %954 = vmatpush1.msra.mxu0 0.0
        %955 = vmatprep.subr.mxu0 0.0
        %956 = vmatpush1.msra.mxu0 0.0
        %957 = vmatprep.subr.mxu0 0.0
        %958 = vmatpush1.msra.mxu0 0.0
        %959 = vmatprep.subr.mxu0 0.0
        %960 = vmatpush1.msra.mxu0 0.0
        %961 = vmatprep.subr.mxu0 0.0
        %962 = vmatpush1.msra.mxu0 0.0
        %963 = vmatprep.subr.mxu0 0.0
        %964 = vmatpush1.msra.mxu0 0.0
        %965 = vmatprep.subr.mxu0 0.0
        %966 = vmatpush1.msra.mxu0 0.0
        %967 = vmatprep.subr.mxu0 0.0
        %968 = vmatpush1.msra.mxu0 0.0
        %969 = vmatprep.subr.mxu0 %v937
        %970 = vmatpush1.msra.mxu0 %v935
        %971 = vmatprep.subr.mxu0 0.0
        %972 = vmatpush2.msra.mxu0 0.0
        %973 = vmatprep.subr.mxu0 0.0
        %974 = vmatpush2.msra.mxu0 0.0
        %975 = vmatprep.subr.mxu0 0.0
        %976 = vmatpush2.msra.mxu0 0.0
        %977 = vmatprep.subr.mxu0 0.0
        %978 = vmatpush2.msra.mxu0 0.0
        %979 = vmatprep.subr.mxu0 0.0
        %980 = vmatpush2.msra.mxu0 0.0
        %981 = vmatprep.subr.mxu0 0.0
        %982 = vmatpush2.msra.mxu0 0.0
        %983 = vmatprep.subr.mxu0 0.0
        %984 = vmatpush2.msra.mxu0 0.0
        %985 = vmatprep.subr.mxu0 0.0
        %986 = vmatpush2.msra.mxu0 0.0
        %987 = vmatprep.subr.mxu0 0.0
        %988 = vmatpush2.msra.mxu0 0.0
        %989 = vmatprep.subr.mxu0 0.0
        %990 = vmatpush2.msra.mxu0 0.0
        %991 = vmatprep.subr.mxu0 0.0
        %992 = vmatpush2.msra.mxu0 0.0
        %993 = vmatprep.subr.mxu0 0.0
        %994 = vmatpush2.msra.mxu0 0.0
        %995 = vmatprep.subr.mxu0 0.0
        %996 = vmatpush2.msra.mxu0 0.0
        %997 = vmatprep.subr.mxu0 0.0
        %998 = vmatpush2.msra.mxu0 0.0
        %999 = vmatprep.subr.mxu0 0.0
        %1000 = vmatpush2.msra.mxu0 0.0
        %1001 = vmatprep.subr.mxu0 0.0
        %1002 = vmatpush2.msra.mxu0 0.0
        %1003 = vmatprep.mubr.f32.mxu0 0.0
        %1004 = vmatmul.mubr.f32.gmra.mxu0 %v932
        %v1005 = vpop.f32.mrf.mxu0
        %v1006 = vadd.f32 0.0, %v1005
        %v1007 = vpop.f32.mrf.mxu0
        %v1008 = vadd.f32 0.0, %v1007
        %1009 = vdwg.mxu0
        %v1011 = vsel %vm538, %v911, 0
        %v1014 = vsel %vm542, %v920, 0
        %v1016 = vsel %vm542, %v918, 0
        %1018 = vmatprep.subr.mxu0 0.0
        %1019 = vmatpush1.msra.mxu0 0.0
        %1020 = vmatprep.subr.mxu0 0.0
        %1021 = vmatpush1.msra.mxu0 0.0
        %1022 = vmatprep.subr.mxu0 0.0
        %1023 = vmatpush1.msra.mxu0 0.0
        %1024 = vmatprep.subr.mxu0 0.0
        %1025 = vmatpush1.msra.mxu0 0.0
        %1026 = vmatprep.subr.mxu0 0.0
        %1027 = vmatpush1.msra.mxu0 0.0
        %1028 = vmatprep.subr.mxu0 0.0
        %1029 = vmatpush1.msra.mxu0 0.0
        %1030 = vmatprep.subr.mxu0 0.0
        %1031 = vmatpush1.msra.mxu0 0.0
        %1032 = vmatprep.subr.mxu0 0.0
        %1033 = vmatpush1.msra.mxu0 0.0
        %1034 = vmatprep.subr.mxu0 0.0
        %1035 = vmatpush1.msra.mxu0 0.0
        %1036 = vmatprep.subr.mxu0 0.0
        %1037 = vmatpush1.msra.mxu0 0.0
        %1038 = vmatprep.subr.mxu0 0.0
        %1039 = vmatpush1.msra.mxu0 0.0
        %1040 = vmatprep.subr.mxu0 0.0
        %1041 = vmatpush1.msra.mxu0 0.0
        %1042 = vmatprep.subr.mxu0 0.0
        %1043 = vmatpush1.msra.mxu0 0.0
        %1044 = vmatprep.subr.mxu0 0.0
        %1045 = vmatpush1.msra.mxu0 0.0
        %1046 = vmatprep.subr.mxu0 0.0
        %1047 = vmatpush1.msra.mxu0 0.0
        %1048 = vmatprep.subr.mxu0 %v1016
        %1049 = vmatpush1.msra.mxu0 %v1014
        %1050 = vmatprep.subr.mxu0 0.0
        %1051 = vmatpush2.msra.mxu0 0.0
        %1052 = vmatprep.subr.mxu0 0.0
        %1053 = vmatpush2.msra.mxu0 0.0
        %1054 = vmatprep.subr.mxu0 0.0
        %1055 = vmatpush2.msra.mxu0 0.0
        %1056 = vmatprep.subr.mxu0 0.0
        %1057 = vmatpush2.msra.mxu0 0.0
        %1058 = vmatprep.subr.mxu0 0.0
        %1059 = vmatpush2.msra.mxu0 0.0
        %1060 = vmatprep.subr.mxu0 0.0
        %1061 = vmatpush2.msra.mxu0 0.0
        %1062 = vmatprep.subr.mxu0 0.0
        %1063 = vmatpush2.msra.mxu0 0.0
        %1064 = vmatprep.subr.mxu0 0.0
        %1065 = vmatpush2.msra.mxu0 0.0
        %1066 = vmatprep.subr.mxu0 0.0
        %1067 = vmatpush2.msra.mxu0 0.0
        %1068 = vmatprep.subr.mxu0 0.0
        %1069 = vmatpush2.msra.mxu0 0.0
        %1070 = vmatprep.subr.mxu0 0.0
        %1071 = vmatpush2.msra.mxu0 0.0
        %1072 = vmatprep.subr.mxu0 0.0
        %1073 = vmatpush2.msra.mxu0 0.0
        %1074 = vmatprep.subr.mxu0 0.0
        %1075 = vmatpush2.msra.mxu0 0.0
        %1076 = vmatprep.subr.mxu0 0.0
        %1077 = vmatpush2.msra.mxu0 0.0
        %1078 = vmatprep.subr.mxu0 0.0
        %1079 = vmatpush2.msra.mxu0 0.0
        %1080 = vmatprep.subr.mxu0 0.0
        %1081 = vmatpush2.msra.mxu0 0.0
        %1082 = vmatprep.mubr.f32.mxu0 0.0
        %1083 = vmatmul.mubr.f32.gmra.mxu0 %v1011
        %v1084 = vpop.f32.mrf.mxu0
        %v1085 = vadd.f32 %v1006, %v1084
        %v1086 = vpop.f32.mrf.mxu0
        %v1087 = vadd.f32 %v1008, %v1086
        %1088 = vdwg.mxu0
        %s1089 = scalar_lea.vmem %s3, 4
        %v1090 = vld [vmem:[%s1089] sm:$0x3]
        %v1092 = vlaneseq
        %v1093 = vshrl.u32 %v1092, 7
        %v1094 = vsub.s32 0, %v1093
        %v1095 = vrot.slane %v1090, %v1094
        %v1096 = vlaneseq
        %v1097 = vshrl.u32 %v1096, 7
        %v1098 = vsub.s32 1, %v1097
        %v1099 = vrot.slane %v1090, %v1098
        %v1102 = vmul.f32 %v1095, %v1085
        %v1103 = vmul.f32 %v1099, %v1087
        %v1104 = vadd.f32 %v908, %v1102
        %v1105 = vadd.f32 %v909, %v1103
        %s1106 = scalar_lea.vmem %s4, 12
        %v1107 = vld [vmem:[%s1106] sm:$0xf]
        %1108 = vrot.lane.b32.xlu0 %v517, 1
        %v1109 = vpop.permute.xlu0 %1108
        %1111 = vrot.lane.b32.xlu0 %v423, 1
        %v1112 = vpop.permute.xlu0 %1111
        %vm1113 = vcmask 7168
        %v1114 = vsel %vm1113, %v1112, %v1109
        %v1116 = vsel %vm1113, %v1109, %v1112
        %s1117 = scalar_lea.vmem %s5, 12
        %v1118 = vld [vmem:[%s1117] sm:$0xf]
        %1119 = vrot.lane.b32.xlu0 %v513, 1
        %v1120 = vpop.permute.xlu0 %1119
        %1122 = vrot.lane.b32.xlu0 %v511, 1
        %v1123 = vpop.permute.xlu0 %1122
        %v1124 = vsel %vm1113, %v1123, %v1120
        %v1126 = vsel %vm1113, %v1120, %v1123
        %v1128 = vsel %vm538, %v1118, 0
        %v1131 = vsel %vm542, %v1126, 0
        %v1133 = vsel %vm542, %v1124, 0
        %1135 = vmatprep.subr.mxu0 0.0
        %1136 = vmatpush1.msra.mxu0 0.0
        %1137 = vmatprep.subr.mxu0 0.0
        %1138 = vmatpush1.msra.mxu0 0.0
        %1139 = vmatprep.subr.mxu0 0.0
        %1140 = vmatpush1.msra.mxu0 0.0
        %1141 = vmatprep.subr.mxu0 0.0
        %1142 = vmatpush1.msra.mxu0 0.0
        %1143 = vmatprep.subr.mxu0 0.0
        %1144 = vmatpush1.msra.mxu0 0.0
        %1145 = vmatprep.subr.mxu0 0.0
        %1146 = vmatpush1.msra.mxu0 0.0
        %1147 = vmatprep.subr.mxu0 0.0
        %1148 = vmatpush1.msra.mxu0 0.0
        %1149 = vmatprep.subr.mxu0 0.0
        %1150 = vmatpush1.msra.mxu0 0.0
        %1151 = vmatprep.subr.mxu0 0.0
        %1152 = vmatpush1.msra.mxu0 0.0
        %1153 = vmatprep.subr.mxu0 0.0
        %1154 = vmatpush1.msra.mxu0 0.0
        %1155 = vmatprep.subr.mxu0 0.0
        %1156 = vmatpush1.msra.mxu0 0.0
        %1157 = vmatprep.subr.mxu0 0.0
        %1158 = vmatpush1.msra.mxu0 0.0
        %1159 = vmatprep.subr.mxu0 0.0
        %1160 = vmatpush1.msra.mxu0 0.0
        %1161 = vmatprep.subr.mxu0 0.0
        %1162 = vmatpush1.msra.mxu0 0.0
        %1163 = vmatprep.subr.mxu0 0.0
        %1164 = vmatpush1.msra.mxu0 0.0
        %1165 = vmatprep.subr.mxu0 %v1133
        %1166 = vmatpush1.msra.mxu0 %v1131
        %1167 = vmatprep.subr.mxu0 0.0
        %1168 = vmatpush2.msra.mxu0 0.0
        %1169 = vmatprep.subr.mxu0 0.0
        %1170 = vmatpush2.msra.mxu0 0.0
        %1171 = vmatprep.subr.mxu0 0.0
        %1172 = vmatpush2.msra.mxu0 0.0
        %1173 = vmatprep.subr.mxu0 0.0
        %1174 = vmatpush2.msra.mxu0 0.0
        %1175 = vmatprep.subr.mxu0 0.0
        %1176 = vmatpush2.msra.mxu0 0.0
        %1177 = vmatprep.subr.mxu0 0.0
        %1178 = vmatpush2.msra.mxu0 0.0
        %1179 = vmatprep.subr.mxu0 0.0
        %1180 = vmatpush2.msra.mxu0 0.0
        %1181 = vmatprep.subr.mxu0 0.0
        %1182 = vmatpush2.msra.mxu0 0.0
        %1183 = vmatprep.subr.mxu0 0.0
        %1184 = vmatpush2.msra.mxu0 0.0
        %1185 = vmatprep.subr.mxu0 0.0
        %1186 = vmatpush2.msra.mxu0 0.0
        %1187 = vmatprep.subr.mxu0 0.0
        %1188 = vmatpush2.msra.mxu0 0.0
        %1189 = vmatprep.subr.mxu0 0.0
        %1190 = vmatpush2.msra.mxu0 0.0
        %1191 = vmatprep.subr.mxu0 0.0
        %1192 = vmatpush2.msra.mxu0 0.0
        %1193 = vmatprep.subr.mxu0 0.0
        %1194 = vmatpush2.msra.mxu0 0.0
        %1195 = vmatprep.subr.mxu0 0.0
        %1196 = vmatpush2.msra.mxu0 0.0
        %1197 = vmatprep.subr.mxu0 0.0
        %1198 = vmatpush2.msra.mxu0 0.0
        %1199 = vmatprep.mubr.f32.mxu0 0.0
        %1200 = vmatmul.mubr.f32.gmra.mxu0 %v1128
        %v1201 = vpop.f32.mrf.mxu0
        %v1202 = vadd.f32 0.0, %v1201
        %v1203 = vpop.f32.mrf.mxu0
        %v1204 = vadd.f32 0.0, %v1203
        %1205 = vdwg.mxu0
        %v1207 = vsel %vm538, %v1107, 0
        %v1210 = vsel %vm542, %v1116, 0
        %v1212 = vsel %vm542, %v1114, 0
        %1214 = vmatprep.subr.mxu0 0.0
        %1215 = vmatpush1.msra.mxu0 0.0
        %1216 = vmatprep.subr.mxu0 0.0
        %1217 = vmatpush1.msra.mxu0 0.0
        %1218 = vmatprep.subr.mxu0 0.0
        %1219 = vmatpush1.msra.mxu0 0.0
        %1220 = vmatprep.subr.mxu0 0.0
        %1221 = vmatpush1.msra.mxu0 0.0
        %1222 = vmatprep.subr.mxu0 0.0
        %1223 = vmatpush1.msra.mxu0 0.0
        %1224 = vmatprep.subr.mxu0 0.0
        %1225 = vmatpush1.msra.mxu0 0.0
        %1226 = vmatprep.subr.mxu0 0.0
        %1227 = vmatpush1.msra.mxu0 0.0
        %1228 = vmatprep.subr.mxu0 0.0
        %1229 = vmatpush1.msra.mxu0 0.0
        %1230 = vmatprep.subr.mxu0 0.0
        %1231 = vmatpush1.msra.mxu0 0.0
        %1232 = vmatprep.subr.mxu0 0.0
        %1233 = vmatpush1.msra.mxu0 0.0
        %1234 = vmatprep.subr.mxu0 0.0
        %1235 = vmatpush1.msra.mxu0 0.0
        %1236 = vmatprep.subr.mxu0 0.0
        %1237 = vmatpush1.msra.mxu0 0.0
        %1238 = vmatprep.subr.mxu0 0.0
        %1239 = vmatpush1.msra.mxu0 0.0
        %1240 = vmatprep.subr.mxu0 0.0
        %1241 = vmatpush1.msra.mxu0 0.0
        %1242 = vmatprep.subr.mxu0 0.0
        %1243 = vmatpush1.msra.mxu0 0.0
        %1244 = vmatprep.subr.mxu0 %v1212
        %1245 = vmatpush1.msra.mxu0 %v1210
        %1246 = vmatprep.subr.mxu0 0.0
        %1247 = vmatpush2.msra.mxu0 0.0
        %1248 = vmatprep.subr.mxu0 0.0
        %1249 = vmatpush2.msra.mxu0 0.0
        %1250 = vmatprep.subr.mxu0 0.0
        %1251 = vmatpush2.msra.mxu0 0.0
        %1252 = vmatprep.subr.mxu0 0.0
        %1253 = vmatpush2.msra.mxu0 0.0
        %1254 = vmatprep.subr.mxu0 0.0
        %1255 = vmatpush2.msra.mxu0 0.0
        %1256 = vmatprep.subr.mxu0 0.0
        %1257 = vmatpush2.msra.mxu0 0.0
        %1258 = vmatprep.subr.mxu0 0.0
        %1259 = vmatpush2.msra.mxu0 0.0
        %1260 = vmatprep.subr.mxu0 0.0
        %1261 = vmatpush2.msra.mxu0 0.0
        %1262 = vmatprep.subr.mxu0 0.0
        %1263 = vmatpush2.msra.mxu0 0.0
        %1264 = vmatprep.subr.mxu0 0.0
        %1265 = vmatpush2.msra.mxu0 0.0
        %1266 = vmatprep.subr.mxu0 0.0
        %1267 = vmatpush2.msra.mxu0 0.0
        %1268 = vmatprep.subr.mxu0 0.0
        %1269 = vmatpush2.msra.mxu0 0.0
        %1270 = vmatprep.subr.mxu0 0.0
        %1271 = vmatpush2.msra.mxu0 0.0
        %1272 = vmatprep.subr.mxu0 0.0
        %1273 = vmatpush2.msra.mxu0 0.0
        %1274 = vmatprep.subr.mxu0 0.0
        %1275 = vmatpush2.msra.mxu0 0.0
        %1276 = vmatprep.subr.mxu0 0.0
        %1277 = vmatpush2.msra.mxu0 0.0
        %1278 = vmatprep.mubr.f32.mxu0 0.0
        %1279 = vmatmul.mubr.f32.gmra.mxu0 %v1207
        %v1280 = vpop.f32.mrf.mxu0
        %v1281 = vadd.f32 %v1202, %v1280
        %v1282 = vpop.f32.mrf.mxu0
        %v1283 = vadd.f32 %v1204, %v1282
        %1284 = vdwg.mxu0
        %s1285 = scalar_lea.vmem %s3, 6
        %v1286 = vld [vmem:[%s1285] sm:$0x3]
        %v1288 = vlaneseq
        %v1289 = vshrl.u32 %v1288, 7
        %v1290 = vsub.s32 0, %v1289
        %v1291 = vrot.slane %v1286, %v1290
        %v1292 = vlaneseq
        %v1293 = vshrl.u32 %v1292, 7
        %v1294 = vsub.s32 1, %v1293
        %v1295 = vrot.slane %v1286, %v1294
        %v1298 = vmul.f32 %v1291, %v1281
        %v1299 = vmul.f32 %v1295, %v1283
        %v1300 = vadd.f32 %v1104, %v1298
        %v1301 = vadd.f32 %v1105, %v1299
        %s1302 = scalar_lea.vmem %s4, 16
        %v1303 = vld [vmem:[%s1302] sm:$0xf]
        %s1304 = scalar_lea.vmem %s5, 16
        %v1305 = vld [vmem:[%s1304] sm:$0xf]
        %v1307 = vsel %vm538, %v1305, 0
        %v1309 = vsel %vm542, %v511, 0
        %v1311 = vsel %vm542, %v513, 0
        %1313 = vmatprep.subr.mxu0 0.0
        %1314 = vmatpush1.msra.mxu0 0.0
        %1315 = vmatprep.subr.mxu0 0.0
        %1316 = vmatpush1.msra.mxu0 0.0
        %1317 = vmatprep.subr.mxu0 0.0
        %1318 = vmatpush1.msra.mxu0 0.0
        %1319 = vmatprep.subr.mxu0 0.0
        %1320 = vmatpush1.msra.mxu0 0.0
        %1321 = vmatprep.subr.mxu0 0.0
        %1322 = vmatpush1.msra.mxu0 0.0
        %1323 = vmatprep.subr.mxu0 0.0
        %1324 = vmatpush1.msra.mxu0 0.0
        %1325 = vmatprep.subr.mxu0 0.0
        %1326 = vmatpush1.msra.mxu0 0.0
        %1327 = vmatprep.subr.mxu0 0.0
        %1328 = vmatpush1.msra.mxu0 0.0
        %1329 = vmatprep.subr.mxu0 0.0
        %1330 = vmatpush1.msra.mxu0 0.0
        %1331 = vmatprep.subr.mxu0 0.0
        %1332 = vmatpush1.msra.mxu0 0.0
        %1333 = vmatprep.subr.mxu0 0.0
        %1334 = vmatpush1.msra.mxu0 0.0
        %1335 = vmatprep.subr.mxu0 0.0
        %1336 = vmatpush1.msra.mxu0 0.0
        %1337 = vmatprep.subr.mxu0 0.0
        %1338 = vmatpush1.msra.mxu0 0.0
        %1339 = vmatprep.subr.mxu0 0.0
        %1340 = vmatpush1.msra.mxu0 0.0
        %1341 = vmatprep.subr.mxu0 0.0
        %1342 = vmatpush1.msra.mxu0 0.0
        %1343 = vmatprep.subr.mxu0 %v1311
        %1344 = vmatpush1.msra.mxu0 %v1309
        %1345 = vmatprep.subr.mxu0 0.0
        %1346 = vmatpush2.msra.mxu0 0.0
        %1347 = vmatprep.subr.mxu0 0.0
        %1348 = vmatpush2.msra.mxu0 0.0
        %1349 = vmatprep.subr.mxu0 0.0
        %1350 = vmatpush2.msra.mxu0 0.0
        %1351 = vmatprep.subr.mxu0 0.0
        %1352 = vmatpush2.msra.mxu0 0.0
        %1353 = vmatprep.subr.mxu0 0.0
        %1354 = vmatpush2.msra.mxu0 0.0
        %1355 = vmatprep.subr.mxu0 0.0
        %1356 = vmatpush2.msra.mxu0 0.0
        %1357 = vmatprep.subr.mxu0 0.0
        %1358 = vmatpush2.msra.mxu0 0.0
        %1359 = vmatprep.subr.mxu0 0.0
        %1360 = vmatpush2.msra.mxu0 0.0
        %1361 = vmatprep.subr.mxu0 0.0
        %1362 = vmatpush2.msra.mxu0 0.0
        %1363 = vmatprep.subr.mxu0 0.0
        %1364 = vmatpush2.msra.mxu0 0.0
        %1365 = vmatprep.subr.mxu0 0.0
        %1366 = vmatpush2.msra.mxu0 0.0
        %1367 = vmatprep.subr.mxu0 0.0
        %1368 = vmatpush2.msra.mxu0 0.0
        %1369 = vmatprep.subr.mxu0 0.0
        %1370 = vmatpush2.msra.mxu0 0.0
        %1371 = vmatprep.subr.mxu0 0.0
        %1372 = vmatpush2.msra.mxu0 0.0
        %1373 = vmatprep.subr.mxu0 0.0
        %1374 = vmatpush2.msra.mxu0 0.0
        %1375 = vmatprep.subr.mxu0 0.0
        %1376 = vmatpush2.msra.mxu0 0.0
        %1377 = vmatprep.mubr.f32.mxu0 0.0
        %1378 = vmatmul.mubr.f32.gmra.mxu0 %v1307
        %v1379 = vpop.f32.mrf.mxu0
        %v1380 = vadd.f32 0.0, %v1379
        %v1381 = vpop.f32.mrf.mxu0
        %v1382 = vadd.f32 0.0, %v1381
        %1383 = vdwg.mxu0
        %v1385 = vsel %vm538, %v1303, 0
        %v1387 = vsel %vm542, %v423, 0
        %v1389 = vsel %vm542, %v517, 0
        %1391 = vmatprep.subr.mxu0 0.0
        %1392 = vmatpush1.msra.mxu0 0.0
        %1393 = vmatprep.subr.mxu0 0.0
        %1394 = vmatpush1.msra.mxu0 0.0
        %1395 = vmatprep.subr.mxu0 0.0
        %1396 = vmatpush1.msra.mxu0 0.0
        %1397 = vmatprep.subr.mxu0 0.0
        %1398 = vmatpush1.msra.mxu0 0.0
        %1399 = vmatprep.subr.mxu0 0.0
        %1400 = vmatpush1.msra.mxu0 0.0
        %1401 = vmatprep.subr.mxu0 0.0
        %1402 = vmatpush1.msra.mxu0 0.0
        %1403 = vmatprep.subr.mxu0 0.0
        %1404 = vmatpush1.msra.mxu0 0.0
        %1405 = vmatprep.subr.mxu0 0.0
        %1406 = vmatpush1.msra.mxu0 0.0
        %1407 = vmatprep.subr.mxu0 0.0
        %1408 = vmatpush1.msra.mxu0 0.0
        %1409 = vmatprep.subr.mxu0 0.0
        %1410 = vmatpush1.msra.mxu0 0.0
        %1411 = vmatprep.subr.mxu0 0.0
        %1412 = vmatpush1.msra.mxu0 0.0
        %1413 = vmatprep.subr.mxu0 0.0
        %1414 = vmatpush1.msra.mxu0 0.0
        %1415 = vmatprep.subr.mxu0 0.0
        %1416 = vmatpush1.msra.mxu0 0.0
        %1417 = vmatprep.subr.mxu0 0.0
        %1418 = vmatpush1.msra.mxu0 0.0
        %1419 = vmatprep.subr.mxu0 0.0
        %1420 = vmatpush1.msra.mxu0 0.0
        %1421 = vmatprep.subr.mxu0 %v1389
        %1422 = vmatpush1.msra.mxu0 %v1387
        %1423 = vmatprep.subr.mxu0 0.0
        %1424 = vmatpush2.msra.mxu0 0.0
        %1425 = vmatprep.subr.mxu0 0.0
        %1426 = vmatpush2.msra.mxu0 0.0
        %1427 = vmatprep.subr.mxu0 0.0
        %1428 = vmatpush2.msra.mxu0 0.0
        %1429 = vmatprep.subr.mxu0 0.0
        %1430 = vmatpush2.msra.mxu0 0.0
        %1431 = vmatprep.subr.mxu0 0.0
        %1432 = vmatpush2.msra.mxu0 0.0
        %1433 = vmatprep.subr.mxu0 0.0
        %1434 = vmatpush2.msra.mxu0 0.0
        %1435 = vmatprep.subr.mxu0 0.0
        %1436 = vmatpush2.msra.mxu0 0.0
        %1437 = vmatprep.subr.mxu0 0.0
        %1438 = vmatpush2.msra.mxu0 0.0
        %1439 = vmatprep.subr.mxu0 0.0
        %1440 = vmatpush2.msra.mxu0 0.0
        %1441 = vmatprep.subr.mxu0 0.0
        %1442 = vmatpush2.msra.mxu0 0.0
        %1443 = vmatprep.subr.mxu0 0.0
        %1444 = vmatpush2.msra.mxu0 0.0
        %1445 = vmatprep.subr.mxu0 0.0
        %1446 = vmatpush2.msra.mxu0 0.0
        %1447 = vmatprep.subr.mxu0 0.0
        %1448 = vmatpush2.msra.mxu0 0.0
        %1449 = vmatprep.subr.mxu0 0.0
        %1450 = vmatpush2.msra.mxu0 0.0
        %1451 = vmatprep.subr.mxu0 0.0
        %1452 = vmatpush2.msra.mxu0 0.0
        %1453 = vmatprep.subr.mxu0 0.0
        %1454 = vmatpush2.msra.mxu0 0.0
        %1455 = vmatprep.mubr.f32.mxu0 0.0
        %1456 = vmatmul.mubr.f32.gmra.mxu0 %v1385
        %v1457 = vpop.f32.mrf.mxu0
        %v1458 = vadd.f32 %v1380, %v1457
        %v1459 = vpop.f32.mrf.mxu0
        %v1460 = vadd.f32 %v1382, %v1459
        %1461 = vdwg.mxu0
        %s1462 = scalar_lea.vmem %s3, 8
        %v1463 = vld [vmem:[%s1462] sm:$0x3]
        %v1465 = vlaneseq
        %v1466 = vshrl.u32 %v1465, 7
        %v1467 = vsub.s32 0, %v1466
        %v1468 = vrot.slane %v1463, %v1467
        %v1469 = vlaneseq
        %v1470 = vshrl.u32 %v1469, 7
        %v1471 = vsub.s32 1, %v1470
        %v1472 = vrot.slane %v1463, %v1471
        %v1475 = vmul.f32 %v1468, %v1458
        %v1476 = vmul.f32 %v1472, %v1460
        %v1477 = vadd.f32 %v1300, %v1475
        %v1478 = vadd.f32 %v1301, %v1476
        %s1479 = scalar_lea.vmem %s4, 20
        %v1480 = vld [vmem:[%s1479] sm:$0xf]
        %1481 = vrot.lane.b32.xlu0 %v423, 127
        %v1482 = vpop.permute.xlu0 %1481
        %1483 = vrot.lane.b32.xlu0 %v517, 127
        %v1484 = vpop.permute.xlu0 %1483
        %vm1485 = vcmask 1039360
        %v1486 = vsel %vm1485, %v1482, %v1484
        %v1489 = vsel %vm1485, %v1484, %v1482
        %s1490 = scalar_lea.vmem %s5, 20
        %v1491 = vld [vmem:[%s1490] sm:$0xf]
        %1492 = vrot.lane.b32.xlu0 %v511, 127
        %v1493 = vpop.permute.xlu0 %1492
        %1494 = vrot.lane.b32.xlu0 %v513, 127
        %v1495 = vpop.permute.xlu0 %1494
        %v1496 = vsel %vm1485, %v1493, %v1495
        %v1499 = vsel %vm1485, %v1495, %v1493
        %v1501 = vsel %vm538, %v1491, 0
        %v1503 = vsel %vm542, %v1496, 0
        %v1506 = vsel %vm542, %v1499, 0
        %1508 = vmatprep.subr.mxu0 0.0
        %1509 = vmatpush1.msra.mxu0 0.0
        %1510 = vmatprep.subr.mxu0 0.0
        %1511 = vmatpush1.msra.mxu0 0.0
        %1512 = vmatprep.subr.mxu0 0.0
        %1513 = vmatpush1.msra.mxu0 0.0
        %1514 = vmatprep.subr.mxu0 0.0
        %1515 = vmatpush1.msra.mxu0 0.0
        %1516 = vmatprep.subr.mxu0 0.0
        %1517 = vmatpush1.msra.mxu0 0.0
        %1518 = vmatprep.subr.mxu0 0.0
        %1519 = vmatpush1.msra.mxu0 0.0
        %1520 = vmatprep.subr.mxu0 0.0
        %1521 = vmatpush1.msra.mxu0 0.0
        %1522 = vmatprep.subr.mxu0 0.0
        %1523 = vmatpush1.msra.mxu0 0.0
        %1524 = vmatprep.subr.mxu0 0.0
        %1525 = vmatpush1.msra.mxu0 0.0
        %1526 = vmatprep.subr.mxu0 0.0
        %1527 = vmatpush1.msra.mxu0 0.0
        %1528 = vmatprep.subr.mxu0 0.0
        %1529 = vmatpush1.msra.mxu0 0.0
        %1530 = vmatprep.subr.mxu0 0.0
        %1531 = vmatpush1.msra.mxu0 0.0
        %1532 = vmatprep.subr.mxu0 0.0
        %1533 = vmatpush1.msra.mxu0 0.0
        %1534 = vmatprep.subr.mxu0 0.0
        %1535 = vmatpush1.msra.mxu0 0.0
        %1536 = vmatprep.subr.mxu0 0.0
        %1537 = vmatpush1.msra.mxu0 0.0
        %1538 = vmatprep.subr.mxu0 %v1506
        %1539 = vmatpush1.msra.mxu0 %v1503
        %1540 = vmatprep.subr.mxu0 0.0
        %1541 = vmatpush2.msra.mxu0 0.0
        %1542 = vmatprep.subr.mxu0 0.0
        %1543 = vmatpush2.msra.mxu0 0.0
        %1544 = vmatprep.subr.mxu0 0.0
        %1545 = vmatpush2.msra.mxu0 0.0
        %1546 = vmatprep.subr.mxu0 0.0
        %1547 = vmatpush2.msra.mxu0 0.0
        %1548 = vmatprep.subr.mxu0 0.0
        %1549 = vmatpush2.msra.mxu0 0.0
        %1550 = vmatprep.subr.mxu0 0.0
        %1551 = vmatpush2.msra.mxu0 0.0
        %1552 = vmatprep.subr.mxu0 0.0
        %1553 = vmatpush2.msra.mxu0 0.0
        %1554 = vmatprep.subr.mxu0 0.0
        %1555 = vmatpush2.msra.mxu0 0.0
        %1556 = vmatprep.subr.mxu0 0.0
        %1557 = vmatpush2.msra.mxu0 0.0
        %1558 = vmatprep.subr.mxu0 0.0
        %1559 = vmatpush2.msra.mxu0 0.0
        %1560 = vmatprep.subr.mxu0 0.0
        %1561 = vmatpush2.msra.mxu0 0.0
        %1562 = vmatprep.subr.mxu0 0.0
        %1563 = vmatpush2.msra.mxu0 0.0
        %1564 = vmatprep.subr.mxu0 0.0
        %1565 = vmatpush2.msra.mxu0 0.0
        %1566 = vmatprep.subr.mxu0 0.0
        %1567 = vmatpush2.msra.mxu0 0.0
        %1568 = vmatprep.subr.mxu0 0.0
        %1569 = vmatpush2.msra.mxu0 0.0
        %1570 = vmatprep.subr.mxu0 0.0
        %1571 = vmatpush2.msra.mxu0 0.0
        %1572 = vmatprep.mubr.f32.mxu0 0.0
        %1573 = vmatmul.mubr.f32.gmra.mxu0 %v1501
        %v1574 = vpop.f32.mrf.mxu0
        %v1575 = vadd.f32 0.0, %v1574
        %v1576 = vpop.f32.mrf.mxu0
        %v1577 = vadd.f32 0.0, %v1576
        %1578 = vdwg.mxu0
        %v1580 = vsel %vm538, %v1480, 0
        %v1582 = vsel %vm542, %v1486, 0
        %v1585 = vsel %vm542, %v1489, 0
        %1587 = vmatprep.subr.mxu0 0.0
        %1588 = vmatpush1.msra.mxu0 0.0
        %1589 = vmatprep.subr.mxu0 0.0
        %1590 = vmatpush1.msra.mxu0 0.0
        %1591 = vmatprep.subr.mxu0 0.0
        %1592 = vmatpush1.msra.mxu0 0.0
        %1593 = vmatprep.subr.mxu0 0.0
        %1594 = vmatpush1.msra.mxu0 0.0
        %1595 = vmatprep.subr.mxu0 0.0
        %1596 = vmatpush1.msra.mxu0 0.0
        %1597 = vmatprep.subr.mxu0 0.0
        %1598 = vmatpush1.msra.mxu0 0.0
        %1599 = vmatprep.subr.mxu0 0.0
        %1600 = vmatpush1.msra.mxu0 0.0
        %1601 = vmatprep.subr.mxu0 0.0
        %1602 = vmatpush1.msra.mxu0 0.0
        %1603 = vmatprep.subr.mxu0 0.0
        %1604 = vmatpush1.msra.mxu0 0.0
        %1605 = vmatprep.subr.mxu0 0.0
        %1606 = vmatpush1.msra.mxu0 0.0
        %1607 = vmatprep.subr.mxu0 0.0
        %1608 = vmatpush1.msra.mxu0 0.0
        %1609 = vmatprep.subr.mxu0 0.0
        %1610 = vmatpush1.msra.mxu0 0.0
        %1611 = vmatprep.subr.mxu0 0.0
        %1612 = vmatpush1.msra.mxu0 0.0
        %1613 = vmatprep.subr.mxu0 0.0
        %1614 = vmatpush1.msra.mxu0 0.0
        %1615 = vmatprep.subr.mxu0 0.0
        %1616 = vmatpush1.msra.mxu0 0.0
        %1617 = vmatprep.subr.mxu0 %v1585
        %1618 = vmatpush1.msra.mxu0 %v1582
        %1619 = vmatprep.subr.mxu0 0.0
        %1620 = vmatpush2.msra.mxu0 0.0
        %1621 = vmatprep.subr.mxu0 0.0
        %1622 = vmatpush2.msra.mxu0 0.0
        %1623 = vmatprep.subr.mxu0 0.0
        %1624 = vmatpush2.msra.mxu0 0.0
        %1625 = vmatprep.subr.mxu0 0.0
        %1626 = vmatpush2.msra.mxu0 0.0
        %1627 = vmatprep.subr.mxu0 0.0
        %1628 = vmatpush2.msra.mxu0 0.0
        %1629 = vmatprep.subr.mxu0 0.0
        %1630 = vmatpush2.msra.mxu0 0.0
        %1631 = vmatprep.subr.mxu0 0.0
        %1632 = vmatpush2.msra.mxu0 0.0
        %1633 = vmatprep.subr.mxu0 0.0
        %1634 = vmatpush2.msra.mxu0 0.0
        %1635 = vmatprep.subr.mxu0 0.0
        %1636 = vmatpush2.msra.mxu0 0.0
        %1637 = vmatprep.subr.mxu0 0.0
        %1638 = vmatpush2.msra.mxu0 0.0
        %1639 = vmatprep.subr.mxu0 0.0
        %1640 = vmatpush2.msra.mxu0 0.0
        %1641 = vmatprep.subr.mxu0 0.0
        %1642 = vmatpush2.msra.mxu0 0.0
        %1643 = vmatprep.subr.mxu0 0.0
        %1644 = vmatpush2.msra.mxu0 0.0
        %1645 = vmatprep.subr.mxu0 0.0
        %1646 = vmatpush2.msra.mxu0 0.0
        %1647 = vmatprep.subr.mxu0 0.0
        %1648 = vmatpush2.msra.mxu0 0.0
        %1649 = vmatprep.subr.mxu0 0.0
        %1650 = vmatpush2.msra.mxu0 0.0
        %1651 = vmatprep.mubr.f32.mxu0 0.0
        %1652 = vmatmul.mubr.f32.gmra.mxu0 %v1580
        %v1653 = vpop.f32.mrf.mxu0
        %v1654 = vadd.f32 %v1575, %v1653
        %v1655 = vpop.f32.mrf.mxu0
        %v1656 = vadd.f32 %v1577, %v1655
        %1657 = vdwg.mxu0
        %s1658 = scalar_lea.vmem %s3, 10
        %v1659 = vld [vmem:[%s1658] sm:$0x3]
        %v1661 = vlaneseq
        %v1662 = vshrl.u32 %v1661, 7
        %v1663 = vsub.s32 0, %v1662
        %v1664 = vrot.slane %v1659, %v1663
        %v1665 = vlaneseq
        %v1666 = vshrl.u32 %v1665, 7
        %v1667 = vsub.s32 1, %v1666
        %v1668 = vrot.slane %v1659, %v1667
        %v1671 = vmul.f32 %v1664, %v1654
        %v1672 = vmul.f32 %v1668, %v1656
        %v1673 = vadd.f32 %v1477, %v1671
        %v1674 = vadd.f32 %v1478, %v1672
        %s1675 = scalar_lea.vmem %s4, 24
        %v1676 = vld [vmem:[%s1675] sm:$0xf]
        %1677 = vrot.lane.b32.xlu0 %v423, 113
        %v1678 = vpop.permute.xlu0 %1677
        %1679 = vrot.lane.b32.xlu0 %v517, 113
        %v1680 = vpop.permute.xlu0 %1679
        %vm1681 = vcmask 924672
        %v1682 = vsel %vm1681, %v1678, %v1680
        %v1685 = vsel %vm1681, %v1680, %v1678
        %s1686 = scalar_lea.vmem %s5, 24
        %v1687 = vld [vmem:[%s1686] sm:$0xf]
        %1688 = vrot.lane.b32.xlu0 %v511, 113
        %v1689 = vpop.permute.xlu0 %1688
        %1690 = vrot.lane.b32.xlu0 %v513, 113
        %v1691 = vpop.permute.xlu0 %1690
        %v1692 = vsel %vm1681, %v1689, %v1691
        %v1695 = vsel %vm1681, %v1691, %v1689
        %v1697 = vsel %vm538, %v1687, 0
        %v1699 = vsel %vm542, %v1692, 0
        %v1702 = vsel %vm542, %v1695, 0
        %1704 = vmatprep.subr.mxu0 0.0
        %1705 = vmatpush1.msra.mxu0 0.0
        %1706 = vmatprep.subr.mxu0 0.0
        %1707 = vmatpush1.msra.mxu0 0.0
        %1708 = vmatprep.subr.mxu0 0.0
        %1709 = vmatpush1.msra.mxu0 0.0
        %1710 = vmatprep.subr.mxu0 0.0
        %1711 = vmatpush1.msra.mxu0 0.0
        %1712 = vmatprep.subr.mxu0 0.0
        %1713 = vmatpush1.msra.mxu0 0.0
        %1714 = vmatprep.subr.mxu0 0.0
        %1715 = vmatpush1.msra.mxu0 0.0
        %1716 = vmatprep.subr.mxu0 0.0
        %1717 = vmatpush1.msra.mxu0 0.0
        %1718 = vmatprep.subr.mxu0 0.0
        %1719 = vmatpush1.msra.mxu0 0.0
        %1720 = vmatprep.subr.mxu0 0.0
        %1721 = vmatpush1.msra.mxu0 0.0
        %1722 = vmatprep.subr.mxu0 0.0
        %1723 = vmatpush1.msra.mxu0 0.0
        %1724 = vmatprep.subr.mxu0 0.0
        %1725 = vmatpush1.msra.mxu0 0.0
        %1726 = vmatprep.subr.mxu0 0.0
        %1727 = vmatpush1.msra.mxu0 0.0
        %1728 = vmatprep.subr.mxu0 0.0
        %1729 = vmatpush1.msra.mxu0 0.0
        %1730 = vmatprep.subr.mxu0 0.0
        %1731 = vmatpush1.msra.mxu0 0.0
        %1732 = vmatprep.subr.mxu0 0.0
        %1733 = vmatpush1.msra.mxu0 0.0
        %1734 = vmatprep.subr.mxu0 %v1702
        %1735 = vmatpush1.msra.mxu0 %v1699
        %1736 = vmatprep.subr.mxu0 0.0
        %1737 = vmatpush2.msra.mxu0 0.0
        %1738 = vmatprep.subr.mxu0 0.0
        %1739 = vmatpush2.msra.mxu0 0.0
        %1740 = vmatprep.subr.mxu0 0.0
        %1741 = vmatpush2.msra.mxu0 0.0
        %1742 = vmatprep.subr.mxu0 0.0
        %1743 = vmatpush2.msra.mxu0 0.0
        %1744 = vmatprep.subr.mxu0 0.0
        %1745 = vmatpush2.msra.mxu0 0.0
        %1746 = vmatprep.subr.mxu0 0.0
        %1747 = vmatpush2.msra.mxu0 0.0
        %1748 = vmatprep.subr.mxu0 0.0
        %1749 = vmatpush2.msra.mxu0 0.0
        %1750 = vmatprep.subr.mxu0 0.0
        %1751 = vmatpush2.msra.mxu0 0.0
        %1752 = vmatprep.subr.mxu0 0.0
        %1753 = vmatpush2.msra.mxu0 0.0
        %1754 = vmatprep.subr.mxu0 0.0
        %1755 = vmatpush2.msra.mxu0 0.0
        %1756 = vmatprep.subr.mxu0 0.0
        %1757 = vmatpush2.msra.mxu0 0.0
        %1758 = vmatprep.subr.mxu0 0.0
        %1759 = vmatpush2.msra.mxu0 0.0
        %1760 = vmatprep.subr.mxu0 0.0
        %1761 = vmatpush2.msra.mxu0 0.0
        %1762 = vmatprep.subr.mxu0 0.0
        %1763 = vmatpush2.msra.mxu0 0.0
        %1764 = vmatprep.subr.mxu0 0.0
        %1765 = vmatpush2.msra.mxu0 0.0
        %1766 = vmatprep.subr.mxu0 0.0
        %1767 = vmatpush2.msra.mxu0 0.0
        %1768 = vmatprep.mubr.f32.mxu0 0.0
        %1769 = vmatmul.mubr.f32.gmra.mxu0 %v1697
        %v1770 = vpop.f32.mrf.mxu0
        %v1771 = vadd.f32 0.0, %v1770
        %v1772 = vpop.f32.mrf.mxu0
        %v1773 = vadd.f32 0.0, %v1772
        %1774 = vdwg.mxu0
        %v1776 = vsel %vm538, %v1676, 0
        %v1778 = vsel %vm542, %v1682, 0
        %v1781 = vsel %vm542, %v1685, 0
        %1783 = vmatprep.subr.mxu0 0.0
        %1784 = vmatpush1.msra.mxu0 0.0
        %1785 = vmatprep.subr.mxu0 0.0
        %1786 = vmatpush1.msra.mxu0 0.0
        %1787 = vmatprep.subr.mxu0 0.0
        %1788 = vmatpush1.msra.mxu0 0.0
        %1789 = vmatprep.subr.mxu0 0.0
        %1790 = vmatpush1.msra.mxu0 0.0
        %1791 = vmatprep.subr.mxu0 0.0
        %1792 = vmatpush1.msra.mxu0 0.0
        %1793 = vmatprep.subr.mxu0 0.0
        %1794 = vmatpush1.msra.mxu0 0.0
        %1795 = vmatprep.subr.mxu0 0.0
        %1796 = vmatpush1.msra.mxu0 0.0
        %1797 = vmatprep.subr.mxu0 0.0
        %1798 = vmatpush1.msra.mxu0 0.0
        %1799 = vmatprep.subr.mxu0 0.0
        %1800 = vmatpush1.msra.mxu0 0.0
        %1801 = vmatprep.subr.mxu0 0.0
        %1802 = vmatpush1.msra.mxu0 0.0
        %1803 = vmatprep.subr.mxu0 0.0
        %1804 = vmatpush1.msra.mxu0 0.0
        %1805 = vmatprep.subr.mxu0 0.0
        %1806 = vmatpush1.msra.mxu0 0.0
        %1807 = vmatprep.subr.mxu0 0.0
        %1808 = vmatpush1.msra.mxu0 0.0
        %1809 = vmatprep.subr.mxu0 0.0
        %1810 = vmatpush1.msra.mxu0 0.0
        %1811 = vmatprep.subr.mxu0 0.0
        %1812 = vmatpush1.msra.mxu0 0.0
        %1813 = vmatprep.subr.mxu0 %v1781
        %1814 = vmatpush1.msra.mxu0 %v1778
        %1815 = vmatprep.subr.mxu0 0.0
        %1816 = vmatpush2.msra.mxu0 0.0
        %1817 = vmatprep.subr.mxu0 0.0
        %1818 = vmatpush2.msra.mxu0 0.0
        %1819 = vmatprep.subr.mxu0 0.0
        %1820 = vmatpush2.msra.mxu0 0.0
        %1821 = vmatprep.subr.mxu0 0.0
        %1822 = vmatpush2.msra.mxu0 0.0
        %1823 = vmatprep.subr.mxu0 0.0
        %1824 = vmatpush2.msra.mxu0 0.0
        %1825 = vmatprep.subr.mxu0 0.0
        %1826 = vmatpush2.msra.mxu0 0.0
        %1827 = vmatprep.subr.mxu0 0.0
        %1828 = vmatpush2.msra.mxu0 0.0
        %1829 = vmatprep.subr.mxu0 0.0
        %1830 = vmatpush2.msra.mxu0 0.0
        %1831 = vmatprep.subr.mxu0 0.0
        %1832 = vmatpush2.msra.mxu0 0.0
        %1833 = vmatprep.subr.mxu0 0.0
        %1834 = vmatpush2.msra.mxu0 0.0
        %1835 = vmatprep.subr.mxu0 0.0
        %1836 = vmatpush2.msra.mxu0 0.0
        %1837 = vmatprep.subr.mxu0 0.0
        %1838 = vmatpush2.msra.mxu0 0.0
        %1839 = vmatprep.subr.mxu0 0.0
        %1840 = vmatpush2.msra.mxu0 0.0
        %1841 = vmatprep.subr.mxu0 0.0
        %1842 = vmatpush2.msra.mxu0 0.0
        %1843 = vmatprep.subr.mxu0 0.0
        %1844 = vmatpush2.msra.mxu0 0.0
        %1845 = vmatprep.subr.mxu0 0.0
        %1846 = vmatpush2.msra.mxu0 0.0
        %1847 = vmatprep.mubr.f32.mxu0 0.0
        %1848 = vmatmul.mubr.f32.gmra.mxu0 %v1776
        %v1849 = vpop.f32.mrf.mxu0
        %v1850 = vadd.f32 %v1771, %v1849
        %v1851 = vpop.f32.mrf.mxu0
        %v1852 = vadd.f32 %v1773, %v1851
        %1853 = vdwg.mxu0
        %s1854 = scalar_lea.vmem %s3, 12
        %v1855 = vld [vmem:[%s1854] sm:$0x3]
        %v1857 = vlaneseq
        %v1858 = vshrl.u32 %v1857, 7
        %v1859 = vsub.s32 0, %v1858
        %v1860 = vrot.slane %v1855, %v1859
        %v1861 = vlaneseq
        %v1862 = vshrl.u32 %v1861, 7
        %v1863 = vsub.s32 1, %v1862
        %v1864 = vrot.slane %v1855, %v1863
        %v1867 = vmul.f32 %v1860, %v1850
        %v1868 = vmul.f32 %v1864, %v1852
        %v1869 = vadd.f32 %v1673, %v1867
        %v1870 = vadd.f32 %v1674, %v1868
        %s1871 = scalar_lea.vmem %s4, 28
        %v1872 = vld [vmem:[%s1871] sm:$0xf]
        %1873 = vrot.lane.b32.xlu0 %v423, 112
        %v1874 = vpop.permute.xlu0 %1873
        %1875 = vrot.lane.b32.xlu0 %v517, 112
        %v1876 = vpop.permute.xlu0 %1875
        %vm1877 = vcmask 916480
        %v1878 = vsel %vm1877, %v1874, %v1876
        %v1881 = vsel %vm1877, %v1876, %v1874
        %s1882 = scalar_lea.vmem %s5, 28
        %v1883 = vld [vmem:[%s1882] sm:$0xf]
        %1884 = vrot.lane.b32.xlu0 %v511, 112
        %v1885 = vpop.permute.xlu0 %1884
        %1886 = vrot.lane.b32.xlu0 %v513, 112
        %v1887 = vpop.permute.xlu0 %1886
        %v1888 = vsel %vm1877, %v1885, %v1887
        %v1891 = vsel %vm1877, %v1887, %v1885
        %v1893 = vsel %vm538, %v1883, 0
        %v1895 = vsel %vm542, %v1888, 0
        %v1898 = vsel %vm542, %v1891, 0
        %1900 = vmatprep.subr.mxu0 0.0
        %1901 = vmatpush1.msra.mxu0 0.0
        %1902 = vmatprep.subr.mxu0 0.0
        %1903 = vmatpush1.msra.mxu0 0.0
        %1904 = vmatprep.subr.mxu0 0.0
        %1905 = vmatpush1.msra.mxu0 0.0
        %1906 = vmatprep.subr.mxu0 0.0
        %1907 = vmatpush1.msra.mxu0 0.0
        %1908 = vmatprep.subr.mxu0 0.0
        %1909 = vmatpush1.msra.mxu0 0.0
        %1910 = vmatprep.subr.mxu0 0.0
        %1911 = vmatpush1.msra.mxu0 0.0
        %1912 = vmatprep.subr.mxu0 0.0
        %1913 = vmatpush1.msra.mxu0 0.0
        %1914 = vmatprep.subr.mxu0 0.0
        %1915 = vmatpush1.msra.mxu0 0.0
        %1916 = vmatprep.subr.mxu0 0.0
        %1917 = vmatpush1.msra.mxu0 0.0
        %1918 = vmatprep.subr.mxu0 0.0
        %1919 = vmatpush1.msra.mxu0 0.0
        %1920 = vmatprep.subr.mxu0 0.0
        %1921 = vmatpush1.msra.mxu0 0.0
        %1922 = vmatprep.subr.mxu0 0.0
        %1923 = vmatpush1.msra.mxu0 0.0
        %1924 = vmatprep.subr.mxu0 0.0
        %1925 = vmatpush1.msra.mxu0 0.0
        %1926 = vmatprep.subr.mxu0 0.0
        %1927 = vmatpush1.msra.mxu0 0.0
        %1928 = vmatprep.subr.mxu0 0.0
        %1929 = vmatpush1.msra.mxu0 0.0
        %1930 = vmatprep.subr.mxu0 %v1898
        %1931 = vmatpush1.msra.mxu0 %v1895
        %1932 = vmatprep.subr.mxu0 0.0
        %1933 = vmatpush2.msra.mxu0 0.0
        %1934 = vmatprep.subr.mxu0 0.0
        %1935 = vmatpush2.msra.mxu0 0.0
        %1936 = vmatprep.subr.mxu0 0.0
        %1937 = vmatpush2.msra.mxu0 0.0
        %1938 = vmatprep.subr.mxu0 0.0
        %1939 = vmatpush2.msra.mxu0 0.0
        %1940 = vmatprep.subr.mxu0 0.0
        %1941 = vmatpush2.msra.mxu0 0.0
        %1942 = vmatprep.subr.mxu0 0.0
        %1943 = vmatpush2.msra.mxu0 0.0
        %1944 = vmatprep.subr.mxu0 0.0
        %1945 = vmatpush2.msra.mxu0 0.0
        %1946 = vmatprep.subr.mxu0 0.0
        %1947 = vmatpush2.msra.mxu0 0.0
        %1948 = vmatprep.subr.mxu0 0.0
        %1949 = vmatpush2.msra.mxu0 0.0
        %1950 = vmatprep.subr.mxu0 0.0
        %1951 = vmatpush2.msra.mxu0 0.0
        %1952 = vmatprep.subr.mxu0 0.0
        %1953 = vmatpush2.msra.mxu0 0.0
        %1954 = vmatprep.subr.mxu0 0.0
        %1955 = vmatpush2.msra.mxu0 0.0
        %1956 = vmatprep.subr.mxu0 0.0
        %1957 = vmatpush2.msra.mxu0 0.0
        %1958 = vmatprep.subr.mxu0 0.0
        %1959 = vmatpush2.msra.mxu0 0.0
        %1960 = vmatprep.subr.mxu0 0.0
        %1961 = vmatpush2.msra.mxu0 0.0
        %1962 = vmatprep.subr.mxu0 0.0
        %1963 = vmatpush2.msra.mxu0 0.0
        %1964 = vmatprep.mubr.f32.mxu0 0.0
        %1965 = vmatmul.mubr.f32.gmra.mxu0 %v1893
        %v1966 = vpop.f32.mrf.mxu0
        %v1967 = vadd.f32 0.0, %v1966
        %v1968 = vpop.f32.mrf.mxu0
        %v1969 = vadd.f32 0.0, %v1968
        %1970 = vdwg.mxu0
        %v1972 = vsel %vm538, %v1872, 0
        %v1974 = vsel %vm542, %v1878, 0
        %v1977 = vsel %vm542, %v1881, 0
        %1979 = vmatprep.subr.mxu0 0.0
        %1980 = vmatpush1.msra.mxu0 0.0
        %1981 = vmatprep.subr.mxu0 0.0
        %1982 = vmatpush1.msra.mxu0 0.0
        %1983 = vmatprep.subr.mxu0 0.0
        %1984 = vmatpush1.msra.mxu0 0.0
        %1985 = vmatprep.subr.mxu0 0.0
        %1986 = vmatpush1.msra.mxu0 0.0
        %1987 = vmatprep.subr.mxu0 0.0
        %1988 = vmatpush1.msra.mxu0 0.0
        %1989 = vmatprep.subr.mxu0 0.0
        %1990 = vmatpush1.msra.mxu0 0.0
        %1991 = vmatprep.subr.mxu0 0.0
        %1992 = vmatpush1.msra.mxu0 0.0
        %1993 = vmatprep.subr.mxu0 0.0
        %1994 = vmatpush1.msra.mxu0 0.0
        %1995 = vmatprep.subr.mxu0 0.0
        %1996 = vmatpush1.msra.mxu0 0.0
        %1997 = vmatprep.subr.mxu0 0.0
        %1998 = vmatpush1.msra.mxu0 0.0
        %1999 = vmatprep.subr.mxu0 0.0
        %2000 = vmatpush1.msra.mxu0 0.0
        %2001 = vmatprep.subr.mxu0 0.0
        %2002 = vmatpush1.msra.mxu0 0.0
        %2003 = vmatprep.subr.mxu0 0.0
        %2004 = vmatpush1.msra.mxu0 0.0
        %2005 = vmatprep.subr.mxu0 0.0
        %2006 = vmatpush1.msra.mxu0 0.0
        %2007 = vmatprep.subr.mxu0 0.0
        %2008 = vmatpush1.msra.mxu0 0.0
        %2009 = vmatprep.subr.mxu0 %v1977
        %2010 = vmatpush1.msra.mxu0 %v1974
        %2011 = vmatprep.subr.mxu0 0.0
        %2012 = vmatpush2.msra.mxu0 0.0
        %2013 = vmatprep.subr.mxu0 0.0
        %2014 = vmatpush2.msra.mxu0 0.0
        %2015 = vmatprep.subr.mxu0 0.0
        %2016 = vmatpush2.msra.mxu0 0.0
        %2017 = vmatprep.subr.mxu0 0.0
        %2018 = vmatpush2.msra.mxu0 0.0
        %2019 = vmatprep.subr.mxu0 0.0
        %2020 = vmatpush2.msra.mxu0 0.0
        %2021 = vmatprep.subr.mxu0 0.0
        %2022 = vmatpush2.msra.mxu0 0.0
        %2023 = vmatprep.subr.mxu0 0.0
        %2024 = vmatpush2.msra.mxu0 0.0
        %2025 = vmatprep.subr.mxu0 0.0
        %2026 = vmatpush2.msra.mxu0 0.0
        %2027 = vmatprep.subr.mxu0 0.0
        %2028 = vmatpush2.msra.mxu0 0.0
        %2029 = vmatprep.subr.mxu0 0.0
        %2030 = vmatpush2.msra.mxu0 0.0
        %2031 = vmatprep.subr.mxu0 0.0
        %2032 = vmatpush2.msra.mxu0 0.0
        %2033 = vmatprep.subr.mxu0 0.0
        %2034 = vmatpush2.msra.mxu0 0.0
        %2035 = vmatprep.subr.mxu0 0.0
        %2036 = vmatpush2.msra.mxu0 0.0
        %2037 = vmatprep.subr.mxu0 0.0
        %2038 = vmatpush2.msra.mxu0 0.0
        %2039 = vmatprep.subr.mxu0 0.0
        %2040 = vmatpush2.msra.mxu0 0.0
        %2041 = vmatprep.subr.mxu0 0.0
        %2042 = vmatpush2.msra.mxu0 0.0
        %2043 = vmatprep.mubr.f32.mxu0 0.0
        %2044 = vmatmul.mubr.f32.gmra.mxu0 %v1972
        %v2045 = vpop.f32.mrf.mxu0
        %v2046 = vadd.f32 %v1967, %v2045
        %v2047 = vpop.f32.mrf.mxu0
        %v2048 = vadd.f32 %v1969, %v2047
        %2049 = vdwg.mxu0
        %s2050 = scalar_lea.vmem %s3, 14
        %v2051 = vld [vmem:[%s2050] sm:$0x3]
        %v2053 = vlaneseq
        %v2054 = vshrl.u32 %v2053, 7
        %v2055 = vsub.s32 0, %v2054
        %v2056 = vrot.slane %v2051, %v2055
        %v2057 = vlaneseq
        %v2058 = vshrl.u32 %v2057, 7
        %v2059 = vsub.s32 1, %v2058
        %v2060 = vrot.slane %v2051, %v2059
        %v2063 = vmul.f32 %v2056, %v2046
        %v2064 = vmul.f32 %v2060, %v2048
        %v2065 = vadd.f32 %v1869, %v2063
        %v2066 = vadd.f32 %v1870, %v2064
        %s2067 = scalar_lea.vmem %s4, 32
        %v2068 = vld [vmem:[%s2067] sm:$0xf]
        %2069 = vrot.lane.b32.xlu0 %v423, 111
        %v2070 = vpop.permute.xlu0 %2069
        %2071 = vrot.lane.b32.xlu0 %v517, 111
        %v2072 = vpop.permute.xlu0 %2071
        %vm2073 = vcmask 908288
        %v2074 = vsel %vm2073, %v2070, %v2072
        %v2077 = vsel %vm2073, %v2072, %v2070
        %s2078 = scalar_lea.vmem %s5, 32
        %v2079 = vld [vmem:[%s2078] sm:$0xf]
        %2080 = vrot.lane.b32.xlu0 %v511, 111
        %v2081 = vpop.permute.xlu0 %2080
        %2082 = vrot.lane.b32.xlu0 %v513, 111
        %v2083 = vpop.permute.xlu0 %2082
        %v2084 = vsel %vm2073, %v2081, %v2083
        %v2087 = vsel %vm2073, %v2083, %v2081
        %v2089 = vsel %vm538, %v2079, 0
        %v2091 = vsel %vm542, %v2084, 0
        %v2094 = vsel %vm542, %v2087, 0
        %2096 = vmatprep.subr.mxu0 0.0
        %2097 = vmatpush1.msra.mxu0 0.0
        %2098 = vmatprep.subr.mxu0 0.0
        %2099 = vmatpush1.msra.mxu0 0.0
        %2100 = vmatprep.subr.mxu0 0.0
        %2101 = vmatpush1.msra.mxu0 0.0
        %2102 = vmatprep.subr.mxu0 0.0
        %2103 = vmatpush1.msra.mxu0 0.0
        %2104 = vmatprep.subr.mxu0 0.0
        %2105 = vmatpush1.msra.mxu0 0.0
        %2106 = vmatprep.subr.mxu0 0.0
        %2107 = vmatpush1.msra.mxu0 0.0
        %2108 = vmatprep.subr.mxu0 0.0
        %2109 = vmatpush1.msra.mxu0 0.0
        %2110 = vmatprep.subr.mxu0 0.0
        %2111 = vmatpush1.msra.mxu0 0.0
        %2112 = vmatprep.subr.mxu0 0.0
        %2113 = vmatpush1.msra.mxu0 0.0
        %2114 = vmatprep.subr.mxu0 0.0
        %2115 = vmatpush1.msra.mxu0 0.0
        %2116 = vmatprep.subr.mxu0 0.0
        %2117 = vmatpush1.msra.mxu0 0.0
        %2118 = vmatprep.subr.mxu0 0.0
        %2119 = vmatpush1.msra.mxu0 0.0
        %2120 = vmatprep.subr.mxu0 0.0
        %2121 = vmatpush1.msra.mxu0 0.0
        %2122 = vmatprep.subr.mxu0 0.0
        %2123 = vmatpush1.msra.mxu0 0.0
        %2124 = vmatprep.subr.mxu0 0.0
        %2125 = vmatpush1.msra.mxu0 0.0
        %2126 = vmatprep.subr.mxu0 %v2094
        %2127 = vmatpush1.msra.mxu0 %v2091
        %2128 = vmatprep.subr.mxu0 0.0
        %2129 = vmatpush2.msra.mxu0 0.0
        %2130 = vmatprep.subr.mxu0 0.0
        %2131 = vmatpush2.msra.mxu0 0.0
        %2132 = vmatprep.subr.mxu0 0.0
        %2133 = vmatpush2.msra.mxu0 0.0
        %2134 = vmatprep.subr.mxu0 0.0
        %2135 = vmatpush2.msra.mxu0 0.0
        %2136 = vmatprep.subr.mxu0 0.0
        %2137 = vmatpush2.msra.mxu0 0.0
        %2138 = vmatprep.subr.mxu0 0.0
        %2139 = vmatpush2.msra.mxu0 0.0
        %2140 = vmatprep.subr.mxu0 0.0
        %2141 = vmatpush2.msra.mxu0 0.0
        %2142 = vmatprep.subr.mxu0 0.0
        %2143 = vmatpush2.msra.mxu0 0.0
        %2144 = vmatprep.subr.mxu0 0.0
        %2145 = vmatpush2.msra.mxu0 0.0
        %2146 = vmatprep.subr.mxu0 0.0
        %2147 = vmatpush2.msra.mxu0 0.0
        %2148 = vmatprep.subr.mxu0 0.0
        %2149 = vmatpush2.msra.mxu0 0.0
        %2150 = vmatprep.subr.mxu0 0.0
        %2151 = vmatpush2.msra.mxu0 0.0
        %2152 = vmatprep.subr.mxu0 0.0
        %2153 = vmatpush2.msra.mxu0 0.0
        %2154 = vmatprep.subr.mxu0 0.0
        %2155 = vmatpush2.msra.mxu0 0.0
        %2156 = vmatprep.subr.mxu0 0.0
        %2157 = vmatpush2.msra.mxu0 0.0
        %2158 = vmatprep.subr.mxu0 0.0
        %2159 = vmatpush2.msra.mxu0 0.0
        %2160 = vmatprep.mubr.f32.mxu0 0.0
        %2161 = vmatmul.mubr.f32.gmra.mxu0 %v2089
        %v2162 = vpop.f32.mrf.mxu0
        %v2163 = vadd.f32 0.0, %v2162
        %v2164 = vpop.f32.mrf.mxu0
        %v2165 = vadd.f32 0.0, %v2164
        %2166 = vdwg.mxu0
        %v2168 = vsel %vm538, %v2068, 0
        %v2170 = vsel %vm542, %v2074, 0
        %v2173 = vsel %vm542, %v2077, 0
        %2175 = vmatprep.subr.mxu0 0.0
        %2176 = vmatpush1.msra.mxu0 0.0
        %2177 = vmatprep.subr.mxu0 0.0
        %2178 = vmatpush1.msra.mxu0 0.0
        %2179 = vmatprep.subr.mxu0 0.0
        %2180 = vmatpush1.msra.mxu0 0.0
        %2181 = vmatprep.subr.mxu0 0.0
        %2182 = vmatpush1.msra.mxu0 0.0
        %2183 = vmatprep.subr.mxu0 0.0
        %2184 = vmatpush1.msra.mxu0 0.0
        %2185 = vmatprep.subr.mxu0 0.0
        %2186 = vmatpush1.msra.mxu0 0.0
        %2187 = vmatprep.subr.mxu0 0.0
        %2188 = vmatpush1.msra.mxu0 0.0
        %2189 = vmatprep.subr.mxu0 0.0
        %2190 = vmatpush1.msra.mxu0 0.0
        %2191 = vmatprep.subr.mxu0 0.0
        %2192 = vmatpush1.msra.mxu0 0.0
        %2193 = vmatprep.subr.mxu0 0.0
        %2194 = vmatpush1.msra.mxu0 0.0
        %2195 = vmatprep.subr.mxu0 0.0
        %2196 = vmatpush1.msra.mxu0 0.0
        %2197 = vmatprep.subr.mxu0 0.0
        %2198 = vmatpush1.msra.mxu0 0.0
        %2199 = vmatprep.subr.mxu0 0.0
        %2200 = vmatpush1.msra.mxu0 0.0
        %2201 = vmatprep.subr.mxu0 0.0
        %2202 = vmatpush1.msra.mxu0 0.0
        %2203 = vmatprep.subr.mxu0 0.0
        %2204 = vmatpush1.msra.mxu0 0.0
        %2205 = vmatprep.subr.mxu0 %v2173
        %2206 = vmatpush1.msra.mxu0 %v2170
        %2207 = vmatprep.subr.mxu0 0.0
        %2208 = vmatpush2.msra.mxu0 0.0
        %2209 = vmatprep.subr.mxu0 0.0
        %2210 = vmatpush2.msra.mxu0 0.0
        %2211 = vmatprep.subr.mxu0 0.0
        %2212 = vmatpush2.msra.mxu0 0.0
        %2213 = vmatprep.subr.mxu0 0.0
        %2214 = vmatpush2.msra.mxu0 0.0
        %2215 = vmatprep.subr.mxu0 0.0
        %2216 = vmatpush2.msra.mxu0 0.0
        %2217 = vmatprep.subr.mxu0 0.0
        %2218 = vmatpush2.msra.mxu0 0.0
        %2219 = vmatprep.subr.mxu0 0.0
        %2220 = vmatpush2.msra.mxu0 0.0
        %2221 = vmatprep.subr.mxu0 0.0
        %2222 = vmatpush2.msra.mxu0 0.0
        %2223 = vmatprep.subr.mxu0 0.0
        %2224 = vmatpush2.msra.mxu0 0.0
        %2225 = vmatprep.subr.mxu0 0.0
        %2226 = vmatpush2.msra.mxu0 0.0
        %2227 = vmatprep.subr.mxu0 0.0
        %2228 = vmatpush2.msra.mxu0 0.0
        %2229 = vmatprep.subr.mxu0 0.0
        %2230 = vmatpush2.msra.mxu0 0.0
        %2231 = vmatprep.subr.mxu0 0.0
        %2232 = vmatpush2.msra.mxu0 0.0
        %2233 = vmatprep.subr.mxu0 0.0
        %2234 = vmatpush2.msra.mxu0 0.0
        %2235 = vmatprep.subr.mxu0 0.0
        %2236 = vmatpush2.msra.mxu0 0.0
        %2237 = vmatprep.subr.mxu0 0.0
        %2238 = vmatpush2.msra.mxu0 0.0
        %2239 = vmatprep.mubr.f32.mxu0 0.0
        %2240 = vmatmul.mubr.f32.gmra.mxu0 %v2168
        %v2241 = vpop.f32.mrf.mxu0
        %v2242 = vadd.f32 %v2163, %v2241
        %v2243 = vpop.f32.mrf.mxu0
        %v2244 = vadd.f32 %v2165, %v2243
        %2245 = vdwg.mxu0
        %s2246 = scalar_lea.vmem %s3, 16
        %v2247 = vld [vmem:[%s2246] sm:$0x3]
        %v2249 = vlaneseq
        %v2250 = vshrl.u32 %v2249, 7
        %v2251 = vsub.s32 0, %v2250
        %v2252 = vrot.slane %v2247, %v2251
        %v2253 = vlaneseq
        %v2254 = vshrl.u32 %v2253, 7
        %v2255 = vsub.s32 1, %v2254
        %v2256 = vrot.slane %v2247, %v2255
        %v2259 = vmul.f32 %v2252, %v2242
        %v2260 = vmul.f32 %v2256, %v2244
        %v2261 = vadd.f32 %v2065, %v2259
        %v2262 = vadd.f32 %v2066, %v2260
        %v2263 = vld [vmem:[%s7] sm:$0xf]
        %2265 = vset.pattern.permute.xlu0 0
        %2266 = vperm.xlu0 %2265, %v2263
        %v2267 = vpop.permute.xlu0 %2266
        %v2269 = vmul.f32 %v2261, %v2267
        %v2270 = vmul.f32 %v2262, %v2267
        %v2271 = vld [vmem:[%s8] sm:$0xf]
        %2273 = vset.pattern.permute.xlu0 0
        %2274 = vperm.xlu0 %2273, %v2271
        %v2275 = vpop.permute.xlu0 %2274
        %v2277 = vadd.f32 %v2269, %v2275
        %v2278 = vadd.f32 %v2270, %v2275
        %v2279 = vmax.f32 %v2277, 0.0
        %v2280 = vmax.f32 %v2278, 0.0
        %v2281 = vld [vmem:[%s6] sm:$0xf]
        %2283 = vrot.lane.b32.xlu0 %v2280, 17
        %v2284 = vpop.permute.xlu0 %2283
        %2287 = vrot.lane.b32.xlu0 %v2279, 17
        %v2288 = vpop.permute.xlu0 %2287
        %v2289 = vsel %vm523, %v2288, %v2284
        %v2291 = vsel %vm523, %v2284, %v2288
        %v2293 = vsel %vm538, %v2281, 0
        %v2296 = vsel %vm542, %v2291, 0
        %v2298 = vsel %vm542, %v2289, 0
        %2300 = vmatprep.subr.mxu0 0.0
        %2301 = vmatpush1.msra.mxu0 0.0
        %2302 = vmatprep.subr.mxu0 0.0
        %2303 = vmatpush1.msra.mxu0 0.0
        %2304 = vmatprep.subr.mxu0 0.0
        %2305 = vmatpush1.msra.mxu0 0.0
        %2306 = vmatprep.subr.mxu0 0.0
        %2307 = vmatpush1.msra.mxu0 0.0
        %2308 = vmatprep.subr.mxu0 0.0
        %2309 = vmatpush1.msra.mxu0 0.0
        %2310 = vmatprep.subr.mxu0 0.0
        %2311 = vmatpush1.msra.mxu0 0.0
        %2312 = vmatprep.subr.mxu0 0.0
        %2313 = vmatpush1.msra.mxu0 0.0
        %2314 = vmatprep.subr.mxu0 0.0
        %2315 = vmatpush1.msra.mxu0 0.0
        %2316 = vmatprep.subr.mxu0 0.0
        %2317 = vmatpush1.msra.mxu0 0.0
        %2318 = vmatprep.subr.mxu0 0.0
        %2319 = vmatpush1.msra.mxu0 0.0
        %2320 = vmatprep.subr.mxu0 0.0
        %2321 = vmatpush1.msra.mxu0 0.0
        %2322 = vmatprep.subr.mxu0 0.0
        %2323 = vmatpush1.msra.mxu0 0.0
        %2324 = vmatprep.subr.mxu0 0.0
        %2325 = vmatpush1.msra.mxu0 0.0
        %2326 = vmatprep.subr.mxu0 0.0
        %2327 = vmatpush1.msra.mxu0 0.0
        %2328 = vmatprep.subr.mxu0 0.0
        %2329 = vmatpush1.msra.mxu0 0.0
        %2330 = vmatprep.subr.mxu0 %v2298
        %2331 = vmatpush1.msra.mxu0 %v2296
        %2332 = vmatprep.subr.mxu0 0.0
        %2333 = vmatpush2.msra.mxu0 0.0
        %2334 = vmatprep.subr.mxu0 0.0
        %2335 = vmatpush2.msra.mxu0 0.0
        %2336 = vmatprep.subr.mxu0 0.0
        %2337 = vmatpush2.msra.mxu0 0.0
        %2338 = vmatprep.subr.mxu0 0.0
        %2339 = vmatpush2.msra.mxu0 0.0
        %2340 = vmatprep.subr.mxu0 0.0
        %2341 = vmatpush2.msra.mxu0 0.0
        %2342 = vmatprep.subr.mxu0 0.0
        %2343 = vmatpush2.msra.mxu0 0.0
        %2344 = vmatprep.subr.mxu0 0.0
        %2345 = vmatpush2.msra.mxu0 0.0
        %2346 = vmatprep.subr.mxu0 0.0
        %2347 = vmatpush2.msra.mxu0 0.0
        %2348 = vmatprep.subr.mxu0 0.0
        %2349 = vmatpush2.msra.mxu0 0.0
        %2350 = vmatprep.subr.mxu0 0.0
        %2351 = vmatpush2.msra.mxu0 0.0
        %2352 = vmatprep.subr.mxu0 0.0
        %2353 = vmatpush2.msra.mxu0 0.0
        %2354 = vmatprep.subr.mxu0 0.0
        %2355 = vmatpush2.msra.mxu0 0.0
        %2356 = vmatprep.subr.mxu0 0.0
        %2357 = vmatpush2.msra.mxu0 0.0
        %2358 = vmatprep.subr.mxu0 0.0
        %2359 = vmatpush2.msra.mxu0 0.0
        %2360 = vmatprep.subr.mxu0 0.0
        %2361 = vmatpush2.msra.mxu0 0.0
        %2362 = vmatprep.subr.mxu0 0.0
        %2363 = vmatpush2.msra.mxu0 0.0
        %2364 = vmatprep.mubr.f32.mxu0 0.0
        %2365 = vmatmul.mubr.f32.gmra.mxu0 %v2293
        %v2366 = vpop.f32.mrf.mxu0
        %v2367 = vadd.f32 0.0, %v2366
        %v2368 = vpop.f32.mrf.mxu0
        %v2369 = vadd.f32 0.0, %v2368
        %2370 = vdwg.mxu0
        %v2371 = vmul.f32 %v703, %v2367
        %v2372 = vmul.f32 %v707, %v2369
        %v2373 = vadd.f32 %v2371, 0.0
        %v2374 = vadd.f32 %v2372, 0.0
        %s2375 = scalar_lea.vmem %s6, 4
        %v2376 = vld [vmem:[%s2375] sm:$0xf]
        %2377 = vrot.lane.b32.xlu0 %v2280, 16
        %v2378 = vpop.permute.xlu0 %2377
        %2380 = vrot.lane.b32.xlu0 %v2279, 16
        %v2381 = vpop.permute.xlu0 %2380
        %v2382 = vsel %vm721, %v2381, %v2378
        %v2384 = vsel %vm721, %v2378, %v2381
        %v2386 = vsel %vm538, %v2376, 0
        %v2389 = vsel %vm542, %v2384, 0
        %v2391 = vsel %vm542, %v2382, 0
        %2393 = vmatprep.subr.mxu0 0.0
        %2394 = vmatpush1.msra.mxu0 0.0
        %2395 = vmatprep.subr.mxu0 0.0
        %2396 = vmatpush1.msra.mxu0 0.0
        %2397 = vmatprep.subr.mxu0 0.0
        %2398 = vmatpush1.msra.mxu0 0.0
        %2399 = vmatprep.subr.mxu0 0.0
        %2400 = vmatpush1.msra.mxu0 0.0
        %2401 = vmatprep.subr.mxu0 0.0
        %2402 = vmatpush1.msra.mxu0 0.0
        %2403 = vmatprep.subr.mxu0 0.0
        %2404 = vmatpush1.msra.mxu0 0.0
        %2405 = vmatprep.subr.mxu0 0.0
        %2406 = vmatpush1.msra.mxu0 0.0
        %2407 = vmatprep.subr.mxu0 0.0
        %2408 = vmatpush1.msra.mxu0 0.0
        %2409 = vmatprep.subr.mxu0 0.0
        %2410 = vmatpush1.msra.mxu0 0.0
        %2411 = vmatprep.subr.mxu0 0.0
        %2412 = vmatpush1.msra.mxu0 0.0
        %2413 = vmatprep.subr.mxu0 0.0
        %2414 = vmatpush1.msra.mxu0 0.0
        %2415 = vmatprep.subr.mxu0 0.0
        %2416 = vmatpush1.msra.mxu0 0.0
        %2417 = vmatprep.subr.mxu0 0.0
        %2418 = vmatpush1.msra.mxu0 0.0
        %2419 = vmatprep.subr.mxu0 0.0
        %2420 = vmatpush1.msra.mxu0 0.0
        %2421 = vmatprep.subr.mxu0 0.0
        %2422 = vmatpush1.msra.mxu0 0.0
        %2423 = vmatprep.subr.mxu0 %v2391
        %2424 = vmatpush1.msra.mxu0 %v2389
        %2425 = vmatprep.subr.mxu0 0.0
        %2426 = vmatpush2.msra.mxu0 0.0
        %2427 = vmatprep.subr.mxu0 0.0
        %2428 = vmatpush2.msra.mxu0 0.0
        %2429 = vmatprep.subr.mxu0 0.0
        %2430 = vmatpush2.msra.mxu0 0.0
        %2431 = vmatprep.subr.mxu0 0.0
        %2432 = vmatpush2.msra.mxu0 0.0
        %2433 = vmatprep.subr.mxu0 0.0
        %2434 = vmatpush2.msra.mxu0 0.0
        %2435 = vmatprep.subr.mxu0 0.0
        %2436 = vmatpush2.msra.mxu0 0.0
        %2437 = vmatprep.subr.mxu0 0.0
        %2438 = vmatpush2.msra.mxu0 0.0
        %2439 = vmatprep.subr.mxu0 0.0
        %2440 = vmatpush2.msra.mxu0 0.0
        %2441 = vmatprep.subr.mxu0 0.0
        %2442 = vmatpush2.msra.mxu0 0.0
        %2443 = vmatprep.subr.mxu0 0.0
        %2444 = vmatpush2.msra.mxu0 0.0
        %2445 = vmatprep.subr.mxu0 0.0
        %2446 = vmatpush2.msra.mxu0 0.0
        %2447 = vmatprep.subr.mxu0 0.0
        %2448 = vmatpush2.msra.mxu0 0.0
        %2449 = vmatprep.subr.mxu0 0.0
        %2450 = vmatpush2.msra.mxu0 0.0
        %2451 = vmatprep.subr.mxu0 0.0
        %2452 = vmatpush2.msra.mxu0 0.0
        %2453 = vmatprep.subr.mxu0 0.0
        %2454 = vmatpush2.msra.mxu0 0.0
        %2455 = vmatprep.subr.mxu0 0.0
        %2456 = vmatpush2.msra.mxu0 0.0
        %2457 = vmatprep.mubr.f32.mxu0 0.0
        %2458 = vmatmul.mubr.f32.gmra.mxu0 %v2386
        %v2459 = vpop.f32.mrf.mxu0
        %v2460 = vadd.f32 0.0, %v2459
        %v2461 = vpop.f32.mrf.mxu0
        %v2462 = vadd.f32 0.0, %v2461
        %2463 = vdwg.mxu0
        %v2464 = vmul.f32 %v899, %v2460
        %v2465 = vmul.f32 %v903, %v2462
        %v2466 = vadd.f32 %v2373, %v2464
        %v2467 = vadd.f32 %v2374, %v2465
        %s2468 = scalar_lea.vmem %s6, 8
        %v2469 = vld [vmem:[%s2468] sm:$0xf]
        %2470 = vrot.lane.b32.xlu0 %v2280, 15
        %v2471 = vpop.permute.xlu0 %2470
        %2473 = vrot.lane.b32.xlu0 %v2279, 15
        %v2474 = vpop.permute.xlu0 %2473
        %v2475 = vsel %vm917, %v2474, %v2471
        %v2477 = vsel %vm917, %v2471, %v2474
        %v2479 = vsel %vm538, %v2469, 0
        %v2482 = vsel %vm542, %v2477, 0
        %v2484 = vsel %vm542, %v2475, 0
        %2486 = vmatprep.subr.mxu0 0.0
        %2487 = vmatpush1.msra.mxu0 0.0
        %2488 = vmatprep.subr.mxu0 0.0
        %2489 = vmatpush1.msra.mxu0 0.0
        %2490 = vmatprep.subr.mxu0 0.0
        %2491 = vmatpush1.msra.mxu0 0.0
        %2492 = vmatprep.subr.mxu0 0.0
        %2493 = vmatpush1.msra.mxu0 0.0
        %2494 = vmatprep.subr.mxu0 0.0
        %2495 = vmatpush1.msra.mxu0 0.0
        %2496 = vmatprep.subr.mxu0 0.0
        %2497 = vmatpush1.msra.mxu0 0.0
        %2498 = vmatprep.subr.mxu0 0.0
        %2499 = vmatpush1.msra.mxu0 0.0
        %2500 = vmatprep.subr.mxu0 0.0
        %2501 = vmatpush1.msra.mxu0 0.0
        %2502 = vmatprep.subr.mxu0 0.0
        %2503 = vmatpush1.msra.mxu0 0.0
        %2504 = vmatprep.subr.mxu0 0.0
        %2505 = vmatpush1.msra.mxu0 0.0
        %2506 = vmatprep.subr.mxu0 0.0
        %2507 = vmatpush1.msra.mxu0 0.0
        %2508 = vmatprep.subr.mxu0 0.0
        %2509 = vmatpush1.msra.mxu0 0.0
        %2510 = vmatprep.subr.mxu0 0.0
        %2511 = vmatpush1.msra.mxu0 0.0
        %2512 = vmatprep.subr.mxu0 0.0
        %2513 = vmatpush1.msra.mxu0 0.0
        %2514 = vmatprep.subr.mxu0 0.0
        %2515 = vmatpush1.msra.mxu0 0.0
        %2516 = vmatprep.subr.mxu0 %v2484
        %2517 = vmatpush1.msra.mxu0 %v2482
        %2518 = vmatprep.subr.mxu0 0.0
        %2519 = vmatpush2.msra.mxu0 0.0
        %2520 = vmatprep.subr.mxu0 0.0
        %2521 = vmatpush2.msra.mxu0 0.0
        %2522 = vmatprep.subr.mxu0 0.0
        %2523 = vmatpush2.msra.mxu0 0.0
        %2524 = vmatprep.subr.mxu0 0.0
        %2525 = vmatpush2.msra.mxu0 0.0
        %2526 = vmatprep.subr.mxu0 0.0
        %2527 = vmatpush2.msra.mxu0 0.0
        %2528 = vmatprep.subr.mxu0 0.0
        %2529 = vmatpush2.msra.mxu0 0.0
        %2530 = vmatprep.subr.mxu0 0.0
        %2531 = vmatpush2.msra.mxu0 0.0
        %2532 = vmatprep.subr.mxu0 0.0
        %2533 = vmatpush2.msra.mxu0 0.0
        %2534 = vmatprep.subr.mxu0 0.0
        %2535 = vmatpush2.msra.mxu0 0.0
        %2536 = vmatprep.subr.mxu0 0.0
        %2537 = vmatpush2.msra.mxu0 0.0
        %2538 = vmatprep.subr.mxu0 0.0
        %2539 = vmatpush2.msra.mxu0 0.0
        %2540 = vmatprep.subr.mxu0 0.0
        %2541 = vmatpush2.msra.mxu0 0.0
        %2542 = vmatprep.subr.mxu0 0.0
        %2543 = vmatpush2.msra.mxu0 0.0
        %2544 = vmatprep.subr.mxu0 0.0
        %2545 = vmatpush2.msra.mxu0 0.0
        %2546 = vmatprep.subr.mxu0 0.0
        %2547 = vmatpush2.msra.mxu0 0.0
        %2548 = vmatprep.subr.mxu0 0.0
        %2549 = vmatpush2.msra.mxu0 0.0
        %2550 = vmatprep.mubr.f32.mxu0 0.0
        %2551 = vmatmul.mubr.f32.gmra.mxu0 %v2479
        %v2552 = vpop.f32.mrf.mxu0
        %v2553 = vadd.f32 0.0, %v2552
        %v2554 = vpop.f32.mrf.mxu0
        %v2555 = vadd.f32 0.0, %v2554
        %2556 = vdwg.mxu0
        %v2557 = vmul.f32 %v1095, %v2553
        %v2558 = vmul.f32 %v1099, %v2555
        %v2559 = vadd.f32 %v2466, %v2557
        %v2560 = vadd.f32 %v2467, %v2558
        %s2561 = scalar_lea.vmem %s6, 12
        %v2562 = vld [vmem:[%s2561] sm:$0xf]
        %2563 = vrot.lane.b32.xlu0 %v2280, 1
        %v2564 = vpop.permute.xlu0 %2563
        %2566 = vrot.lane.b32.xlu0 %v2279, 1
        %v2567 = vpop.permute.xlu0 %2566
        %v2568 = vsel %vm1113, %v2567, %v2564
        %v2570 = vsel %vm1113, %v2564, %v2567
        %v2572 = vsel %vm538, %v2562, 0
        %v2575 = vsel %vm542, %v2570, 0
        %v2577 = vsel %vm542, %v2568, 0
        %2579 = vmatprep.subr.mxu0 0.0
        %2580 = vmatpush1.msra.mxu0 0.0
        %2581 = vmatprep.subr.mxu0 0.0
        %2582 = vmatpush1.msra.mxu0 0.0
        %2583 = vmatprep.subr.mxu0 0.0
        %2584 = vmatpush1.msra.mxu0 0.0
        %2585 = vmatprep.subr.mxu0 0.0
        %2586 = vmatpush1.msra.mxu0 0.0
        %2587 = vmatprep.subr.mxu0 0.0
        %2588 = vmatpush1.msra.mxu0 0.0
        %2589 = vmatprep.subr.mxu0 0.0
        %2590 = vmatpush1.msra.mxu0 0.0
        %2591 = vmatprep.subr.mxu0 0.0
        %2592 = vmatpush1.msra.mxu0 0.0
        %2593 = vmatprep.subr.mxu0 0.0
        %2594 = vmatpush1.msra.mxu0 0.0
        %2595 = vmatprep.subr.mxu0 0.0
        %2596 = vmatpush1.msra.mxu0 0.0
        %2597 = vmatprep.subr.mxu0 0.0
        %2598 = vmatpush1.msra.mxu0 0.0
        %2599 = vmatprep.subr.mxu0 0.0
        %2600 = vmatpush1.msra.mxu0 0.0
        %2601 = vmatprep.subr.mxu0 0.0
        %2602 = vmatpush1.msra.mxu0 0.0
        %2603 = vmatprep.subr.mxu0 0.0
        %2604 = vmatpush1.msra.mxu0 0.0
        %2605 = vmatprep.subr.mxu0 0.0
        %2606 = vmatpush1.msra.mxu0 0.0
        %2607 = vmatprep.subr.mxu0 0.0
        %2608 = vmatpush1.msra.mxu0 0.0
        %2609 = vmatprep.subr.mxu0 %v2577
        %2610 = vmatpush1.msra.mxu0 %v2575
        %2611 = vmatprep.subr.mxu0 0.0
        %2612 = vmatpush2.msra.mxu0 0.0
        %2613 = vmatprep.subr.mxu0 0.0
        %2614 = vmatpush2.msra.mxu0 0.0
        %2615 = vmatprep.subr.mxu0 0.0
        %2616 = vmatpush2.msra.mxu0 0.0
        %2617 = vmatprep.subr.mxu0 0.0
        %2618 = vmatpush2.msra.mxu0 0.0
        %2619 = vmatprep.subr.mxu0 0.0
        %2620 = vmatpush2.msra.mxu0 0.0
        %2621 = vmatprep.subr.mxu0 0.0
        %2622 = vmatpush2.msra.mxu0 0.0
        %2623 = vmatprep.subr.mxu0 0.0
        %2624 = vmatpush2.msra.mxu0 0.0
        %2625 = vmatprep.subr.mxu0 0.0
        %2626 = vmatpush2.msra.mxu0 0.0
        %2627 = vmatprep.subr.mxu0 0.0
        %2628 = vmatpush2.msra.mxu0 0.0
        %2629 = vmatprep.subr.mxu0 0.0
        %2630 = vmatpush2.msra.mxu0 0.0
        %2631 = vmatprep.subr.mxu0 0.0
        %2632 = vmatpush2.msra.mxu0 0.0
        %2633 = vmatprep.subr.mxu0 0.0
        %2634 = vmatpush2.msra.mxu0 0.0
        %2635 = vmatprep.subr.mxu0 0.0
        %2636 = vmatpush2.msra.mxu0 0.0
        %2637 = vmatprep.subr.mxu0 0.0
        %2638 = vmatpush2.msra.mxu0 0.0
        %2639 = vmatprep.subr.mxu0 0.0
        %2640 = vmatpush2.msra.mxu0 0.0
        %2641 = vmatprep.subr.mxu0 0.0
        %2642 = vmatpush2.msra.mxu0 0.0
        %2643 = vmatprep.mubr.f32.mxu0 0.0
        %2644 = vmatmul.mubr.f32.gmra.mxu0 %v2572
        %v2645 = vpop.f32.mrf.mxu0
        %v2646 = vadd.f32 0.0, %v2645
        %v2647 = vpop.f32.mrf.mxu0
        %v2648 = vadd.f32 0.0, %v2647
        %2649 = vdwg.mxu0
        %v2650 = vmul.f32 %v1291, %v2646
        %v2651 = vmul.f32 %v1295, %v2648
        %v2652 = vadd.f32 %v2559, %v2650
        %v2653 = vadd.f32 %v2560, %v2651
        %s2654 = scalar_lea.vmem %s6, 16
        %v2655 = vld [vmem:[%s2654] sm:$0xf]
        %v2657 = vsel %vm538, %v2655, 0
        %v2659 = vsel %vm542, %v2279, 0
        %v2661 = vsel %vm542, %v2280, 0
        %2663 = vmatprep.subr.mxu0 0.0
        %2664 = vmatpush1.msra.mxu0 0.0
        %2665 = vmatprep.subr.mxu0 0.0
        %2666 = vmatpush1.msra.mxu0 0.0
        %2667 = vmatprep.subr.mxu0 0.0
        %2668 = vmatpush1.msra.mxu0 0.0
        %2669 = vmatprep.subr.mxu0 0.0
        %2670 = vmatpush1.msra.mxu0 0.0
        %2671 = vmatprep.subr.mxu0 0.0
        %2672 = vmatpush1.msra.mxu0 0.0
        %2673 = vmatprep.subr.mxu0 0.0
        %2674 = vmatpush1.msra.mxu0 0.0
        %2675 = vmatprep.subr.mxu0 0.0
        %2676 = vmatpush1.msra.mxu0 0.0
        %2677 = vmatprep.subr.mxu0 0.0
        %2678 = vmatpush1.msra.mxu0 0.0
        %2679 = vmatprep.subr.mxu0 0.0
        %2680 = vmatpush1.msra.mxu0 0.0
        %2681 = vmatprep.subr.mxu0 0.0
        %2682 = vmatpush1.msra.mxu0 0.0
        %2683 = vmatprep.subr.mxu0 0.0
        %2684 = vmatpush1.msra.mxu0 0.0
        %2685 = vmatprep.subr.mxu0 0.0
        %2686 = vmatpush1.msra.mxu0 0.0
        %2687 = vmatprep.subr.mxu0 0.0
        %2688 = vmatpush1.msra.mxu0 0.0
        %2689 = vmatprep.subr.mxu0 0.0
        %2690 = vmatpush1.msra.mxu0 0.0
        %2691 = vmatprep.subr.mxu0 0.0
        %2692 = vmatpush1.msra.mxu0 0.0
        %2693 = vmatprep.subr.mxu0 %v2661
        %2694 = vmatpush1.msra.mxu0 %v2659
        %2695 = vmatprep.subr.mxu0 0.0
        %2696 = vmatpush2.msra.mxu0 0.0
        %2697 = vmatprep.subr.mxu0 0.0
        %2698 = vmatpush2.msra.mxu0 0.0
        %2699 = vmatprep.subr.mxu0 0.0
        %2700 = vmatpush2.msra.mxu0 0.0
        %2701 = vmatprep.subr.mxu0 0.0
        %2702 = vmatpush2.msra.mxu0 0.0
        %2703 = vmatprep.subr.mxu0 0.0
        %2704 = vmatpush2.msra.mxu0 0.0
        %2705 = vmatprep.subr.mxu0 0.0
        %2706 = vmatpush2.msra.mxu0 0.0
        %2707 = vmatprep.subr.mxu0 0.0
        %2708 = vmatpush2.msra.mxu0 0.0
        %2709 = vmatprep.subr.mxu0 0.0
        %2710 = vmatpush2.msra.mxu0 0.0
        %2711 = vmatprep.subr.mxu0 0.0
        %2712 = vmatpush2.msra.mxu0 0.0
        %2713 = vmatprep.subr.mxu0 0.0
        %2714 = vmatpush2.msra.mxu0 0.0
        %2715 = vmatprep.subr.mxu0 0.0
        %2716 = vmatpush2.msra.mxu0 0.0
        %2717 = vmatprep.subr.mxu0 0.0
        %2718 = vmatpush2.msra.mxu0 0.0
        %2719 = vmatprep.subr.mxu0 0.0
        %2720 = vmatpush2.msra.mxu0 0.0
        %2721 = vmatprep.subr.mxu0 0.0
        %2722 = vmatpush2.msra.mxu0 0.0
        %2723 = vmatprep.subr.mxu0 0.0
        %2724 = vmatpush2.msra.mxu0 0.0
        %2725 = vmatprep.subr.mxu0 0.0
        %2726 = vmatpush2.msra.mxu0 0.0
        %2727 = vmatprep.mubr.f32.mxu0 0.0
        %2728 = vmatmul.mubr.f32.gmra.mxu0 %v2657
        %v2729 = vpop.f32.mrf.mxu0
        %v2730 = vadd.f32 0.0, %v2729
        %v2731 = vpop.f32.mrf.mxu0
        %v2732 = vadd.f32 0.0, %v2731
        %2733 = vdwg.mxu0
        %v2734 = vmul.f32 %v1468, %v2730
        %v2735 = vmul.f32 %v1472, %v2732
        %v2736 = vadd.f32 %v2652, %v2734
        %v2737 = vadd.f32 %v2653, %v2735
        %s2738 = scalar_lea.vmem %s6, 20
        %v2739 = vld [vmem:[%s2738] sm:$0xf]
        %2740 = vrot.lane.b32.xlu0 %v2279, 127
        %v2741 = vpop.permute.xlu0 %2740
        %2742 = vrot.lane.b32.xlu0 %v2280, 127
        %v2743 = vpop.permute.xlu0 %2742
        %v2744 = vsel %vm1485, %v2741, %v2743
        %v2747 = vsel %vm1485, %v2743, %v2741
        %v2749 = vsel %vm538, %v2739, 0
        %v2751 = vsel %vm542, %v2744, 0
        %v2754 = vsel %vm542, %v2747, 0
        %2756 = vmatprep.subr.mxu0 0.0
        %2757 = vmatpush1.msra.mxu0 0.0
        %2758 = vmatprep.subr.mxu0 0.0
        %2759 = vmatpush1.msra.mxu0 0.0
        %2760 = vmatprep.subr.mxu0 0.0
        %2761 = vmatpush1.msra.mxu0 0.0
        %2762 = vmatprep.subr.mxu0 0.0
        %2763 = vmatpush1.msra.mxu0 0.0
        %2764 = vmatprep.subr.mxu0 0.0
        %2765 = vmatpush1.msra.mxu0 0.0
        %2766 = vmatprep.subr.mxu0 0.0
        %2767 = vmatpush1.msra.mxu0 0.0
        %2768 = vmatprep.subr.mxu0 0.0
        %2769 = vmatpush1.msra.mxu0 0.0
        %2770 = vmatprep.subr.mxu0 0.0
        %2771 = vmatpush1.msra.mxu0 0.0
        %2772 = vmatprep.subr.mxu0 0.0
        %2773 = vmatpush1.msra.mxu0 0.0
        %2774 = vmatprep.subr.mxu0 0.0
        %2775 = vmatpush1.msra.mxu0 0.0
        %2776 = vmatprep.subr.mxu0 0.0
        %2777 = vmatpush1.msra.mxu0 0.0
        %2778 = vmatprep.subr.mxu0 0.0
        %2779 = vmatpush1.msra.mxu0 0.0
        %2780 = vmatprep.subr.mxu0 0.0
        %2781 = vmatpush1.msra.mxu0 0.0
        %2782 = vmatprep.subr.mxu0 0.0
        %2783 = vmatpush1.msra.mxu0 0.0
        %2784 = vmatprep.subr.mxu0 0.0
        %2785 = vmatpush1.msra.mxu0 0.0
        %2786 = vmatprep.subr.mxu0 %v2754
        %2787 = vmatpush1.msra.mxu0 %v2751
        %2788 = vmatprep.subr.mxu0 0.0
        %2789 = vmatpush2.msra.mxu0 0.0
        %2790 = vmatprep.subr.mxu0 0.0
        %2791 = vmatpush2.msra.mxu0 0.0
        %2792 = vmatprep.subr.mxu0 0.0
        %2793 = vmatpush2.msra.mxu0 0.0
        %2794 = vmatprep.subr.mxu0 0.0
        %2795 = vmatpush2.msra.mxu0 0.0
        %2796 = vmatprep.subr.mxu0 0.0
        %2797 = vmatpush2.msra.mxu0 0.0
        %2798 = vmatprep.subr.mxu0 0.0
        %2799 = vmatpush2.msra.mxu0 0.0
        %2800 = vmatprep.subr.mxu0 0.0
        %2801 = vmatpush2.msra.mxu0 0.0
        %2802 = vmatprep.subr.mxu0 0.0
        %2803 = vmatpush2.msra.mxu0 0.0
        %2804 = vmatprep.subr.mxu0 0.0
        %2805 = vmatpush2.msra.mxu0 0.0
        %2806 = vmatprep.subr.mxu0 0.0
        %2807 = vmatpush2.msra.mxu0 0.0
        %2808 = vmatprep.subr.mxu0 0.0
        %2809 = vmatpush2.msra.mxu0 0.0
        %2810 = vmatprep.subr.mxu0 0.0
        %2811 = vmatpush2.msra.mxu0 0.0
        %2812 = vmatprep.subr.mxu0 0.0
        %2813 = vmatpush2.msra.mxu0 0.0
        %2814 = vmatprep.subr.mxu0 0.0
        %2815 = vmatpush2.msra.mxu0 0.0
        %2816 = vmatprep.subr.mxu0 0.0
        %2817 = vmatpush2.msra.mxu0 0.0
        %2818 = vmatprep.subr.mxu0 0.0
        %2819 = vmatpush2.msra.mxu0 0.0
        %2820 = vmatprep.mubr.f32.mxu0 0.0
        %2821 = vmatmul.mubr.f32.gmra.mxu0 %v2749
        %v2822 = vpop.f32.mrf.mxu0
        %v2823 = vadd.f32 0.0, %v2822
        %v2824 = vpop.f32.mrf.mxu0
        %v2825 = vadd.f32 0.0, %v2824
        %2826 = vdwg.mxu0
        %v2827 = vmul.f32 %v1664, %v2823
        %v2828 = vmul.f32 %v1668, %v2825
        %v2829 = vadd.f32 %v2736, %v2827
        %v2830 = vadd.f32 %v2737, %v2828
        %s2831 = scalar_lea.vmem %s6, 24
        %v2832 = vld [vmem:[%s2831] sm:$0xf]
        %2833 = vrot.lane.b32.xlu0 %v2279, 113
        %v2834 = vpop.permute.xlu0 %2833
        %2835 = vrot.lane.b32.xlu0 %v2280, 113
        %v2836 = vpop.permute.xlu0 %2835
        %v2837 = vsel %vm1681, %v2834, %v2836
        %v2840 = vsel %vm1681, %v2836, %v2834
        %v2842 = vsel %vm538, %v2832, 0
        %v2844 = vsel %vm542, %v2837, 0
        %v2847 = vsel %vm542, %v2840, 0
        %2849 = vmatprep.subr.mxu0 0.0
        %2850 = vmatpush1.msra.mxu0 0.0
        %2851 = vmatprep.subr.mxu0 0.0
        %2852 = vmatpush1.msra.mxu0 0.0
        %2853 = vmatprep.subr.mxu0 0.0
        %2854 = vmatpush1.msra.mxu0 0.0
        %2855 = vmatprep.subr.mxu0 0.0
        %2856 = vmatpush1.msra.mxu0 0.0
        %2857 = vmatprep.subr.mxu0 0.0
        %2858 = vmatpush1.msra.mxu0 0.0
        %2859 = vmatprep.subr.mxu0 0.0
        %2860 = vmatpush1.msra.mxu0 0.0
        %2861 = vmatprep.subr.mxu0 0.0
        %2862 = vmatpush1.msra.mxu0 0.0
        %2863 = vmatprep.subr.mxu0 0.0
        %2864 = vmatpush1.msra.mxu0 0.0
        %2865 = vmatprep.subr.mxu0 0.0
        %2866 = vmatpush1.msra.mxu0 0.0
        %2867 = vmatprep.subr.mxu0 0.0
        %2868 = vmatpush1.msra.mxu0 0.0
        %2869 = vmatprep.subr.mxu0 0.0
        %2870 = vmatpush1.msra.mxu0 0.0
        %2871 = vmatprep.subr.mxu0 0.0
        %2872 = vmatpush1.msra.mxu0 0.0
        %2873 = vmatprep.subr.mxu0 0.0
        %2874 = vmatpush1.msra.mxu0 0.0
        %2875 = vmatprep.subr.mxu0 0.0
        %2876 = vmatpush1.msra.mxu0 0.0
        %2877 = vmatprep.subr.mxu0 0.0
        %2878 = vmatpush1.msra.mxu0 0.0
        %2879 = vmatprep.subr.mxu0 %v2847
        %2880 = vmatpush1.msra.mxu0 %v2844
        %2881 = vmatprep.subr.mxu0 0.0
        %2882 = vmatpush2.msra.mxu0 0.0
        %2883 = vmatprep.subr.mxu0 0.0
        %2884 = vmatpush2.msra.mxu0 0.0
        %2885 = vmatprep.subr.mxu0 0.0
        %2886 = vmatpush2.msra.mxu0 0.0
        %2887 = vmatprep.subr.mxu0 0.0
        %2888 = vmatpush2.msra.mxu0 0.0
        %2889 = vmatprep.subr.mxu0 0.0
        %2890 = vmatpush2.msra.mxu0 0.0
        %2891 = vmatprep.subr.mxu0 0.0
        %2892 = vmatpush2.msra.mxu0 0.0
        %2893 = vmatprep.subr.mxu0 0.0
        %2894 = vmatpush2.msra.mxu0 0.0
        %2895 = vmatprep.subr.mxu0 0.0
        %2896 = vmatpush2.msra.mxu0 0.0
        %2897 = vmatprep.subr.mxu0 0.0
        %2898 = vmatpush2.msra.mxu0 0.0
        %2899 = vmatprep.subr.mxu0 0.0
        %2900 = vmatpush2.msra.mxu0 0.0
        %2901 = vmatprep.subr.mxu0 0.0
        %2902 = vmatpush2.msra.mxu0 0.0
        %2903 = vmatprep.subr.mxu0 0.0
        %2904 = vmatpush2.msra.mxu0 0.0
        %2905 = vmatprep.subr.mxu0 0.0
        %2906 = vmatpush2.msra.mxu0 0.0
        %2907 = vmatprep.subr.mxu0 0.0
        %2908 = vmatpush2.msra.mxu0 0.0
        %2909 = vmatprep.subr.mxu0 0.0
        %2910 = vmatpush2.msra.mxu0 0.0
        %2911 = vmatprep.subr.mxu0 0.0
        %2912 = vmatpush2.msra.mxu0 0.0
        %2913 = vmatprep.mubr.f32.mxu0 0.0
        %2914 = vmatmul.mubr.f32.gmra.mxu0 %v2842
        %v2915 = vpop.f32.mrf.mxu0
        %v2916 = vadd.f32 0.0, %v2915
        %v2917 = vpop.f32.mrf.mxu0
        %v2918 = vadd.f32 0.0, %v2917
        %2919 = vdwg.mxu0
        %v2920 = vmul.f32 %v1860, %v2916
        %v2921 = vmul.f32 %v1864, %v2918
        %v2922 = vadd.f32 %v2829, %v2920
        %v2923 = vadd.f32 %v2830, %v2921
        %s2924 = scalar_lea.vmem %s6, 28
        %v2925 = vld [vmem:[%s2924] sm:$0xf]
        %2926 = vrot.lane.b32.xlu0 %v2279, 112
        %v2927 = vpop.permute.xlu0 %2926
        %2928 = vrot.lane.b32.xlu0 %v2280, 112
        %v2929 = vpop.permute.xlu0 %2928
        %v2930 = vsel %vm1877, %v2927, %v2929
        %v2933 = vsel %vm1877, %v2929, %v2927
        %v2935 = vsel %vm538, %v2925, 0
        %v2937 = vsel %vm542, %v2930, 0
        %v2940 = vsel %vm542, %v2933, 0
        %2942 = vmatprep.subr.mxu0 0.0
        %2943 = vmatpush1.msra.mxu0 0.0
        %2944 = vmatprep.subr.mxu0 0.0
        %2945 = vmatpush1.msra.mxu0 0.0
        %2946 = vmatprep.subr.mxu0 0.0
        %2947 = vmatpush1.msra.mxu0 0.0
        %2948 = vmatprep.subr.mxu0 0.0
        %2949 = vmatpush1.msra.mxu0 0.0
        %2950 = vmatprep.subr.mxu0 0.0
        %2951 = vmatpush1.msra.mxu0 0.0
        %2952 = vmatprep.subr.mxu0 0.0
        %2953 = vmatpush1.msra.mxu0 0.0
        %2954 = vmatprep.subr.mxu0 0.0
        %2955 = vmatpush1.msra.mxu0 0.0
        %2956 = vmatprep.subr.mxu0 0.0
        %2957 = vmatpush1.msra.mxu0 0.0
        %2958 = vmatprep.subr.mxu0 0.0
        %2959 = vmatpush1.msra.mxu0 0.0
        %2960 = vmatprep.subr.mxu0 0.0
        %2961 = vmatpush1.msra.mxu0 0.0
        %2962 = vmatprep.subr.mxu0 0.0
        %2963 = vmatpush1.msra.mxu0 0.0
        %2964 = vmatprep.subr.mxu0 0.0
        %2965 = vmatpush1.msra.mxu0 0.0
        %2966 = vmatprep.subr.mxu0 0.0
        %2967 = vmatpush1.msra.mxu0 0.0
        %2968 = vmatprep.subr.mxu0 0.0
        %2969 = vmatpush1.msra.mxu0 0.0
        %2970 = vmatprep.subr.mxu0 0.0
        %2971 = vmatpush1.msra.mxu0 0.0
        %2972 = vmatprep.subr.mxu0 %v2940
        %2973 = vmatpush1.msra.mxu0 %v2937
        %2974 = vmatprep.subr.mxu0 0.0
        %2975 = vmatpush2.msra.mxu0 0.0
        %2976 = vmatprep.subr.mxu0 0.0
        %2977 = vmatpush2.msra.mxu0 0.0
        %2978 = vmatprep.subr.mxu0 0.0
        %2979 = vmatpush2.msra.mxu0 0.0
        %2980 = vmatprep.subr.mxu0 0.0
        %2981 = vmatpush2.msra.mxu0 0.0
        %2982 = vmatprep.subr.mxu0 0.0
        %2983 = vmatpush2.msra.mxu0 0.0
        %2984 = vmatprep.subr.mxu0 0.0
        %2985 = vmatpush2.msra.mxu0 0.0
        %2986 = vmatprep.subr.mxu0 0.0
        %2987 = vmatpush2.msra.mxu0 0.0
        %2988 = vmatprep.subr.mxu0 0.0
        %2989 = vmatpush2.msra.mxu0 0.0
        %2990 = vmatprep.subr.mxu0 0.0
        %2991 = vmatpush2.msra.mxu0 0.0
        %2992 = vmatprep.subr.mxu0 0.0
        %2993 = vmatpush2.msra.mxu0 0.0
        %2994 = vmatprep.subr.mxu0 0.0
        %2995 = vmatpush2.msra.mxu0 0.0
        %2996 = vmatprep.subr.mxu0 0.0
        %2997 = vmatpush2.msra.mxu0 0.0
        %2998 = vmatprep.subr.mxu0 0.0
        %2999 = vmatpush2.msra.mxu0 0.0
        %3000 = vmatprep.subr.mxu0 0.0
        %3001 = vmatpush2.msra.mxu0 0.0
        %3002 = vmatprep.subr.mxu0 0.0
        %3003 = vmatpush2.msra.mxu0 0.0
        %3004 = vmatprep.subr.mxu0 0.0
        %3005 = vmatpush2.msra.mxu0 0.0
        %3006 = vmatprep.mubr.f32.mxu0 0.0
        %3007 = vmatmul.mubr.f32.gmra.mxu0 %v2935
        %v3008 = vpop.f32.mrf.mxu0
        %v3009 = vadd.f32 0.0, %v3008
        %v3010 = vpop.f32.mrf.mxu0
        %v3011 = vadd.f32 0.0, %v3010
        %3012 = vdwg.mxu0
        %v3013 = vmul.f32 %v2056, %v3009
        %v3014 = vmul.f32 %v2060, %v3011
        %v3015 = vadd.f32 %v2922, %v3013
        %v3016 = vadd.f32 %v2923, %v3014
        %s3017 = scalar_lea.vmem %s6, 32
        %v3018 = vld [vmem:[%s3017] sm:$0xf]
        %3019 = vrot.lane.b32.xlu0 %v2279, 111
        %v3020 = vpop.permute.xlu0 %3019
        %3021 = vrot.lane.b32.xlu0 %v2280, 111
        %v3022 = vpop.permute.xlu0 %3021
        %v3023 = vsel %vm2073, %v3020, %v3022
        %v3026 = vsel %vm2073, %v3022, %v3020
        %v3028 = vsel %vm538, %v3018, 0
        %v3030 = vsel %vm542, %v3023, 0
        %v3033 = vsel %vm542, %v3026, 0
        %3035 = vmatprep.subr.mxu0 0.0
        %3036 = vmatpush1.msra.mxu0 0.0
        %3037 = vmatprep.subr.mxu0 0.0
        %3038 = vmatpush1.msra.mxu0 0.0
        %3039 = vmatprep.subr.mxu0 0.0
        %3040 = vmatpush1.msra.mxu0 0.0
        %3041 = vmatprep.subr.mxu0 0.0
        %3042 = vmatpush1.msra.mxu0 0.0
        %3043 = vmatprep.subr.mxu0 0.0
        %3044 = vmatpush1.msra.mxu0 0.0
        %3045 = vmatprep.subr.mxu0 0.0
        %3046 = vmatpush1.msra.mxu0 0.0
        %3047 = vmatprep.subr.mxu0 0.0
        %3048 = vmatpush1.msra.mxu0 0.0
        %3049 = vmatprep.subr.mxu0 0.0
        %3050 = vmatpush1.msra.mxu0 0.0
        %3051 = vmatprep.subr.mxu0 0.0
        %3052 = vmatpush1.msra.mxu0 0.0
        %3053 = vmatprep.subr.mxu0 0.0
        %3054 = vmatpush1.msra.mxu0 0.0
        %3055 = vmatprep.subr.mxu0 0.0
        %3056 = vmatpush1.msra.mxu0 0.0
        %3057 = vmatprep.subr.mxu0 0.0
        %3058 = vmatpush1.msra.mxu0 0.0
        %3059 = vmatprep.subr.mxu0 0.0
        %3060 = vmatpush1.msra.mxu0 0.0
        %3061 = vmatprep.subr.mxu0 0.0
        %3062 = vmatpush1.msra.mxu0 0.0
        %3063 = vmatprep.subr.mxu0 0.0
        %3064 = vmatpush1.msra.mxu0 0.0
        %3065 = vmatprep.subr.mxu0 %v3033
        %3066 = vmatpush1.msra.mxu0 %v3030
        %3067 = vmatprep.subr.mxu0 0.0
        %3068 = vmatpush2.msra.mxu0 0.0
        %3069 = vmatprep.subr.mxu0 0.0
        %3070 = vmatpush2.msra.mxu0 0.0
        %3071 = vmatprep.subr.mxu0 0.0
        %3072 = vmatpush2.msra.mxu0 0.0
        %3073 = vmatprep.subr.mxu0 0.0
        %3074 = vmatpush2.msra.mxu0 0.0
        %3075 = vmatprep.subr.mxu0 0.0
        %3076 = vmatpush2.msra.mxu0 0.0
        %3077 = vmatprep.subr.mxu0 0.0
        %3078 = vmatpush2.msra.mxu0 0.0
        %3079 = vmatprep.subr.mxu0 0.0
        %3080 = vmatpush2.msra.mxu0 0.0
        %3081 = vmatprep.subr.mxu0 0.0
        %3082 = vmatpush2.msra.mxu0 0.0
        %3083 = vmatprep.subr.mxu0 0.0
        %3084 = vmatpush2.msra.mxu0 0.0
        %3085 = vmatprep.subr.mxu0 0.0
        %3086 = vmatpush2.msra.mxu0 0.0
        %3087 = vmatprep.subr.mxu0 0.0
        %3088 = vmatpush2.msra.mxu0 0.0
        %3089 = vmatprep.subr.mxu0 0.0
        %3090 = vmatpush2.msra.mxu0 0.0
        %3091 = vmatprep.subr.mxu0 0.0
        %3092 = vmatpush2.msra.mxu0 0.0
        %3093 = vmatprep.subr.mxu0 0.0
        %3094 = vmatpush2.msra.mxu0 0.0
        %3095 = vmatprep.subr.mxu0 0.0
        %3096 = vmatpush2.msra.mxu0 0.0
        %3097 = vmatprep.subr.mxu0 0.0
        %3098 = vmatpush2.msra.mxu0 0.0
        %3099 = vmatprep.mubr.f32.mxu0 0.0
        %3100 = vmatmul.mubr.f32.gmra.mxu0 %v3028
        %v3101 = vpop.f32.mrf.mxu0
        %v3102 = vadd.f32 0.0, %v3101
        %v3103 = vpop.f32.mrf.mxu0
        %v3104 = vadd.f32 0.0, %v3103
        %3105 = vdwg.mxu0
        %v3106 = vmul.f32 %v2252, %v3102
        %v3107 = vmul.f32 %v2256, %v3104
        %v3108 = vadd.f32 %v3015, %v3106
        %v3109 = vadd.f32 %v3016, %v3107
        %v3110 = vld [vmem:[%s9] sm:$0xf]
        %3112 = vset.pattern.permute.xlu0 0
        %3113 = vperm.xlu0 %3112, %v3110
        %v3114 = vpop.permute.xlu0 %3113
        %v3116 = vmul.f32 %v3108, %v3114
        %v3117 = vmul.f32 %v3109, %v3114
        %v3118 = vld [vmem:[%s10] sm:$0xf]
        %3120 = vset.pattern.permute.xlu0 0
        %3121 = vperm.xlu0 %3120, %v3118
        %v3122 = vpop.permute.xlu0 %3121
        %v3124 = vadd.f32 %v3116, %v3122
        %v3125 = vadd.f32 %v3117, %v3122
        %v3126 = vmax.f32 %v3124, 0.0
        %v3127 = vmax.f32 %v3125, 0.0
        %v3130 = vcombine.low %v3126, %v3127
        %3132 = vst [vmem:[%s416] sm:$0xff] %v3130
        %s3133 = sand.u32 %s277, 1
        %s3134 = scalar_lea.sflag [#allocation4], %s3133
        %s3135 = sand.u32 %s277, 1
        %s3136 = smul.addr %s3135, 8
        %s3137 = scalar_lea.vmem [#allocation5], %s3136
        // Predicated region
        $region69: #{tpu_custom_call.1} parent=63 // pred_check
          %p3138 = pneg %p287
        $region70: #{tpu_custom_call.1} parent=63 // pred_check_branch
          %3140 = sbr.rel (%p3138) target = $region72
        $region71: #{tpu_custom_call.1} parent=63 // pred_region
          %s3142 = ssub.s32 128, 128
          %3143 = vsyncadd %s3134, %s3142
          %s3144 = smul.addr %s28, 2
          %s3145 = smul.addr %s3144, 64
          %s3146 = scalar_lea.hbm %s11, %s3145
          %s3148 = sshll.u32 %s3137, 4
          %s3149 = int_to_ptr.vmem [resolvable:$true] %s3148
          %3151 = dma.vmem_to_hbm [thread:$0]  %s3149, 128, %s3146, %s3134
        $region72: #{tpu_custom_call.1} parent=63 // pred_fallthru
          _
      $region64: #{tpu_custom_call.1} parent=5 // pred_fallthru
        _
      %p3152 = scmp.le.s32.totalorder 2, %s23
      // Predicated region
      $region73: #{tpu_custom_call.1} parent=5 // pred_check
        %p3153 = pneg %p3152
      $region74: #{tpu_custom_call.1} parent=5 // pred_check_branch
        %3155 = sbr.rel (%p3153) target = $region76
      $region75: #{tpu_custom_call.1} parent=5 // pred_region
        %s3156 = ssub.s32 %s23, 2
        // Predicated region
        $region77: #{tpu_custom_call.1} parent=75 // pred_check
          %p3157 = pneg %p293
        $region78: #{tpu_custom_call.1} parent=75 // pred_check_branch
          %3159 = sbr.rel (%p3157) target = $region80
        $region79: #{tpu_custom_call.1} parent=75 // pred_region
          %s3160 = sand.u32 %s278, 1
          %s3161 = scalar_lea.sflag [#allocation4], %s3160
          %s3162 = sand.u32 %s278, 1
          %s3163 = smul.addr %s3162, 8
          %s3164 = scalar_lea.vmem [#allocation5], %s3163
          %3165 = dma.done %s3161, 128
        $region80: #{tpu_custom_call.1} parent=75 // pred_fallthru
          _
      $region76: #{tpu_custom_call.1} parent=5 // pred_fallthru
        _
    $region6: #{tpu_custom_call.1} parent=1 // loop_footer
      %s27 = sadd.s32 1, %s23
    $region7: #{tpu_custom_call.1} parent=1 // loop_footer_branch
      %22 = sbr.rel target = $region3
    $region8: #{tpu_custom_call.1} parent=1 // loop_exit
      _
    %3166 = vsyncpa [#allocation3], 1
    %s3167 = scalar_lea.sflag [#allocation3], 1
    %3168 = vsyncpa %s3167, 1
    %3169 = vsyncpa [#allocation4], 1
    %s3170 = scalar_lea.sflag [#allocation4], 1
    %3171 = vsyncpa %s3170, 1

</llo_original>
